<compile_context>
chip_gen: v5e
topology: v5e:2x2
jax: 0.10.0
libtpu: 0.0.40
codegen_flags: <defaults>
</compile_context>

<pallas_src>
import functools

import jax
import jax.numpy as jnp
from jax.experimental import pallas as pl
from jax.experimental.pallas import tpu as pltpu


def _resblock_kernel(x_ref, w1_ref, b1_ref, w2_ref, b2_ref, o_ref, *,
                     height, width):
    """One grid step over a lane-dense slab of nb whole images.

    x_ref : (C, L) f32, L = nb*H*W, lane index = img*H*W + y*W + x
    w*_ref: (9, C, C) bf16, tap t = ky*3 + kx holds W[:, :, ky, kx]
    b*_ref: (C, 1) f32
    o_ref : (C, L) f32
    """
    c, L = x_ref.shape
    w = width
    hw = height * width

    # In-kernel edge masks (no HBM mask inputs).  With the batch fused on the
    # lane axis the per-image pattern repeats every H*W lanes, which also
    # prevents adjacent images from leaking into each other through the rolls.
    lane = jax.lax.broadcasted_iota(jnp.int32, (1, L), 1)
    col = lane % w               # column within an image row (hw % w == 0)
    pix = lane % hw              # pixel index within an image
    src_ok_dxp = col != 0        # zero source col 0 before the dx=+1 shift
    src_ok_dxm = col != (w - 1)  # zero source col W-1 before the dx=-1 shift
    out_ok_dym = pix >= w        # dy=-1 taps invalid at output row 0
    out_ok_dyp = pix < (hw - w)  # dy=+1 taps invalid at output row H-1

    b1 = b1_ref[...]
    b2 = b2_ref[...]

    def conv3x3(x_f32, w_ref, bias):
        # Column (dx) shifts commute with the per-lane matmul: build three
        # shared dx-shifted sources once (mask the wrapped source column in
        # f32, roll on the XLU, cast once to bf16 for the MXU).
        xp = pltpu.roll(jnp.where(src_ok_dxp, x_f32, 0.0), L - 1, axis=1)  # x[idx+1]
        xm = pltpu.roll(jnp.where(src_ok_dxm, x_f32, 0.0), 1, axis=1)      # x[idx-1]
        srcs = (xm.astype(jnp.bfloat16),        # dx = -1
                x_f32.astype(jnp.bfloat16),     # dx =  0
                xp.astype(jnp.bfloat16))        # dx = +1

        def dy_group(g):
            # sum_dx W[dy, dx] @ src_dx : three small K=C matmuls, f32 accum.
            acc = jnp.dot(w_ref[3 * g + 0], srcs[0],
                          preferred_element_type=jnp.float32)
            acc += jnp.dot(w_ref[3 * g + 1], srcs[1],
                           preferred_element_type=jnp.float32)
            acc += jnp.dot(w_ref[3 * g + 2], srcs[2],
                           preferred_element_type=jnp.float32)
            return acc

        q_m1 = dy_group(0)   # dy = -1 (reads the row above)
        q_0 = dy_group(1)    # dy =  0
        q_p1 = dy_group(2)   # dy = +1 (reads the row below)

        # Row (dy) shifts also commute: roll the two f32 partials by -+W along
        # the lane axis and zero the output rows that cross an image edge.
        out = q_0
        out = out + jnp.where(out_ok_dym, pltpu.roll(q_m1, w, axis=1), 0.0)
        out = out + jnp.where(out_ok_dyp, pltpu.roll(q_p1, L - w, axis=1), 0.0)
        return out + bias

    x = x_ref[...]                                   # identity, f32
    a1 = jnp.maximum(conv3x3(x, w1_ref, b1), 0.0)    # conv1 + ReLU
    o_ref[...] = x + conv3x3(a1, w2_ref, b2)         # conv2 + residual


def _pick_block_images(n, c, hw):
    """Images per grid step + explicit VMEM limit, generation-aware."""
    vmem_phys = 64 << 20                      # conservative default (v7x-sized)
    try:
        info = pltpu.get_tpu_info()
        vmem_phys = int(getattr(info, "vmem_capacity_bytes", vmem_phys))
    except Exception:
        pass
    two_cores = vmem_phys <= (64 << 20)       # v7x-like: 2 TCs, halved VMEM

    # Per-image footprint: f32 in/out blocks (double buffered) + live bf16
    # shifted sources + f32 partials / activation temporaries.
    per_image = c * hw * 50
    budget = (16 << 20) if two_cores else (40 << 20)
    cap = max(1, min(n, budget // max(per_image, 1)))

    divisors = [d for d in range(1, n + 1)
                if n % d == 0 and d <= cap and ((d * hw) % 128 == 0 or d == n)]
    if not divisors:
        divisors = [n]
    nb = max(divisors)
    if two_cores:
        even = [d for d in divisors if (n // d) % 2 == 0]
        if even:                              # balanced megacore split
            nb = max(even)

    vmem_limit = min(vmem_phys * 3 // 4,
                     max(budget, nb * per_image) + (8 << 20))
    return nb, int(vmem_limit)


def residual_block_nobn(x_nchw, w1_oihw, b1, w2_oihw, b2):
    """x_nchw: (N, C, H, W) float32. Returns (N, C, H, W) float32."""
    n, c, h, w = x_nchw.shape
    hw = h * w

    # Lane-dense slab (C, N*H*W): wrapper-side layout plumbing so every kernel
    # load/store and every matmul RHS/output is lane-dense with C on sublanes.
    x_slab = jnp.transpose(x_nchw, (1, 0, 2, 3)).reshape(c, n * hw)

    # OIHW -> (9, C_out, C_in): one (C, C) LHS per 3x3 tap, bf16 MXU operands.
    w1_taps = jnp.transpose(w1_oihw, (2, 3, 0, 1)).reshape(9, c, c).astype(jnp.bfloat16)
    w2_taps = jnp.transpose(w2_oihw, (2, 3, 0, 1)).reshape(9, c, c).astype(jnp.bfloat16)
    b1_c = b1.reshape(c, 1).astype(jnp.float32)
    b2_c = b2.reshape(c, 1).astype(jnp.float32)

    nb, vmem_limit = _pick_block_images(n, c, hw)
    grid = (n // nb,)
    lblk = nb * hw

    kernel = functools.partial(_resblock_kernel, height=h, width=w)

    out_slab = pl.pallas_call(
        kernel,
        out_shape=jax.ShapeDtypeStruct((c, n * hw), jnp.float32),
        grid_spec=pltpu.PrefetchScalarGridSpec(
            num_scalar_prefetch=0,
            grid=grid,
            in_specs=[
                pl.BlockSpec((c, lblk), lambda b: (0, b)),
                pl.BlockSpec((9, c, c), lambda b: (0, 0, 0)),
                pl.BlockSpec((c, 1), lambda b: (0, 0)),
                pl.BlockSpec((9, c, c), lambda b: (0, 0, 0)),
                pl.BlockSpec((c, 1), lambda b: (0, 0)),
            ],
            out_specs=pl.BlockSpec((c, lblk), lambda b: (0, b)),
        ),
        compiler_params=pltpu.CompilerParams(
            dimension_semantics=("parallel",),
            vmem_limit_bytes=vmem_limit),
    )(x_slab, w1_taps, b1_c, w2_taps, b2_c)

    return jnp.transpose(out_slab.reshape(c, n, h, w), (1, 0, 2, 3))


def _reference_f32(x, w1, b1, w2, b2):
    conv = functools.partial(
        jax.lax.conv_general_dilated,
        window_strides=(1, 1), padding=((1, 1), (1, 1)),
        dimension_numbers=("NCHW", "OIHW", "NCHW"))
    y = jnp.maximum(conv(x, w1) + b1[None, :, None, None], 0.0)
    z = conv(y, w2) + b2[None, :, None, None]
    return x + z


def _reference_bf16(x, w1, b1, w2, b2):
    # Matched-precision reference: bf16 matmul operands, f32 accumulation,
    # f32 bias / ReLU / residual -- mirrors what the kernel computes.
    conv = functools.partial(
        jax.lax.conv_general_dilated,
        window_strides=(1, 1), padding=((1, 1), (1, 1)),
        dimension_numbers=("NCHW", "OIHW", "NCHW"),
        preferred_element_type=jnp.float32)
    y = jnp.maximum(conv(x.astype(jnp.bfloat16), w1.astype(jnp.bfloat16))
                    + b1[None, :, None, None], 0.0)
    z = (conv(y.astype(jnp.bfloat16), w2.astype(jnp.bfloat16))
         + b2[None, :, None, None])
    return x + z


if __name__ == "__main__":
    # Module-consistent small shapes: nf=64 channels, NCHW input.
    N, nf, H, W = 2, 64, 16, 16

    key = jax.random.PRNGKey(0)
    kx, k1, k2, kb1, kb2 = jax.random.split(key, 5)

    x = jax.random.normal(kx, (N, nf, H, W), dtype=jnp.float32)
    # Deterministic init mimicking common.initialize_weights(scale=0.1).
    w1 = jax.random.normal(k1, (nf, nf, 3, 3), dtype=jnp.float32) * 0.1
    w2 = jax.random.normal(k2, (nf, nf, 3, 3), dtype=jnp.float32) * 0.1
    b1 = jax.random.normal(kb1, (nf,), dtype=jnp.float32) * 0.01
    b2 = jax.random.normal(kb2, (nf,), dtype=jnp.float32) * 0.01

    fn = jax.jit(residual_block_nobn)
    out = jax.block_until_ready(fn(x, w1, b1, w2, b2))
    assert out.shape == (N, nf, H, W)

    # Check vs a matched-precision (bf16 operands, f32 accumulate) reference.
    ref_bf16 = _reference_bf16(x, w1, b1, w2, b2)
    assert jnp.allclose(out, ref_bf16, atol=2e-2, rtol=2e-2), \
        "mismatch vs matched-precision conv reference"

    # Sanity check vs the full-f32 reference (bf16 MXU operands => small error).
    ref_f32 = _reference_f32(x, w1, b1, w2, b2)
    rel = jnp.linalg.norm(out - ref_f32) / jnp.linalg.norm(ref_f32)
    assert float(rel) < 2e-2, f"relative error vs f32 reference too large: {rel}"

    print("KERNEL_OK")
</pallas_src>

<mosaic_0001>
module attributes {stable_mosaic.version = 11 : i64} {
  func.func @_resblock_kernel(%arg0: i32, %arg1: memref<64x256xf32, #tpu.memory_space<vmem>>, %arg2: memref<9x64x64xbf16, #tpu.memory_space<vmem>>, %arg3: memref<64x1xf32, #tpu.memory_space<vmem>>, %arg4: memref<9x64x64xbf16, #tpu.memory_space<vmem>>, %arg5: memref<64x1xf32, #tpu.memory_space<vmem>>, %arg6: memref<64x256xf32, #tpu.memory_space<vmem>>) attributes {dimension_semantics = [#tpu.dimension_semantics<parallel>], iteration_bounds = array<i64: 2>, scalar_prefetch = 0 : i64, scratch_operands = 0 : i64, tpu.core_type = #tpu.core_type<tc>, window_params = [{transform_indices = @transform_0, window_bounds = array<i64: 64, 256>}, {pipeline_mode = #tpu.pipeline_mode<synchronous>, transform_indices = @transform_1, window_bounds = array<i64: 9, 64, 64>}, {pipeline_mode = #tpu.pipeline_mode<synchronous>, transform_indices = @transform_2, window_bounds = array<i64: 64, 1>}, {pipeline_mode = #tpu.pipeline_mode<synchronous>, transform_indices = @transform_3, window_bounds = array<i64: 9, 64, 64>}, {pipeline_mode = #tpu.pipeline_mode<synchronous>, transform_indices = @transform_4, window_bounds = array<i64: 64, 1>}, {transform_indices = @transform_5, window_bounds = array<i64: 64, 256>}]} {
    %0 = tpu.iota {dimensions = array<i32: 1>} : vector<1x256xi32>
    %c16_i32 = arith.constant 16 : i32
    %c0_i32 = arith.constant 0 : i32
    %1 = arith.cmpi eq, %c16_i32, %c0_i32 : i32
    %c1_i32 = arith.constant 1 : i32
    %2 = arith.select %1, %c1_i32, %c16_i32 : i32
    %3 = vector.broadcast %2 : i32 to vector<1x256xi32>
    %4 = arith.remsi %0, %3 : vector<1x256xi32>
    %c0_i32_0 = arith.constant 0 : i32
    %5 = vector.broadcast %c0_i32_0 : i32 to vector<1x256xi32>
    %6 = arith.cmpi ne, %4, %5 : vector<1x256xi32>
    %c0_i32_1 = arith.constant 0 : i32
    %7 = vector.broadcast %c0_i32_1 : i32 to vector<1x256xi32>
    %8 = arith.cmpi slt, %4, %7 : vector<1x256xi32>
    %c0_i32_2 = arith.constant 0 : i32
    %9 = arith.cmpi slt, %2, %c0_i32_2 : i32
    %10 = vector.broadcast %9 : i1 to vector<1x256xi1>
    %11 = vector.broadcast %10 : vector<1x256xi1> to vector<1x256xi1>
    %12 = arith.xori %8, %11 : vector<1x256xi1>
    %13 = arith.andi %12, %6 : vector<1x256xi1>
    %14 = vector.broadcast %2 : i32 to vector<1x256xi32>
    %15 = arith.addi %4, %14 : vector<1x256xi32>
    %16 = arith.select %13, %15, %4 : vector<1x256xi1>, vector<1x256xi32>
    %c256_i32 = arith.constant 256 : i32
    %c0_i32_3 = arith.constant 0 : i32
    %17 = arith.cmpi eq, %c256_i32, %c0_i32_3 : i32
    %c1_i32_4 = arith.constant 1 : i32
    %18 = arith.select %17, %c1_i32_4, %c256_i32 : i32
    %19 = vector.broadcast %18 : i32 to vector<1x256xi32>
    %20 = arith.remsi %0, %19 : vector<1x256xi32>
    %c0_i32_5 = arith.constant 0 : i32
    %21 = vector.broadcast %c0_i32_5 : i32 to vector<1x256xi32>
    %22 = arith.cmpi ne, %20, %21 : vector<1x256xi32>
    %c0_i32_6 = arith.constant 0 : i32
    %23 = vector.broadcast %c0_i32_6 : i32 to vector<1x256xi32>
    %24 = arith.cmpi slt, %20, %23 : vector<1x256xi32>
    %c0_i32_7 = arith.constant 0 : i32
    %25 = arith.cmpi slt, %18, %c0_i32_7 : i32
    %26 = vector.broadcast %25 : i1 to vector<1x256xi1>
    %27 = vector.broadcast %26 : vector<1x256xi1> to vector<1x256xi1>
    %28 = arith.xori %24, %27 : vector<1x256xi1>
    %29 = arith.andi %28, %22 : vector<1x256xi1>
    %30 = vector.broadcast %18 : i32 to vector<1x256xi32>
    %31 = arith.addi %20, %30 : vector<1x256xi32>
    %32 = arith.select %29, %31, %20 : vector<1x256xi1>, vector<1x256xi32>
    %c0_i32_8 = arith.constant 0 : i32
    %33 = vector.broadcast %c0_i32_8 : i32 to vector<1x256xi32>
    %34 = arith.cmpi ne, %16, %33 : vector<1x256xi32>
    %c15_i32 = arith.constant 15 : i32
    %35 = vector.broadcast %c15_i32 : i32 to vector<1x256xi32>
    %36 = arith.cmpi ne, %16, %35 : vector<1x256xi32>
    %c16_i32_9 = arith.constant 16 : i32
    %37 = vector.broadcast %c16_i32_9 : i32 to vector<1x256xi32>
    %38 = arith.cmpi sge, %32, %37 : vector<1x256xi32>
    %c240_i32 = arith.constant 240 : i32
    %39 = vector.broadcast %c240_i32 : i32 to vector<1x256xi32>
    %40 = arith.cmpi slt, %32, %39 : vector<1x256xi32>
    %c0 = arith.constant 0 : index
    %c0_10 = arith.constant 0 : index
    %41 = vector.load %arg3[%c0, %c0_10] : memref<64x1xf32, #tpu.memory_space<vmem>>, vector<64x1xf32>
    %c0_11 = arith.constant 0 : index
    %c0_12 = arith.constant 0 : index
    %42 = vector.load %arg5[%c0_11, %c0_12] : memref<64x1xf32, #tpu.memory_space<vmem>>, vector<64x1xf32>
    %c0_13 = arith.constant 0 : index
    %c0_14 = arith.constant 0 : index
    %43 = vector.load %arg1[%c0_13, %c0_14] : memref<64x256xf32, #tpu.memory_space<vmem>>, vector<64x256xf32>
    %cst = arith.constant 0.000000e+00 : f32
    %44 = vector.shape_cast %34 : vector<1x256xi1> to vector<1x256xi1>
    %45 = vector.broadcast %44 : vector<1x256xi1> to vector<64x256xi1>
    %46 = vector.broadcast %cst : f32 to vector<64x256xf32>
    %47 = arith.select %45, %43, %46 : vector<64x256xi1>, vector<64x256xf32>
    %c255_i32 = arith.constant 255 : i32
    %48 = tpu.dynamic_rotate %47 by %c255_i32 dim 1 : vector<64x256xf32>, i32 -> vector<64x256xf32>
    %cst_15 = arith.constant 0.000000e+00 : f32
    %49 = vector.shape_cast %36 : vector<1x256xi1> to vector<1x256xi1>
    %50 = vector.broadcast %49 : vector<1x256xi1> to vector<64x256xi1>
    %51 = vector.broadcast %cst_15 : f32 to vector<64x256xf32>
    %52 = arith.select %50, %43, %51 : vector<64x256xi1>, vector<64x256xf32>
    %c1_i32_16 = arith.constant 1 : i32
    %53 = tpu.dynamic_rotate %52 by %c1_i32_16 dim 1 : vector<64x256xf32>, i32 -> vector<64x256xf32>
    %54 = arith.truncf %53 : vector<64x256xf32> to vector<64x256xbf16>
    %55 = arith.truncf %43 : vector<64x256xf32> to vector<64x256xbf16>
    %56 = arith.truncf %48 : vector<64x256xf32> to vector<64x256xbf16>
    %c0_17 = arith.constant 0 : index
    %c0_18 = arith.constant 0 : index
    %c0_19 = arith.constant 0 : index
    %57 = vector.load %arg2[%c0_17, %c0_18, %c0_19] : memref<9x64x64xbf16, #tpu.memory_space<vmem>>, vector<1x64x64xbf16>
    %58 = vector.shape_cast %57 : vector<1x64x64xbf16> to vector<64x64xbf16>
    %cst_20 = arith.constant dense<0.000000e+00> : vector<64x256xf32>
    %59 = tpu.matmul %58, %54, %cst_20 {dimension_numbers = #tpu.dot_dimension_numbers<[1], [0], [0], [1], [0, 0, 1, 1], [], []>} : vector<64x64xbf16>, vector<64x256xbf16>, vector<64x256xf32> -> vector<64x256xf32>
    %c1 = arith.constant 1 : index
    %c0_21 = arith.constant 0 : index
    %c0_22 = arith.constant 0 : index
    %60 = vector.load %arg2[%c1, %c0_21, %c0_22] : memref<9x64x64xbf16, #tpu.memory_space<vmem>>, vector<1x64x64xbf16>
    %61 = vector.shape_cast %60 : vector<1x64x64xbf16> to vector<64x64xbf16>
    %cst_23 = arith.constant dense<0.000000e+00> : vector<64x256xf32>
    %62 = tpu.matmul %61, %55, %cst_23 {dimension_numbers = #tpu.dot_dimension_numbers<[1], [0], [0], [1], [0, 0, 1, 1], [], []>} : vector<64x64xbf16>, vector<64x256xbf16>, vector<64x256xf32> -> vector<64x256xf32>
    %63 = arith.addf %59, %62 : vector<64x256xf32>
    %c2 = arith.constant 2 : index
    %c0_24 = arith.constant 0 : index
    %c0_25 = arith.constant 0 : index
    %64 = vector.load %arg2[%c2, %c0_24, %c0_25] : memref<9x64x64xbf16, #tpu.memory_space<vmem>>, vector<1x64x64xbf16>
    %65 = vector.shape_cast %64 : vector<1x64x64xbf16> to vector<64x64xbf16>
    %cst_26 = arith.constant dense<0.000000e+00> : vector<64x256xf32>
    %66 = tpu.matmul %65, %56, %cst_26 {dimension_numbers = #tpu.dot_dimension_numbers<[1], [0], [0], [1], [0, 0, 1, 1], [], []>} : vector<64x64xbf16>, vector<64x256xbf16>, vector<64x256xf32> -> vector<64x256xf32>
    %67 = arith.addf %63, %66 : vector<64x256xf32>
    %c3 = arith.constant 3 : index
    %c0_27 = arith.constant 0 : index
    %c0_28 = arith.constant 0 : index
    %68 = vector.load %arg2[%c3, %c0_27, %c0_28] : memref<9x64x64xbf16, #tpu.memory_space<vmem>>, vector<1x64x64xbf16>
    %69 = vector.shape_cast %68 : vector<1x64x64xbf16> to vector<64x64xbf16>
    %cst_29 = arith.constant dense<0.000000e+00> : vector<64x256xf32>
    %70 = tpu.matmul %69, %54, %cst_29 {dimension_numbers = #tpu.dot_dimension_numbers<[1], [0], [0], [1], [0, 0, 1, 1], [], []>} : vector<64x64xbf16>, vector<64x256xbf16>, vector<64x256xf32> -> vector<64x256xf32>
    %c4 = arith.constant 4 : index
    %c0_30 = arith.constant 0 : index
    %c0_31 = arith.constant 0 : index
    %71 = vector.load %arg2[%c4, %c0_30, %c0_31] : memref<9x64x64xbf16, #tpu.memory_space<vmem>>, vector<1x64x64xbf16>
    %72 = vector.shape_cast %71 : vector<1x64x64xbf16> to vector<64x64xbf16>
    %cst_32 = arith.constant dense<0.000000e+00> : vector<64x256xf32>
    %73 = tpu.matmul %72, %55, %cst_32 {dimension_numbers = #tpu.dot_dimension_numbers<[1], [0], [0], [1], [0, 0, 1, 1], [], []>} : vector<64x64xbf16>, vector<64x256xbf16>, vector<64x256xf32> -> vector<64x256xf32>
    %74 = arith.addf %70, %73 : vector<64x256xf32>
    %c5 = arith.constant 5 : index
    %c0_33 = arith.constant 0 : index
    %c0_34 = arith.constant 0 : index
    %75 = vector.load %arg2[%c5, %c0_33, %c0_34] : memref<9x64x64xbf16, #tpu.memory_space<vmem>>, vector<1x64x64xbf16>
    %76 = vector.shape_cast %75 : vector<1x64x64xbf16> to vector<64x64xbf16>
    %cst_35 = arith.constant dense<0.000000e+00> : vector<64x256xf32>
    %77 = tpu.matmul %76, %56, %cst_35 {dimension_numbers = #tpu.dot_dimension_numbers<[1], [0], [0], [1], [0, 0, 1, 1], [], []>} : vector<64x64xbf16>, vector<64x256xbf16>, vector<64x256xf32> -> vector<64x256xf32>
    %78 = arith.addf %74, %77 : vector<64x256xf32>
    %c6 = arith.constant 6 : index
    %c0_36 = arith.constant 0 : index
    %c0_37 = arith.constant 0 : index
    %79 = vector.load %arg2[%c6, %c0_36, %c0_37] : memref<9x64x64xbf16, #tpu.memory_space<vmem>>, vector<1x64x64xbf16>
    %80 = vector.shape_cast %79 : vector<1x64x64xbf16> to vector<64x64xbf16>
    %cst_38 = arith.constant dense<0.000000e+00> : vector<64x256xf32>
    %81 = tpu.matmul %80, %54, %cst_38 {dimension_numbers = #tpu.dot_dimension_numbers<[1], [0], [0], [1], [0, 0, 1, 1], [], []>} : vector<64x64xbf16>, vector<64x256xbf16>, vector<64x256xf32> -> vector<64x256xf32>
    %c7 = arith.constant 7 : index
    %c0_39 = arith.constant 0 : index
    %c0_40 = arith.constant 0 : index
    %82 = vector.load %arg2[%c7, %c0_39, %c0_40] : memref<9x64x64xbf16, #tpu.memory_space<vmem>>, vector<1x64x64xbf16>
    %83 = vector.shape_cast %82 : vector<1x64x64xbf16> to vector<64x64xbf16>
    %cst_41 = arith.constant dense<0.000000e+00> : vector<64x256xf32>
    %84 = tpu.matmul %83, %55, %cst_41 {dimension_numbers = #tpu.dot_dimension_numbers<[1], [0], [0], [1], [0, 0, 1, 1], [], []>} : vector<64x64xbf16>, vector<64x256xbf16>, vector<64x256xf32> -> vector<64x256xf32>
    %85 = arith.addf %81, %84 : vector<64x256xf32>
    %c8 = arith.constant 8 : index
    %c0_42 = arith.constant 0 : index
    %c0_43 = arith.constant 0 : index
    %86 = vector.load %arg2[%c8, %c0_42, %c0_43] : memref<9x64x64xbf16, #tpu.memory_space<vmem>>, vector<1x64x64xbf16>
    %87 = vector.shape_cast %86 : vector<1x64x64xbf16> to vector<64x64xbf16>
    %cst_44 = arith.constant dense<0.000000e+00> : vector<64x256xf32>
    %88 = tpu.matmul %87, %56, %cst_44 {dimension_numbers = #tpu.dot_dimension_numbers<[1], [0], [0], [1], [0, 0, 1, 1], [], []>} : vector<64x64xbf16>, vector<64x256xbf16>, vector<64x256xf32> -> vector<64x256xf32>
    %89 = arith.addf %85, %88 : vector<64x256xf32>
    %c16_i32_45 = arith.constant 16 : i32
    %90 = tpu.dynamic_rotate %67 by %c16_i32_45 dim 1 : vector<64x256xf32>, i32 -> vector<64x256xf32>
    %cst_46 = arith.constant 0.000000e+00 : f32
    %91 = vector.shape_cast %38 : vector<1x256xi1> to vector<1x256xi1>
    %92 = vector.broadcast %91 : vector<1x256xi1> to vector<64x256xi1>
    %93 = vector.broadcast %cst_46 : f32 to vector<64x256xf32>
    %94 = arith.select %92, %90, %93 : vector<64x256xi1>, vector<64x256xf32>
    %95 = arith.addf %78, %94 : vector<64x256xf32>
    %c240_i32_47 = arith.constant 240 : i32
    %96 = tpu.dynamic_rotate %89 by %c240_i32_47 dim 1 : vector<64x256xf32>, i32 -> vector<64x256xf32>
    %cst_48 = arith.constant 0.000000e+00 : f32
    %97 = vector.shape_cast %40 : vector<1x256xi1> to vector<1x256xi1>
    %98 = vector.broadcast %97 : vector<1x256xi1> to vector<64x256xi1>
    %99 = vector.broadcast %cst_48 : f32 to vector<64x256xf32>
    %100 = arith.select %98, %96, %99 : vector<64x256xi1>, vector<64x256xf32>
    %101 = arith.addf %95, %100 : vector<64x256xf32>
    %102 = vector.broadcast %41 : vector<64x1xf32> to vector<64x256xf32>
    %103 = arith.addf %101, %102 : vector<64x256xf32>
    %cst_49 = arith.constant 0.000000e+00 : f32
    %104 = vector.broadcast %cst_49 : f32 to vector<64x256xf32>
    %105 = arith.maximumf %103, %104 : vector<64x256xf32>
    %cst_50 = arith.constant 0.000000e+00 : f32
    %106 = vector.shape_cast %34 : vector<1x256xi1> to vector<1x256xi1>
    %107 = vector.broadcast %106 : vector<1x256xi1> to vector<64x256xi1>
    %108 = vector.broadcast %cst_50 : f32 to vector<64x256xf32>
    %109 = arith.select %107, %105, %108 : vector<64x256xi1>, vector<64x256xf32>
    %c255_i32_51 = arith.constant 255 : i32
    %110 = tpu.dynamic_rotate %109 by %c255_i32_51 dim 1 : vector<64x256xf32>, i32 -> vector<64x256xf32>
    %cst_52 = arith.constant 0.000000e+00 : f32
    %111 = vector.shape_cast %36 : vector<1x256xi1> to vector<1x256xi1>
    %112 = vector.broadcast %111 : vector<1x256xi1> to vector<64x256xi1>
    %113 = vector.broadcast %cst_52 : f32 to vector<64x256xf32>
    %114 = arith.select %112, %105, %113 : vector<64x256xi1>, vector<64x256xf32>
    %c1_i32_53 = arith.constant 1 : i32
    %115 = tpu.dynamic_rotate %114 by %c1_i32_53 dim 1 : vector<64x256xf32>, i32 -> vector<64x256xf32>
    %116 = arith.truncf %115 : vector<64x256xf32> to vector<64x256xbf16>
    %117 = arith.truncf %105 : vector<64x256xf32> to vector<64x256xbf16>
    %118 = arith.truncf %110 : vector<64x256xf32> to vector<64x256xbf16>
    %c0_54 = arith.constant 0 : index
    %c0_55 = arith.constant 0 : index
    %c0_56 = arith.constant 0 : index
    %119 = vector.load %arg4[%c0_54, %c0_55, %c0_56] : memref<9x64x64xbf16, #tpu.memory_space<vmem>>, vector<1x64x64xbf16>
    %120 = vector.shape_cast %119 : vector<1x64x64xbf16> to vector<64x64xbf16>
    %cst_57 = arith.constant dense<0.000000e+00> : vector<64x256xf32>
    %121 = tpu.matmul %120, %116, %cst_57 {dimension_numbers = #tpu.dot_dimension_numbers<[1], [0], [0], [1], [0, 0, 1, 1], [], []>} : vector<64x64xbf16>, vector<64x256xbf16>, vector<64x256xf32> -> vector<64x256xf32>
    %c1_58 = arith.constant 1 : index
    %c0_59 = arith.constant 0 : index
    %c0_60 = arith.constant 0 : index
    %122 = vector.load %arg4[%c1_58, %c0_59, %c0_60] : memref<9x64x64xbf16, #tpu.memory_space<vmem>>, vector<1x64x64xbf16>
    %123 = vector.shape_cast %122 : vector<1x64x64xbf16> to vector<64x64xbf16>
    %cst_61 = arith.constant dense<0.000000e+00> : vector<64x256xf32>
    %124 = tpu.matmul %123, %117, %cst_61 {dimension_numbers = #tpu.dot_dimension_numbers<[1], [0], [0], [1], [0, 0, 1, 1], [], []>} : vector<64x64xbf16>, vector<64x256xbf16>, vector<64x256xf32> -> vector<64x256xf32>
    %125 = arith.addf %121, %124 : vector<64x256xf32>
    %c2_62 = arith.constant 2 : index
    %c0_63 = arith.constant 0 : index
    %c0_64 = arith.constant 0 : index
    %126 = vector.load %arg4[%c2_62, %c0_63, %c0_64] : memref<9x64x64xbf16, #tpu.memory_space<vmem>>, vector<1x64x64xbf16>
    %127 = vector.shape_cast %126 : vector<1x64x64xbf16> to vector<64x64xbf16>
    %cst_65 = arith.constant dense<0.000000e+00> : vector<64x256xf32>
    %128 = tpu.matmul %127, %118, %cst_65 {dimension_numbers = #tpu.dot_dimension_numbers<[1], [0], [0], [1], [0, 0, 1, 1], [], []>} : vector<64x64xbf16>, vector<64x256xbf16>, vector<64x256xf32> -> vector<64x256xf32>
    %129 = arith.addf %125, %128 : vector<64x256xf32>
    %c3_66 = arith.constant 3 : index
    %c0_67 = arith.constant 0 : index
    %c0_68 = arith.constant 0 : index
    %130 = vector.load %arg4[%c3_66, %c0_67, %c0_68] : memref<9x64x64xbf16, #tpu.memory_space<vmem>>, vector<1x64x64xbf16>
    %131 = vector.shape_cast %130 : vector<1x64x64xbf16> to vector<64x64xbf16>
    %cst_69 = arith.constant dense<0.000000e+00> : vector<64x256xf32>
    %132 = tpu.matmul %131, %116, %cst_69 {dimension_numbers = #tpu.dot_dimension_numbers<[1], [0], [0], [1], [0, 0, 1, 1], [], []>} : vector<64x64xbf16>, vector<64x256xbf16>, vector<64x256xf32> -> vector<64x256xf32>
    %c4_70 = arith.constant 4 : index
    %c0_71 = arith.constant 0 : index
    %c0_72 = arith.constant 0 : index
    %133 = vector.load %arg4[%c4_70, %c0_71, %c0_72] : memref<9x64x64xbf16, #tpu.memory_space<vmem>>, vector<1x64x64xbf16>
    %134 = vector.shape_cast %133 : vector<1x64x64xbf16> to vector<64x64xbf16>
    %cst_73 = arith.constant dense<0.000000e+00> : vector<64x256xf32>
    %135 = tpu.matmul %134, %117, %cst_73 {dimension_numbers = #tpu.dot_dimension_numbers<[1], [0], [0], [1], [0, 0, 1, 1], [], []>} : vector<64x64xbf16>, vector<64x256xbf16>, vector<64x256xf32> -> vector<64x256xf32>
    %136 = arith.addf %132, %135 : vector<64x256xf32>
    %c5_74 = arith.constant 5 : index
    %c0_75 = arith.constant 0 : index
    %c0_76 = arith.constant 0 : index
    %137 = vector.load %arg4[%c5_74, %c0_75, %c0_76] : memref<9x64x64xbf16, #tpu.memory_space<vmem>>, vector<1x64x64xbf16>
    %138 = vector.shape_cast %137 : vector<1x64x64xbf16> to vector<64x64xbf16>
    %cst_77 = arith.constant dense<0.000000e+00> : vector<64x256xf32>
    %139 = tpu.matmul %138, %118, %cst_77 {dimension_numbers = #tpu.dot_dimension_numbers<[1], [0], [0], [1], [0, 0, 1, 1], [], []>} : vector<64x64xbf16>, vector<64x256xbf16>, vector<64x256xf32> -> vector<64x256xf32>
    %140 = arith.addf %136, %139 : vector<64x256xf32>
    %c6_78 = arith.constant 6 : index
    %c0_79 = arith.constant 0 : index
    %c0_80 = arith.constant 0 : index
    %141 = vector.load %arg4[%c6_78, %c0_79, %c0_80] : memref<9x64x64xbf16, #tpu.memory_space<vmem>>, vector<1x64x64xbf16>
    %142 = vector.shape_cast %141 : vector<1x64x64xbf16> to vector<64x64xbf16>
    %cst_81 = arith.constant dense<0.000000e+00> : vector<64x256xf32>
    %143 = tpu.matmul %142, %116, %cst_81 {dimension_numbers = #tpu.dot_dimension_numbers<[1], [0], [0], [1], [0, 0, 1, 1], [], []>} : vector<64x64xbf16>, vector<64x256xbf16>, vector<64x256xf32> -> vector<64x256xf32>
    %c7_82 = arith.constant 7 : index
    %c0_83 = arith.constant 0 : index
    %c0_84 = arith.constant 0 : index
    %144 = vector.load %arg4[%c7_82, %c0_83, %c0_84] : memref<9x64x64xbf16, #tpu.memory_space<vmem>>, vector<1x64x64xbf16>
    %145 = vector.shape_cast %144 : vector<1x64x64xbf16> to vector<64x64xbf16>
    %cst_85 = arith.constant dense<0.000000e+00> : vector<64x256xf32>
    %146 = tpu.matmul %145, %117, %cst_85 {dimension_numbers = #tpu.dot_dimension_numbers<[1], [0], [0], [1], [0, 0, 1, 1], [], []>} : vector<64x64xbf16>, vector<64x256xbf16>, vector<64x256xf32> -> vector<64x256xf32>
    %147 = arith.addf %143, %146 : vector<64x256xf32>
    %c8_86 = arith.constant 8 : index
    %c0_87 = arith.constant 0 : index
    %c0_88 = arith.constant 0 : index
    %148 = vector.load %arg4[%c8_86, %c0_87, %c0_88] : memref<9x64x64xbf16, #tpu.memory_space<vmem>>, vector<1x64x64xbf16>
    %149 = vector.shape_cast %148 : vector<1x64x64xbf16> to vector<64x64xbf16>
    %cst_89 = arith.constant dense<0.000000e+00> : vector<64x256xf32>
    %150 = tpu.matmul %149, %118, %cst_89 {dimension_numbers = #tpu.dot_dimension_numbers<[1], [0], [0], [1], [0, 0, 1, 1], [], []>} : vector<64x64xbf16>, vector<64x256xbf16>, vector<64x256xf32> -> vector<64x256xf32>
    %151 = arith.addf %147, %150 : vector<64x256xf32>
    %c16_i32_90 = arith.constant 16 : i32
    %152 = tpu.dynamic_rotate %129 by %c16_i32_90 dim 1 : vector<64x256xf32>, i32 -> vector<64x256xf32>
    %cst_91 = arith.constant 0.000000e+00 : f32
    %153 = vector.shape_cast %38 : vector<1x256xi1> to vector<1x256xi1>
    %154 = vector.broadcast %153 : vector<1x256xi1> to vector<64x256xi1>
    %155 = vector.broadcast %cst_91 : f32 to vector<64x256xf32>
    %156 = arith.select %154, %152, %155 : vector<64x256xi1>, vector<64x256xf32>
    %157 = arith.addf %140, %156 : vector<64x256xf32>
    %c240_i32_92 = arith.constant 240 : i32
    %158 = tpu.dynamic_rotate %151 by %c240_i32_92 dim 1 : vector<64x256xf32>, i32 -> vector<64x256xf32>
    %cst_93 = arith.constant 0.000000e+00 : f32
    %159 = vector.shape_cast %40 : vector<1x256xi1> to vector<1x256xi1>
    %160 = vector.broadcast %159 : vector<1x256xi1> to vector<64x256xi1>
    %161 = vector.broadcast %cst_93 : f32 to vector<64x256xf32>
    %162 = arith.select %160, %158, %161 : vector<64x256xi1>, vector<64x256xf32>
    %163 = arith.addf %157, %162 : vector<64x256xf32>
    %164 = vector.broadcast %42 : vector<64x1xf32> to vector<64x256xf32>
    %165 = arith.addf %163, %164 : vector<64x256xf32>
    %166 = arith.addf %43, %165 : vector<64x256xf32>
    %c0_94 = arith.constant 0 : index
    %c0_95 = arith.constant 0 : index
    %167 = vector.load %arg6[%c0_94, %c0_95] : memref<64x256xf32, #tpu.memory_space<vmem>>, vector<64x256xf32>
    tpu.vector_store %arg6[%c0_94, %c0_95], %166 {strides = array<i32>} : memref<64x256xf32, #tpu.memory_space<vmem>>, vector<64x256xf32>,
    return
  }
  func.func @transform_0(%arg0: i32) -> (i32, i32) {
    %c0_i32 = arith.constant 0 : i32
    %c0_i32_0 = arith.constant 0 : i32
    return %c0_i32, %arg0 : i32, i32
  }
  func.func @transform_1(%arg0: i32) -> (i32, i32, i32) {
    %c0_i32 = arith.constant 0 : i32
    %c0_i32_0 = arith.constant 0 : i32
    %c0_i32_1 = arith.constant 0 : i32
    %c0_i32_2 = arith.constant 0 : i32
    return %c0_i32, %c0_i32_0, %c0_i32_1 : i32, i32, i32
  }
  func.func @transform_2(%arg0: i32) -> (i32, i32) {
    %c0_i32 = arith.constant 0 : i32
    %c0_i32_0 = arith.constant 0 : i32
    %c0_i32_1 = arith.constant 0 : i32
    return %c0_i32, %c0_i32_0 : i32, i32
  }
  func.func @transform_3(%arg0: i32) -> (i32, i32, i32) {
    %c0_i32 = arith.constant 0 : i32
    %c0_i32_0 = arith.constant 0 : i32
    %c0_i32_1 = arith.constant 0 : i32
    %c0_i32_2 = arith.constant 0 : i32
    return %c0_i32, %c0_i32_0, %c0_i32_1 : i32, i32, i32
  }
  func.func @transform_4(%arg0: i32) -> (i32, i32) {
    %c0_i32 = arith.constant 0 : i32
    %c0_i32_0 = arith.constant 0 : i32
    %c0_i32_1 = arith.constant 0 : i32
    return %c0_i32, %c0_i32_0 : i32, i32
  }
  func.func @transform_5(%arg0: i32) -> (i32, i32) {
    %c0_i32 = arith.constant 0 : i32
    %c0_i32_0 = arith.constant 0 : i32
    return %c0_i32, %arg0 : i32, i32
  }
}

</mosaic_0001>

<llo_original>
// kernel: residual_block_nobn.1
$region0: #{residual_block_nobn.1}
  #allocation0 [shape = 'u32[]', space=smem, size = 0x4, offset = 0x4, fixed_abs, tag = 'smem constant byte address 0x4 - core index']
  #allocation1 [shape = 'u32[72,128]{1,0:T(1,128)}', space=vmem, size = 0x9000, scoped, tag = 'internal scratch']
  %s0 = inlined_call_operand.vmem [shape: f32[64,512], index: 0, kind: input, shape index: {}]
  %s1 = inlined_call_operand.vmem [shape: bf16[9,64,64], index: 1, kind: input, shape index: {}]
  %s2 = inlined_call_operand.vmem [shape: f32[64,1], index: 2, kind: input, shape index: {}]
  %s3 = inlined_call_operand.vmem [shape: bf16[9,64,64], index: 3, kind: input, shape index: {}]
  %s4 = inlined_call_operand.vmem [shape: f32[64,1], index: 4, kind: input, shape index: {}]
  %s5 = inlined_call_operand.vmem [shape: f32[64,512], index: 5, kind: output, shape index: {}]
  %s6 = sld [smem:[#allocation0]]
  $region95: #{residual_block_nobn.1} parent=0
    _
  %s8 = ssub.s32 1, %s6
  %s9 = scalar_select 0, %s8, %s6
  $region1: #{residual_block_nobn.1} parent=0
    #allocation2 [shape = 'u8[131072]{0}', space=vmem, size = 0x20000, scoped, tag = 'input window, operand 0']
    #allocation3 [shape = 'u8[131072]{0}', space=vmem, size = 0x20000, scoped, tag = 'output window, operand 0']
    loop: start=0, step=1, limit=4
    $region2: #{residual_block_nobn.1} parent=1 // loop_pre_header
      _
    $region3: #{residual_block_nobn.1} parent=1 // loop_header
      %s11 = sphi 0, %s15
      %p12 = scmp.ge.s32.totalorder %s11, 4
      %s21 = sphi 0, %s23
      %s24 = sphi 0, %s21
      %s25 = sphi 0, %s24
      %s41 = sphi 0, %s25
      %s45 = sphi 0, %s45
      %s47 = sphi 0, %s45
      %s48 = sphi 0, %s47
      %s62 = sphi 0, %s48
      %s66 = sphi 0, %s66
      %s68 = sphi 0, %s66
      %s69 = sphi 0, %s68
      %s83 = sphi 0, %s69
      %s87 = sphi 0, %s87
      %s89 = sphi 0, %s87
      %s90 = sphi 0, %s89
      %s104 = sphi 0, %s90
      %s108 = sphi 0, %s108
      %s110 = sphi 0, %s108
      %s111 = sphi 0, %s110
      %s125 = sphi 0, %s111
      %s131 = sphi 0, %s133
      %s134 = sphi 0, %s131
      %s135 = sphi 0, %s134
      %s151 = sphi 0, %s135
    $region4: #{residual_block_nobn.1} parent=1 // loop_header_branch
      %14 = sbr.rel (%p12) target = $region8
    $region5: #{residual_block_nobn.1} parent=1 // loop_body
      %s16 = ssub.s32 %s11, 1
      %s17 = ssub.s32 %s11, 2
      %s18 = sadd.s32 %s11, 1
      %s19 = ssub.s32 %s11, %s18
      %p20 = scmp.eq.s32.totalorder %s19, 0
      %s22 = sadd.s32 %s21, 1
      %s23 = scalar_select %p20, %s21, %s22
      %p26 = pneg %p20
      %p27 = scmp.eq.s32.totalorder %s11, 1
      %p28 = por %p26, %p27
      %p29 = scmp.ne.s32.totalorder %s21, %s24
      %p30 = scmp.eq.s32.totalorder %s11, 0
      %p31 = por %p29, %p30
      %p32 = scmp.ne.s32.totalorder %s21, %s24
      %p33 = scmp.eq.s32.totalorder %s16, 1
      %p34 = por %p32, %p33
      %p35 = scmp.ne.s32.totalorder %s24, %s25
      %p36 = scmp.eq.s32.totalorder %s16, 0
      %p37 = por %p35, %p36
      %p38 = scmp.ne.s32.totalorder %s24, %s25
      %p39 = scmp.eq.s32.totalorder %s17, 1
      %p40 = por %p38, %p39
      %p42 = scmp.ne.s32.totalorder %s25, %s41
      %p43 = scmp.eq.s32.totalorder %s17, 0
      %p44 = por %p42, %p43
      %s46 = sadd.s32 %s45, 1
      %p49 = scmp.eq.s32.totalorder %s11, 1
      %p50 = scmp.ne.s32.totalorder %s45, %s47
      %p51 = scmp.eq.s32.totalorder %s11, 0
      %p52 = por %p50, %p51
      %p53 = scmp.ne.s32.totalorder %s45, %s47
      %p54 = scmp.eq.s32.totalorder %s16, 1
      %p55 = por %p53, %p54
      %p56 = scmp.ne.s32.totalorder %s47, %s48
      %p57 = scmp.eq.s32.totalorder %s16, 0
      %p58 = por %p56, %p57
      %p59 = scmp.ne.s32.totalorder %s47, %s48
      %p60 = scmp.eq.s32.totalorder %s17, 1
      %p61 = por %p59, %p60
      %p63 = scmp.ne.s32.totalorder %s48, %s62
      %p64 = scmp.eq.s32.totalorder %s17, 0
      %p65 = por %p63, %p64
      %s67 = sadd.s32 %s66, 1
      %p70 = scmp.eq.s32.totalorder %s11, 1
      %p71 = scmp.ne.s32.totalorder %s66, %s68
      %p72 = scmp.eq.s32.totalorder %s11, 0
      %p73 = por %p71, %p72
      %p74 = scmp.ne.s32.totalorder %s66, %s68
      %p75 = scmp.eq.s32.totalorder %s16, 1
      %p76 = por %p74, %p75
      %p77 = scmp.ne.s32.totalorder %s68, %s69
      %p78 = scmp.eq.s32.totalorder %s16, 0
      %p79 = por %p77, %p78
      %p80 = scmp.ne.s32.totalorder %s68, %s69
      %p81 = scmp.eq.s32.totalorder %s17, 1
      %p82 = por %p80, %p81
      %p84 = scmp.ne.s32.totalorder %s69, %s83
      %p85 = scmp.eq.s32.totalorder %s17, 0
      %p86 = por %p84, %p85
      %s88 = sadd.s32 %s87, 1
      %p91 = scmp.eq.s32.totalorder %s11, 1
      %p92 = scmp.ne.s32.totalorder %s87, %s89
      %p93 = scmp.eq.s32.totalorder %s11, 0
      %p94 = por %p92, %p93
      %p95 = scmp.ne.s32.totalorder %s87, %s89
      %p96 = scmp.eq.s32.totalorder %s16, 1
      %p97 = por %p95, %p96
      %p98 = scmp.ne.s32.totalorder %s89, %s90
      %p99 = scmp.eq.s32.totalorder %s16, 0
      %p100 = por %p98, %p99
      %p101 = scmp.ne.s32.totalorder %s89, %s90
      %p102 = scmp.eq.s32.totalorder %s17, 1
      %p103 = por %p101, %p102
      %p105 = scmp.ne.s32.totalorder %s90, %s104
      %p106 = scmp.eq.s32.totalorder %s17, 0
      %p107 = por %p105, %p106
      %s109 = sadd.s32 %s108, 1
      %p112 = scmp.eq.s32.totalorder %s11, 1
      %p113 = scmp.ne.s32.totalorder %s108, %s110
      %p114 = scmp.eq.s32.totalorder %s11, 0
      %p115 = por %p113, %p114
      %p116 = scmp.ne.s32.totalorder %s108, %s110
      %p117 = scmp.eq.s32.totalorder %s16, 1
      %p118 = por %p116, %p117
      %p119 = scmp.ne.s32.totalorder %s110, %s111
      %p120 = scmp.eq.s32.totalorder %s16, 0
      %p121 = por %p119, %p120
      %p122 = scmp.ne.s32.totalorder %s110, %s111
      %p123 = scmp.eq.s32.totalorder %s17, 1
      %p124 = por %p122, %p123
      %p126 = scmp.ne.s32.totalorder %s111, %s125
      %p127 = scmp.eq.s32.totalorder %s17, 0
      %p128 = por %p126, %p127
      %s129 = ssub.s32 %s11, %s18
      %p130 = scmp.eq.s32.totalorder %s129, 0
      %s132 = sadd.s32 %s131, 1
      %s133 = scalar_select %p130, %s131, %s132
      %p136 = pneg %p130
      %p137 = scmp.eq.s32.totalorder %s11, 1
      %p138 = por %p136, %p137
      %p139 = scmp.ne.s32.totalorder %s131, %s134
      %p140 = scmp.eq.s32.totalorder %s11, 0
      %p141 = por %p139, %p140
      %p142 = scmp.ne.s32.totalorder %s131, %s134
      %p143 = scmp.eq.s32.totalorder %s16, 1
      %p144 = por %p142, %p143
      %p145 = scmp.ne.s32.totalorder %s134, %s135
      %p146 = scmp.eq.s32.totalorder %s16, 0
      %p147 = por %p145, %p146
      %p148 = scmp.ne.s32.totalorder %s134, %s135
      %p149 = scmp.eq.s32.totalorder %s17, 1
      %p150 = por %p148, %p149
      %p152 = scmp.ne.s32.totalorder %s135, %s151
      %p153 = scmp.eq.s32.totalorder %s17, 0
      %p154 = por %p152, %p153
      %p155 = scmp.le.s32.totalorder 1, %s11
      %p156 = scmp.lt.s32.totalorder %s11, 3
      %p157 = pnand %p155, %p156
      %p158 = pneg %p157
      // Predicated region
      $region9: #{residual_block_nobn.1} parent=5 // pred_check
        _
      $region10: #{residual_block_nobn.1} parent=5 // pred_check_branch
        %160 = sbr.rel (%p157) target = $region12
      $region11: #{residual_block_nobn.1} parent=5 // pred_region
        %s161 = ssub.s32 %s11, 1
        // Predicated region
        $region13: #{residual_block_nobn.1} parent=11 // pred_check
          %p162 = pneg %p58
        $region14: #{residual_block_nobn.1} parent=11 // pred_check_branch
          %164 = sbr.rel (%p162) target = $region16
        $region15: #{residual_block_nobn.1} parent=11 // pred_region
          _
        $region16: #{residual_block_nobn.1} parent=11 // pred_fallthru
          _
        // Predicated region
        $region17: #{residual_block_nobn.1} parent=11 // pred_check
          %p165 = pneg %p79
        $region18: #{residual_block_nobn.1} parent=11 // pred_check_branch
          %167 = sbr.rel (%p165) target = $region20
        $region19: #{residual_block_nobn.1} parent=11 // pred_region
          _
        $region20: #{residual_block_nobn.1} parent=11 // pred_fallthru
          _
        // Predicated region
        $region21: #{residual_block_nobn.1} parent=11 // pred_check
          %p168 = pneg %p100
        $region22: #{residual_block_nobn.1} parent=11 // pred_check_branch
          %170 = sbr.rel (%p168) target = $region24
        $region23: #{residual_block_nobn.1} parent=11 // pred_region
          _
        $region24: #{residual_block_nobn.1} parent=11 // pred_fallthru
          _
        // Predicated region
        $region25: #{residual_block_nobn.1} parent=11 // pred_check
          %p171 = pneg %p121
        $region26: #{residual_block_nobn.1} parent=11 // pred_check_branch
          %173 = sbr.rel (%p171) target = $region28
        $region27: #{residual_block_nobn.1} parent=11 // pred_region
          _
        $region28: #{residual_block_nobn.1} parent=11 // pred_fallthru
          _
      $region12: #{residual_block_nobn.1} parent=5 // pred_fallthru
        _
      %p174 = scmp.lt.s32.totalorder %s11, 2
      // Predicated region
      $region29: #{residual_block_nobn.1} parent=5 // pred_check
        %p175 = pneg %p174
      $region30: #{residual_block_nobn.1} parent=5 // pred_check_branch
        %177 = sbr.rel (%p175) target = $region32
      $region31: #{residual_block_nobn.1} parent=5 // pred_region
        // Predicated region
        $region33: #{residual_block_nobn.1} parent=31 // pred_check
          %p178 = pneg %p31
        $region34: #{residual_block_nobn.1} parent=31 // pred_check_branch
          %180 = sbr.rel (%p178) target = $region36
        $region35: #{residual_block_nobn.1} parent=31 // pred_region
          %s181 = sand.u32 %s21, 1
          %s182 = sand.u32 %s21, 1
          %s183 = smul.addr %s182, 128
          %s184 = scalar_lea.vmem [#allocation2], %s183
          %s185 = smul.u32 2, %s11
          %s186 = smul.addr %s185, 8
          %s187 = scalar_lea.vmem %s0, %s186
          // Predicated region
          $region37: #{residual_block_nobn.1} parent=35 // pred_check
            _
          $region38: #{residual_block_nobn.1} parent=35 // pred_check_branch
            %189 = sbr.rel (0) target = $region40
          $region39: #{residual_block_nobn.1} parent=35 // pred_region
            // Predicated region
            $region41: #{residual_block_nobn.1} parent=39 // pred_check
              _
            $region42: #{residual_block_nobn.1} parent=39 // pred_check_branch
              %191 = sbr.rel (0) target = $region44
            $region43: #{residual_block_nobn.1} parent=39 // pred_region
              loop: start=0, step=1, limit=1
              $region45: #{residual_block_nobn.1} parent=43 // loop_pre_header
                _
              $region46: #{residual_block_nobn.1} parent=43 // loop_header
                %s193 = sphi 0, %s197
                %p194 = scmp.ge.s32.totalorder %s193, 1
                %s198 = sphi %s187, %s187
                %s199 = sphi %s184, %s184
              $region47: #{residual_block_nobn.1} parent=43 // loop_header_branch
                %196 = sbr.rel (%p194) target = $region51
              $region48: #{residual_block_nobn.1} parent=43 // loop_body
                %v200 = vld [vmem:[%s198] sm:$0xff]
                %201 = vst [vmem:[%s199] sm:$0xff] %v200
                %v202 = vld [vmem:[%s198 + $0x8] sm:$0xff]
                %203 = vst [vmem:[%s199 + $0x8] sm:$0xff] %v202
                %v204 = vld [vmem:[%s198 + $0x20] sm:$0xff]
                %205 = vst [vmem:[%s199 + $0x10] sm:$0xff] %v204
                %v206 = vld [vmem:[%s198 + $0x28] sm:$0xff]
                %207 = vst [vmem:[%s199 + $0x18] sm:$0xff] %v206
                %v208 = vld [vmem:[%s198 + $0x40] sm:$0xff]
                %209 = vst [vmem:[%s199 + $0x20] sm:$0xff] %v208
                %v210 = vld [vmem:[%s198 + $0x48] sm:$0xff]
                %211 = vst [vmem:[%s199 + $0x28] sm:$0xff] %v210
                %v212 = vld [vmem:[%s198 + $0x60] sm:$0xff]
                %213 = vst [vmem:[%s199 + $0x30] sm:$0xff] %v212
                %v214 = vld [vmem:[%s198 + $0x68] sm:$0xff]
                %215 = vst [vmem:[%s199 + $0x38] sm:$0xff] %v214
                %v216 = vld [vmem:[%s198 + $0x80] sm:$0xff]
                %217 = vst [vmem:[%s199 + $0x40] sm:$0xff] %v216
                %v218 = vld [vmem:[%s198 + $0x88] sm:$0xff]
                %219 = vst [vmem:[%s199 + $0x48] sm:$0xff] %v218
                %v220 = vld [vmem:[%s198 + $0xa0] sm:$0xff]
                %221 = vst [vmem:[%s199 + $0x50] sm:$0xff] %v220
                %v222 = vld [vmem:[%s198 + $0xa8] sm:$0xff]
                %223 = vst [vmem:[%s199 + $0x58] sm:$0xff] %v222
                %v224 = vld [vmem:[%s198 + $0xc0] sm:$0xff]
                %225 = vst [vmem:[%s199 + $0x60] sm:$0xff] %v224
                %v226 = vld [vmem:[%s198 + $0xc8] sm:$0xff]
                %227 = vst [vmem:[%s199 + $0x68] sm:$0xff] %v226
                %v228 = vld [vmem:[%s198 + $0xe0] sm:$0xff]
                %229 = vst [vmem:[%s199 + $0x70] sm:$0xff] %v228
                %v230 = vld [vmem:[%s198 + $0xe8] sm:$0xff]
                %231 = vst [vmem:[%s199 + $0x78] sm:$0xff] %v230
              $region49: #{residual_block_nobn.1} parent=43 // loop_footer
                %s197 = sadd.s32 1, %s193
              $region50: #{residual_block_nobn.1} parent=43 // loop_footer_branch
                %192 = sbr.rel target = $region46
              $region51: #{residual_block_nobn.1} parent=43 // loop_exit
                _
            $region44: #{residual_block_nobn.1} parent=39 // pred_fallthru
              _
            // Predicated region
            $region52: #{residual_block_nobn.1} parent=39 // pred_check
              _
            $region53: #{residual_block_nobn.1} parent=39 // pred_check_branch
              %233 = sbr.rel target = $region55
            $region54: #{residual_block_nobn.1} parent=39 // pred_region
              _
            $region55: #{residual_block_nobn.1} parent=39 // pred_fallthru
              _
          $region40: #{residual_block_nobn.1} parent=35 // pred_fallthru
            _
          %234 = vnop
        $region36: #{residual_block_nobn.1} parent=31 // pred_fallthru
          _
      $region32: #{residual_block_nobn.1} parent=5 // pred_fallthru
        _
      %p235 = scmp.le.s32.totalorder 1, %s11
      %p236 = scmp.lt.s32.totalorder %s11, 3
      %p237 = pnand %p235, %p236
      %p238 = pneg %p237
      // Predicated region
      $region56: #{residual_block_nobn.1} parent=5 // pred_check
        _
      $region57: #{residual_block_nobn.1} parent=5 // pred_check_branch
        %240 = sbr.rel (%p237) target = $region59
      $region58: #{residual_block_nobn.1} parent=5 // pred_region
        %s241 = ssub.s32 %s11, 1
        %s242 = sand.u32 %s24, 1
        %s243 = sand.u32 %s24, 1
        %s244 = smul.addr %s243, 128
        %s245 = scalar_lea.vmem [#allocation2], %s244
        // Predicated region
        $region60: #{residual_block_nobn.1} parent=58 // pred_check
          %p246 = pneg %p37
        $region61: #{residual_block_nobn.1} parent=58 // pred_check_branch
          %248 = sbr.rel (%p246) target = $region63
        $region62: #{residual_block_nobn.1} parent=58 // pred_region
          _
        $region63: #{residual_block_nobn.1} parent=58 // pred_fallthru
          _
        %s249 = sand.u32 %s24, 1
        %s250 = sand.u32 %s24, 1
        %s251 = smul.addr %s250, 128
        %s252 = scalar_lea.vmem [#allocation2], %s251
        %p253 = pneg %p37
        %p254 = pneg %p34
        %p255 = pneg %p58
        %p256 = pneg %p55
        %p257 = pneg %p79
        %p258 = pneg %p76
        %p259 = pneg %p100
        %p260 = pneg %p97
        %p261 = pneg %p121
        %p262 = pneg %p118
        %p263 = pneg %p147
        %p264 = pneg %p144
        %s265 = sand.u32 %s134, 1
        %s266 = sand.u32 %s134, 1
        %s267 = smul.addr %s266, 128
        %s268 = scalar_lea.vmem [#allocation3], %s267
        %s269 = smul.u32 2, %s16
        %s270 = smul.u32 2, %s16
        %v272 = vlaneseq
        %v273 = vand.u32 %v272, 127
        %v274 = vadd.s32 %v273, 128
        %vm275 = vcmp.lt.s32.totalorder %v273, 0
        %v276 = vsub.s32 0, %v273
        %v277 = vsel %vm275, %v276, %v273
        %v278 = vshrl.u32 %v277, 4
        %v279 = vand.u32 %v277, 15
        %v280 = vsub.s32 0, %v279
        %v281 = vsel %vm275, %v280, %v279
        %vm282 = vcmp.lt.s32.totalorder %v274, 0
        %v283 = vsub.s32 0, %v274
        %v284 = vsel %vm282, %v283, %v274
        %v285 = vshrl.u32 %v284, 4
        %v286 = vand.u32 %v284, 15
        %v287 = vsub.s32 0, %v286
        %v288 = vsel %vm282, %v287, %v286
        %vm289 = vcmp.ne.s32.totalorder %v281, 0
        %vm290 = vcmp.ne.s32.totalorder %v288, 0
        %vm291 = vcmp.lt.s32.totalorder %v281, 0
        %vm292 = vcmp.lt.s32.totalorder %v288, 0
        %vm293 = vmand %vm291, %vm289
        %vm294 = vmand %vm292, %vm290
        %v295 = vadd.s32 %v281, 16
        %v296 = vadd.s32 %v288, 16
        %v297 = vsel %vm293, %v295, %v281
        %v298 = vsel %vm294, %v296, %v288
        %vm299 = vcmp.lt.s32.totalorder %v273, 0
        %v300 = vsub.s32 0, %v273
        %v301 = vsel %vm299, %v300, %v273
        %v302 = vshrl.u32 %v301, 8
        %v303 = vand.u32 %v301, 255
        %v304 = vsub.s32 0, %v303
        %v305 = vsel %vm299, %v304, %v303
        %vm306 = vcmp.lt.s32.totalorder %v274, 0
        %v307 = vsub.s32 0, %v274
        %v308 = vsel %vm306, %v307, %v274
        %v309 = vshrl.u32 %v308, 8
        %v310 = vand.u32 %v308, 255
        %v311 = vsub.s32 0, %v310
        %v312 = vsel %vm306, %v311, %v310
        %vm313 = vcmp.ne.s32.totalorder %v305, 0
        %vm314 = vcmp.ne.s32.totalorder %v312, 0
        %vm315 = vcmp.lt.s32.totalorder %v305, 0
        %vm316 = vcmp.lt.s32.totalorder %v312, 0
        %vm317 = vmand %vm315, %vm313
        %vm318 = vmand %vm316, %vm314
        %v319 = vadd.s32 %v305, 256
        %v320 = vadd.s32 %v312, 256
        %v321 = vsel %vm317, %v319, %v305
        %v322 = vsel %vm318, %v320, %v312
        %vm323 = vcmp.ne.s32.totalorder %v297, 0
        %vm324 = vcmp.ne.s32.totalorder %v298, 0
        %vm325 = vcmp.ne.s32.totalorder %v297, 15
        %vm326 = vcmp.ne.s32.totalorder %v298, 15
        %vm327 = vcmp.ge.s32.totalorder %v321, 16
        %vm328 = vcmp.ge.s32.totalorder %v322, 16
        %vm329 = vcmp.lt.s32.totalorder %v321, 240
        %vm330 = vcmp.lt.s32.totalorder %v322, 240
        %v331 = vld [vmem:[%s2] sm:$0xff]
        %v332 = vld [vmem:[%s2 + $0x8] sm:$0xff]
        %v333 = vld [vmem:[%s2 + $0x10] sm:$0xff]
        %v334 = vld [vmem:[%s2 + $0x18] sm:$0xff]
        %v335 = vld [vmem:[%s2 + $0x20] sm:$0xff]
        %v336 = vld [vmem:[%s2 + $0x28] sm:$0xff]
        %v337 = vld [vmem:[%s2 + $0x30] sm:$0xff]
        %v338 = vld [vmem:[%s2 + $0x38] sm:$0xff]
        %v339 = vld [vmem:[%s4] sm:$0xff]
        %v340 = vld [vmem:[%s4 + $0x8] sm:$0xff]
        %v341 = vld [vmem:[%s4 + $0x10] sm:$0xff]
        %v342 = vld [vmem:[%s4 + $0x18] sm:$0xff]
        %v343 = vld [vmem:[%s4 + $0x20] sm:$0xff]
        %v344 = vld [vmem:[%s4 + $0x28] sm:$0xff]
        %v345 = vld [vmem:[%s4 + $0x30] sm:$0xff]
        %v346 = vld [vmem:[%s4 + $0x38] sm:$0xff]
        %v347 = vld [vmem:[%s245] sm:$0xff]
        %v348 = vld [vmem:[%s245 + $0x8] sm:$0xff]
        %v349 = vld [vmem:[%s245 + $0x10] sm:$0xff]
        %v350 = vld [vmem:[%s245 + $0x18] sm:$0xff]
        %v351 = vld [vmem:[%s245 + $0x20] sm:$0xff]
        %v352 = vld [vmem:[%s245 + $0x28] sm:$0xff]
        %v353 = vld [vmem:[%s245 + $0x30] sm:$0xff]
        %v354 = vld [vmem:[%s245 + $0x38] sm:$0xff]
        %v355 = vld [vmem:[%s245 + $0x40] sm:$0xff]
        %v356 = vld [vmem:[%s245 + $0x48] sm:$0xff]
        %v357 = vld [vmem:[%s245 + $0x50] sm:$0xff]
        %v358 = vld [vmem:[%s245 + $0x58] sm:$0xff]
        %v359 = vld [vmem:[%s245 + $0x60] sm:$0xff]
        %v360 = vld [vmem:[%s245 + $0x68] sm:$0xff]
        %v361 = vld [vmem:[%s245 + $0x70] sm:$0xff]
        %v362 = vld [vmem:[%s245 + $0x78] sm:$0xff]
        %v363 = vsel %vm323, 1, 0
        %v364 = vsel %vm324, 1, 0
        %vm365 = vcmp.eq.s32.totalorder %v363, 1
        %vm366 = vcmp.eq.s32.totalorder %v364, 1
        %v367 = vsel %vm365, %v347, 0.0
        %v368 = vsel %vm366, %v348, 0.0
        %v369 = vsel %vm365, %v349, 0.0
        %v370 = vsel %vm366, %v350, 0.0
        %v371 = vsel %vm365, %v351, 0.0
        %v372 = vsel %vm366, %v352, 0.0
        %v373 = vsel %vm365, %v353, 0.0
        %v374 = vsel %vm366, %v354, 0.0
        %v375 = vsel %vm365, %v355, 0.0
        %v376 = vsel %vm366, %v356, 0.0
        %v377 = vsel %vm365, %v357, 0.0
        %v378 = vsel %vm366, %v358, 0.0
        %v379 = vsel %vm365, %v359, 0.0
        %v380 = vsel %vm366, %v360, 0.0
        %v381 = vsel %vm365, %v361, 0.0
        %v382 = vsel %vm366, %v362, 0.0
        %383 = vrot.lane.b32.xlu0 %v367, 127
        %v384 = vpop.permute.xlu0 %383
        %385 = vrot.lane.b32.xlu0 %v369, 127
        %v386 = vpop.permute.xlu0 %385
        %387 = vrot.lane.b32.xlu0 %v371, 127
        %v388 = vpop.permute.xlu0 %387
        %389 = vrot.lane.b32.xlu0 %v373, 127
        %v390 = vpop.permute.xlu0 %389
        %391 = vrot.lane.b32.xlu0 %v375, 127
        %v392 = vpop.permute.xlu0 %391
        %393 = vrot.lane.b32.xlu0 %v377, 127
        %v394 = vpop.permute.xlu0 %393
        %395 = vrot.lane.b32.xlu0 %v379, 127
        %v396 = vpop.permute.xlu0 %395
        %397 = vrot.lane.b32.xlu0 %v381, 127
        %v398 = vpop.permute.xlu0 %397
        %399 = vrot.lane.b32.xlu0 %v368, 127
        %v400 = vpop.permute.xlu0 %399
        %401 = vrot.lane.b32.xlu0 %v370, 127
        %v402 = vpop.permute.xlu0 %401
        %403 = vrot.lane.b32.xlu0 %v372, 127
        %v404 = vpop.permute.xlu0 %403
        %405 = vrot.lane.b32.xlu0 %v374, 127
        %v406 = vpop.permute.xlu0 %405
        %407 = vrot.lane.b32.xlu0 %v376, 127
        %v408 = vpop.permute.xlu0 %407
        %409 = vrot.lane.b32.xlu0 %v378, 127
        %v410 = vpop.permute.xlu0 %409
        %411 = vrot.lane.b32.xlu0 %v380, 127
        %v412 = vpop.permute.xlu0 %411
        %413 = vrot.lane.b32.xlu0 %v382, 127
        %v414 = vpop.permute.xlu0 %413
        %vm415 = vcmp.lt.s32.totalorder %v273, 127
        %v416 = vsel %vm415, %v384, %v400
        %v417 = vsel %vm415, %v386, %v402
        %v418 = vsel %vm415, %v388, %v404
        %v419 = vsel %vm415, %v390, %v406
        %v420 = vsel %vm415, %v392, %v408
        %v421 = vsel %vm415, %v394, %v410
        %v422 = vsel %vm415, %v396, %v412
        %v423 = vsel %vm415, %v398, %v414
        %v424 = vsel %vm415, %v400, %v384
        %v425 = vsel %vm415, %v402, %v386
        %v426 = vsel %vm415, %v404, %v388
        %v427 = vsel %vm415, %v406, %v390
        %v428 = vsel %vm415, %v408, %v392
        %v429 = vsel %vm415, %v410, %v394
        %v430 = vsel %vm415, %v412, %v396
        %v431 = vsel %vm415, %v414, %v398
        %v432 = vsel %vm325, 1, 0
        %v433 = vsel %vm326, 1, 0
        %vm434 = vcmp.eq.s32.totalorder %v432, 1
        %vm435 = vcmp.eq.s32.totalorder %v433, 1
        %v436 = vsel %vm434, %v347, 0.0
        %v437 = vsel %vm435, %v348, 0.0
        %v438 = vsel %vm434, %v349, 0.0
        %v439 = vsel %vm435, %v350, 0.0
        %v440 = vsel %vm434, %v351, 0.0
        %v441 = vsel %vm435, %v352, 0.0
        %v442 = vsel %vm434, %v353, 0.0
        %v443 = vsel %vm435, %v354, 0.0
        %v444 = vsel %vm434, %v355, 0.0
        %v445 = vsel %vm435, %v356, 0.0
        %v446 = vsel %vm434, %v357, 0.0
        %v447 = vsel %vm435, %v358, 0.0
        %v448 = vsel %vm434, %v359, 0.0
        %v449 = vsel %vm435, %v360, 0.0
        %v450 = vsel %vm434, %v361, 0.0
        %v451 = vsel %vm435, %v362, 0.0
        %452 = vrot.lane.b32.xlu0 %v436, 1
        %v453 = vpop.permute.xlu0 %452
        %454 = vrot.lane.b32.xlu0 %v438, 1
        %v455 = vpop.permute.xlu0 %454
        %456 = vrot.lane.b32.xlu0 %v440, 1
        %v457 = vpop.permute.xlu0 %456
        %458 = vrot.lane.b32.xlu0 %v442, 1
        %v459 = vpop.permute.xlu0 %458
        %460 = vrot.lane.b32.xlu0 %v444, 1
        %v461 = vpop.permute.xlu0 %460
        %462 = vrot.lane.b32.xlu0 %v446, 1
        %v463 = vpop.permute.xlu0 %462
        %464 = vrot.lane.b32.xlu0 %v448, 1
        %v465 = vpop.permute.xlu0 %464
        %466 = vrot.lane.b32.xlu0 %v450, 1
        %v467 = vpop.permute.xlu0 %466
        %468 = vrot.lane.b32.xlu0 %v437, 1
        %v469 = vpop.permute.xlu0 %468
        %470 = vrot.lane.b32.xlu0 %v439, 1
        %v471 = vpop.permute.xlu0 %470
        %472 = vrot.lane.b32.xlu0 %v441, 1
        %v473 = vpop.permute.xlu0 %472
        %474 = vrot.lane.b32.xlu0 %v443, 1
        %v475 = vpop.permute.xlu0 %474
        %476 = vrot.lane.b32.xlu0 %v445, 1
        %v477 = vpop.permute.xlu0 %476
        %478 = vrot.lane.b32.xlu0 %v447, 1
        %v479 = vpop.permute.xlu0 %478
        %480 = vrot.lane.b32.xlu0 %v449, 1
        %v481 = vpop.permute.xlu0 %480
        %482 = vrot.lane.b32.xlu0 %v451, 1
        %v483 = vpop.permute.xlu0 %482
        %vm484 = vcmp.lt.s32.totalorder %v273, 1
        %v485 = vsel %vm484, %v453, %v469
        %v486 = vsel %vm484, %v455, %v471
        %v487 = vsel %vm484, %v457, %v473
        %v488 = vsel %vm484, %v459, %v475
        %v489 = vsel %vm484, %v461, %v477
        %v490 = vsel %vm484, %v463, %v479
        %v491 = vsel %vm484, %v465, %v481
        %v492 = vsel %vm484, %v467, %v483
        %v493 = vsel %vm484, %v469, %v453
        %v494 = vsel %vm484, %v471, %v455
        %v495 = vsel %vm484, %v473, %v457
        %v496 = vsel %vm484, %v475, %v459
        %v497 = vsel %vm484, %v477, %v461
        %v498 = vsel %vm484, %v479, %v463
        %v499 = vsel %vm484, %v481, %v465
        %v500 = vsel %vm484, %v483, %v467
        %v501 = vpack.c.bf16 %v494, %v493
        %v502 = vpack.c.bf16 %v486, %v485
        %v503 = vpack.c.bf16 %v496, %v495
        %v504 = vpack.c.bf16 %v488, %v487
        %v505 = vpack.c.bf16 %v498, %v497
        %v506 = vpack.c.bf16 %v490, %v489
        %v507 = vpack.c.bf16 %v500, %v499
        %v508 = vpack.c.bf16 %v492, %v491
        %v509 = vpack.c.bf16 %v349, %v347
        %v510 = vpack.c.bf16 %v350, %v348
        %v511 = vpack.c.bf16 %v353, %v351
        %v512 = vpack.c.bf16 %v354, %v352
        %v513 = vpack.c.bf16 %v357, %v355
        %v514 = vpack.c.bf16 %v358, %v356
        %v515 = vpack.c.bf16 %v361, %v359
        %v516 = vpack.c.bf16 %v362, %v360
        %v517 = vpack.c.bf16 %v417, %v416
        %v518 = vpack.c.bf16 %v425, %v424
        %v519 = vpack.c.bf16 %v419, %v418
        %v520 = vpack.c.bf16 %v427, %v426
        %v521 = vpack.c.bf16 %v421, %v420
        %v522 = vpack.c.bf16 %v429, %v428
        %v523 = vpack.c.bf16 %v423, %v422
        %v524 = vpack.c.bf16 %v431, %v430
        %v525 = vld [vmem:[%s1] sm:$0xf]
        %v526 = vld [vmem:[%s1 + $0x4] sm:$0xf]
        %v527 = vld [vmem:[%s1 + $0x8] sm:$0xf]
        %v528 = vld [vmem:[%s1 + $0xc] sm:$0xf]
        %v529 = vld [vmem:[%s1 + $0x10] sm:$0xf]
        %v530 = vld [vmem:[%s1 + $0x14] sm:$0xf]
        %v531 = vld [vmem:[%s1 + $0x18] sm:$0xf]
        %v532 = vld [vmem:[%s1 + $0x1c] sm:$0xf]
        %s533 = scalar_lea.vmem %s1, 32
        %v534 = vld [vmem:[%s533] sm:$0xf]
        %v535 = vld [vmem:[%s533 + $0x4] sm:$0xf]
        %v536 = vld [vmem:[%s533 + $0x8] sm:$0xf]
        %v537 = vld [vmem:[%s533 + $0xc] sm:$0xf]
        %v538 = vld [vmem:[%s533 + $0x10] sm:$0xf]
        %v539 = vld [vmem:[%s533 + $0x14] sm:$0xf]
        %v540 = vld [vmem:[%s533 + $0x18] sm:$0xf]
        %v541 = vld [vmem:[%s533 + $0x1c] sm:$0xf]
        %v550 = vunpack.c.l.b16 %v534
        %v551 = vunpack.c.l.b16 %v535
        %v552 = vunpack.c.l.b16 %v536
        %v553 = vunpack.c.l.b16 %v537
        %v554 = vunpack.c.l.b16 %v538
        %v555 = vunpack.c.l.b16 %v539
        %v556 = vunpack.c.l.b16 %v540
        %v557 = vunpack.c.l.b16 %v541
        %v558 = vpack.c.b16 %v551, %v550
        %v559 = vpack.c.b16 %v553, %v552
        %v560 = vpack.c.b16 %v555, %v554
        %v561 = vpack.c.b16 %v557, %v556
        %vm562 = vcmask 523264
        %v564 = vsel %vm562, %v558, 0
        %v567 = vsel %vm562, %v559, 0
        %v570 = vsel %vm562, %v560, 0
        %v573 = vsel %vm562, %v561, 0
        %575 = vmatpush.bf16.msra.mxu0 0
        %576 = vmatpush.bf16.msra.mxu0 0
        %577 = vmatpush.bf16.msra.mxu0 0
        %578 = vmatpush.bf16.msra.mxu0 0
        %579 = vmatpush.bf16.msra.mxu0 %v515
        %580 = vmatpush.bf16.msra.mxu0 %v513
        %581 = vmatpush.bf16.msra.mxu0 %v511
        %582 = vmatpush.bf16.msra.mxu0 %v509
        %583 = vmatmul.bf16.gmra.mxu0 %v564
        %v584 = vpop.f32.mrf.mxu0
        %v585 = vadd.f32 0.0, %v584
        %v586 = vpop.f32.mrf.mxu0
        %v587 = vadd.f32 0.0, %v586
        %588 = vmatmul.bf16.gmra.mxu0 %v567
        %v589 = vpop.f32.mrf.mxu0
        %v590 = vadd.f32 0.0, %v589
        %v591 = vpop.f32.mrf.mxu0
        %v592 = vadd.f32 0.0, %v591
        %593 = vmatmul.bf16.gmra.mxu0 %v570
        %v594 = vpop.f32.mrf.mxu0
        %v595 = vadd.f32 0.0, %v594
        %v596 = vpop.f32.mrf.mxu0
        %v597 = vadd.f32 0.0, %v596
        %598 = vmatmul.bf16.gmra.mxu0 %v573
        %v599 = vpop.f32.mrf.mxu0
        %v600 = vadd.f32 0.0, %v599
        %v601 = vpop.f32.mrf.mxu0
        %v602 = vadd.f32 0.0, %v601
        %603 = vdwg.mxu0
        %604 = vmatpush.bf16.msra.mxu0 0
        %605 = vmatpush.bf16.msra.mxu0 0
        %606 = vmatpush.bf16.msra.mxu0 0
        %607 = vmatpush.bf16.msra.mxu0 0
        %608 = vmatpush.bf16.msra.mxu0 %v516
        %609 = vmatpush.bf16.msra.mxu0 %v514
        %610 = vmatpush.bf16.msra.mxu0 %v512
        %611 = vmatpush.bf16.msra.mxu0 %v510
        %612 = vmatmul.bf16.gmra.mxu0 %v564
        %v613 = vpop.f32.mrf.mxu0
        %v614 = vadd.f32 0.0, %v613
        %v615 = vpop.f32.mrf.mxu0
        %v616 = vadd.f32 0.0, %v615
        %617 = vmatmul.bf16.gmra.mxu0 %v567
        %v618 = vpop.f32.mrf.mxu0
        %v619 = vadd.f32 0.0, %v618
        %v620 = vpop.f32.mrf.mxu0
        %v621 = vadd.f32 0.0, %v620
        %622 = vmatmul.bf16.gmra.mxu0 %v570
        %v623 = vpop.f32.mrf.mxu0
        %v624 = vadd.f32 0.0, %v623
        %v625 = vpop.f32.mrf.mxu0
        %v626 = vadd.f32 0.0, %v625
        %627 = vmatmul.bf16.gmra.mxu0 %v573
        %v628 = vpop.f32.mrf.mxu0
        %v629 = vadd.f32 0.0, %v628
        %v630 = vpop.f32.mrf.mxu0
        %v631 = vadd.f32 0.0, %v630
        %632 = vdwg.mxu0
        %v641 = vunpack.c.l.b16 %v525
        %v642 = vunpack.c.l.b16 %v526
        %v643 = vunpack.c.l.b16 %v527
        %v644 = vunpack.c.l.b16 %v528
        %v645 = vunpack.c.l.b16 %v529
        %v646 = vunpack.c.l.b16 %v530
        %v647 = vunpack.c.l.b16 %v531
        %v648 = vunpack.c.l.b16 %v532
        %v649 = vpack.c.b16 %v642, %v641
        %v650 = vpack.c.b16 %v644, %v643
        %v651 = vpack.c.b16 %v646, %v645
        %v652 = vpack.c.b16 %v648, %v647
        %v654 = vsel %vm562, %v649, 0
        %v657 = vsel %vm562, %v650, 0
        %v660 = vsel %vm562, %v651, 0
        %v663 = vsel %vm562, %v652, 0
        %665 = vmatpush.bf16.msra.mxu0 0
        %666 = vmatpush.bf16.msra.mxu0 0
        %667 = vmatpush.bf16.msra.mxu0 0
        %668 = vmatpush.bf16.msra.mxu0 0
        %669 = vmatpush.bf16.msra.mxu0 %v507
        %670 = vmatpush.bf16.msra.mxu0 %v505
        %671 = vmatpush.bf16.msra.mxu0 %v503
        %672 = vmatpush.bf16.msra.mxu0 %v501
        %673 = vmatmul.bf16.gmra.mxu0 %v654
        %v674 = vpop.f32.mrf.mxu0
        %v675 = vadd.f32 %v585, %v674
        %v676 = vpop.f32.mrf.mxu0
        %v677 = vadd.f32 %v587, %v676
        %678 = vmatmul.bf16.gmra.mxu0 %v657
        %v679 = vpop.f32.mrf.mxu0
        %v680 = vadd.f32 %v590, %v679
        %v681 = vpop.f32.mrf.mxu0
        %v682 = vadd.f32 %v592, %v681
        %683 = vmatmul.bf16.gmra.mxu0 %v660
        %v684 = vpop.f32.mrf.mxu0
        %v685 = vadd.f32 %v595, %v684
        %v686 = vpop.f32.mrf.mxu0
        %v687 = vadd.f32 %v597, %v686
        %688 = vmatmul.bf16.gmra.mxu0 %v663
        %v689 = vpop.f32.mrf.mxu0
        %v690 = vadd.f32 %v600, %v689
        %v691 = vpop.f32.mrf.mxu0
        %v692 = vadd.f32 %v602, %v691
        %693 = vdwg.mxu0
        %694 = vmatpush.bf16.msra.mxu0 0
        %695 = vmatpush.bf16.msra.mxu0 0
        %696 = vmatpush.bf16.msra.mxu0 0
        %697 = vmatpush.bf16.msra.mxu0 0
        %698 = vmatpush.bf16.msra.mxu0 %v508
        %699 = vmatpush.bf16.msra.mxu0 %v506
        %700 = vmatpush.bf16.msra.mxu0 %v504
        %701 = vmatpush.bf16.msra.mxu0 %v502
        %702 = vmatmul.bf16.gmra.mxu0 %v654
        %v703 = vpop.f32.mrf.mxu0
        %v704 = vadd.f32 %v614, %v703
        %v705 = vpop.f32.mrf.mxu0
        %v706 = vadd.f32 %v616, %v705
        %707 = vmatmul.bf16.gmra.mxu0 %v657
        %v708 = vpop.f32.mrf.mxu0
        %v709 = vadd.f32 %v619, %v708
        %v710 = vpop.f32.mrf.mxu0
        %v711 = vadd.f32 %v621, %v710
        %712 = vmatmul.bf16.gmra.mxu0 %v660
        %v713 = vpop.f32.mrf.mxu0
        %v714 = vadd.f32 %v624, %v713
        %v715 = vpop.f32.mrf.mxu0
        %v716 = vadd.f32 %v626, %v715
        %717 = vmatmul.bf16.gmra.mxu0 %v663
        %v718 = vpop.f32.mrf.mxu0
        %v719 = vadd.f32 %v629, %v718
        %v720 = vpop.f32.mrf.mxu0
        %v721 = vadd.f32 %v631, %v720
        %722 = vdwg.mxu0
        %s723 = scalar_lea.vmem %s1, 64
        %v724 = vld [vmem:[%s723] sm:$0xf]
        %v725 = vld [vmem:[%s723 + $0x4] sm:$0xf]
        %v726 = vld [vmem:[%s723 + $0x8] sm:$0xf]
        %v727 = vld [vmem:[%s723 + $0xc] sm:$0xf]
        %v728 = vld [vmem:[%s723 + $0x10] sm:$0xf]
        %v729 = vld [vmem:[%s723 + $0x14] sm:$0xf]
        %v730 = vld [vmem:[%s723 + $0x18] sm:$0xf]
        %v731 = vld [vmem:[%s723 + $0x1c] sm:$0xf]
        %v740 = vunpack.c.l.b16 %v724
        %v741 = vunpack.c.l.b16 %v725
        %v742 = vunpack.c.l.b16 %v726
        %v743 = vunpack.c.l.b16 %v727
        %v744 = vunpack.c.l.b16 %v728
        %v745 = vunpack.c.l.b16 %v729
        %v746 = vunpack.c.l.b16 %v730
        %v747 = vunpack.c.l.b16 %v731
        %v748 = vpack.c.b16 %v741, %v740
        %v749 = vpack.c.b16 %v743, %v742
        %v750 = vpack.c.b16 %v745, %v744
        %v751 = vpack.c.b16 %v747, %v746
        %v753 = vsel %vm562, %v748, 0
        %v756 = vsel %vm562, %v749, 0
        %v759 = vsel %vm562, %v750, 0
        %v762 = vsel %vm562, %v751, 0
        %764 = vmatpush.bf16.msra.mxu0 0
        %765 = vmatpush.bf16.msra.mxu0 0
        %766 = vmatpush.bf16.msra.mxu0 0
        %767 = vmatpush.bf16.msra.mxu0 0
        %768 = vmatpush.bf16.msra.mxu0 %v523
        %769 = vmatpush.bf16.msra.mxu0 %v521
        %770 = vmatpush.bf16.msra.mxu0 %v519
        %771 = vmatpush.bf16.msra.mxu0 %v517
        %772 = vmatmul.bf16.gmra.mxu0 %v753
        %v773 = vpop.f32.mrf.mxu0
        %v774 = vadd.f32 0.0, %v773
        %v775 = vpop.f32.mrf.mxu0
        %v776 = vadd.f32 0.0, %v775
        %777 = vmatmul.bf16.gmra.mxu0 %v756
        %v778 = vpop.f32.mrf.mxu0
        %v779 = vadd.f32 0.0, %v778
        %v780 = vpop.f32.mrf.mxu0
        %v781 = vadd.f32 0.0, %v780
        %782 = vmatmul.bf16.gmra.mxu0 %v759
        %v783 = vpop.f32.mrf.mxu0
        %v784 = vadd.f32 0.0, %v783
        %v785 = vpop.f32.mrf.mxu0
        %v786 = vadd.f32 0.0, %v785
        %787 = vmatmul.bf16.gmra.mxu0 %v762
        %v788 = vpop.f32.mrf.mxu0
        %v789 = vadd.f32 0.0, %v788
        %v790 = vpop.f32.mrf.mxu0
        %v791 = vadd.f32 0.0, %v790
        %792 = vdwg.mxu0
        %793 = vmatpush.bf16.msra.mxu0 0
        %794 = vmatpush.bf16.msra.mxu0 0
        %795 = vmatpush.bf16.msra.mxu0 0
        %796 = vmatpush.bf16.msra.mxu0 0
        %797 = vmatpush.bf16.msra.mxu0 %v524
        %798 = vmatpush.bf16.msra.mxu0 %v522
        %799 = vmatpush.bf16.msra.mxu0 %v520
        %800 = vmatpush.bf16.msra.mxu0 %v518
        %801 = vmatmul.bf16.gmra.mxu0 %v753
        %v802 = vpop.f32.mrf.mxu0
        %v803 = vadd.f32 0.0, %v802
        %v804 = vpop.f32.mrf.mxu0
        %v805 = vadd.f32 0.0, %v804
        %806 = vmatmul.bf16.gmra.mxu0 %v756
        %v807 = vpop.f32.mrf.mxu0
        %v808 = vadd.f32 0.0, %v807
        %v809 = vpop.f32.mrf.mxu0
        %v810 = vadd.f32 0.0, %v809
        %811 = vmatmul.bf16.gmra.mxu0 %v759
        %v812 = vpop.f32.mrf.mxu0
        %v813 = vadd.f32 0.0, %v812
        %v814 = vpop.f32.mrf.mxu0
        %v815 = vadd.f32 0.0, %v814
        %816 = vmatmul.bf16.gmra.mxu0 %v762
        %v817 = vpop.f32.mrf.mxu0
        %v818 = vadd.f32 0.0, %v817
        %v819 = vpop.f32.mrf.mxu0
        %v820 = vadd.f32 0.0, %v819
        %821 = vdwg.mxu0
        %v822 = vadd.f32 %v675, %v774
        %v823 = vadd.f32 %v704, %v803
        %v824 = vadd.f32 %v677, %v776
        %v825 = vadd.f32 %v706, %v805
        %v826 = vadd.f32 %v680, %v779
        %v827 = vadd.f32 %v709, %v808
        %v828 = vadd.f32 %v682, %v781
        %v829 = vadd.f32 %v711, %v810
        %v830 = vadd.f32 %v685, %v784
        %v831 = vadd.f32 %v714, %v813
        %v832 = vadd.f32 %v687, %v786
        %v833 = vadd.f32 %v716, %v815
        %v834 = vadd.f32 %v690, %v789
        %v835 = vadd.f32 %v719, %v818
        %v836 = vadd.f32 %v692, %v791
        %v837 = vadd.f32 %v721, %v820
        %s838 = scalar_lea.vmem %s1, 96
        %v839 = vld [vmem:[%s838] sm:$0xf]
        %v840 = vld [vmem:[%s838 + $0x4] sm:$0xf]
        %v841 = vld [vmem:[%s838 + $0x8] sm:$0xf]
        %v842 = vld [vmem:[%s838 + $0xc] sm:$0xf]
        %v843 = vld [vmem:[%s838 + $0x10] sm:$0xf]
        %v844 = vld [vmem:[%s838 + $0x14] sm:$0xf]
        %v845 = vld [vmem:[%s838 + $0x18] sm:$0xf]
        %v846 = vld [vmem:[%s838 + $0x1c] sm:$0xf]
        %s847 = scalar_lea.vmem %s1, 128
        %v848 = vld [vmem:[%s847] sm:$0xf]
        %v849 = vld [vmem:[%s847 + $0x4] sm:$0xf]
        %v850 = vld [vmem:[%s847 + $0x8] sm:$0xf]
        %v851 = vld [vmem:[%s847 + $0xc] sm:$0xf]
        %v852 = vld [vmem:[%s847 + $0x10] sm:$0xf]
        %v853 = vld [vmem:[%s847 + $0x14] sm:$0xf]
        %v854 = vld [vmem:[%s847 + $0x18] sm:$0xf]
        %v855 = vld [vmem:[%s847 + $0x1c] sm:$0xf]
        %v864 = vunpack.c.l.b16 %v848
        %v865 = vunpack.c.l.b16 %v849
        %v866 = vunpack.c.l.b16 %v850
        %v867 = vunpack.c.l.b16 %v851
        %v868 = vunpack.c.l.b16 %v852
        %v869 = vunpack.c.l.b16 %v853
        %v870 = vunpack.c.l.b16 %v854
        %v871 = vunpack.c.l.b16 %v855
        %v872 = vpack.c.b16 %v865, %v864
        %v873 = vpack.c.b16 %v867, %v866
        %v874 = vpack.c.b16 %v869, %v868
        %v875 = vpack.c.b16 %v871, %v870
        %v877 = vsel %vm562, %v872, 0
        %v880 = vsel %vm562, %v873, 0
        %v883 = vsel %vm562, %v874, 0
        %v886 = vsel %vm562, %v875, 0
        %888 = vmatpush.bf16.msra.mxu0 0
        %889 = vmatpush.bf16.msra.mxu0 0
        %890 = vmatpush.bf16.msra.mxu0 0
        %891 = vmatpush.bf16.msra.mxu0 0
        %892 = vmatpush.bf16.msra.mxu0 %v515
        %893 = vmatpush.bf16.msra.mxu0 %v513
        %894 = vmatpush.bf16.msra.mxu0 %v511
        %895 = vmatpush.bf16.msra.mxu0 %v509
        %896 = vmatmul.bf16.gmra.mxu0 %v877
        %v897 = vpop.f32.mrf.mxu0
        %v898 = vadd.f32 0.0, %v897
        %v899 = vpop.f32.mrf.mxu0
        %v900 = vadd.f32 0.0, %v899
        %901 = vmatmul.bf16.gmra.mxu0 %v880
        %v902 = vpop.f32.mrf.mxu0
        %v903 = vadd.f32 0.0, %v902
        %v904 = vpop.f32.mrf.mxu0
        %v905 = vadd.f32 0.0, %v904
        %906 = vmatmul.bf16.gmra.mxu0 %v883
        %v907 = vpop.f32.mrf.mxu0
        %v908 = vadd.f32 0.0, %v907
        %v909 = vpop.f32.mrf.mxu0
        %v910 = vadd.f32 0.0, %v909
        %911 = vmatmul.bf16.gmra.mxu0 %v886
        %v912 = vpop.f32.mrf.mxu0
        %v913 = vadd.f32 0.0, %v912
        %v914 = vpop.f32.mrf.mxu0
        %v915 = vadd.f32 0.0, %v914
        %916 = vdwg.mxu0
        %917 = vmatpush.bf16.msra.mxu0 0
        %918 = vmatpush.bf16.msra.mxu0 0
        %919 = vmatpush.bf16.msra.mxu0 0
        %920 = vmatpush.bf16.msra.mxu0 0
        %921 = vmatpush.bf16.msra.mxu0 %v516
        %922 = vmatpush.bf16.msra.mxu0 %v514
        %923 = vmatpush.bf16.msra.mxu0 %v512
        %924 = vmatpush.bf16.msra.mxu0 %v510
        %925 = vmatmul.bf16.gmra.mxu0 %v877
        %v926 = vpop.f32.mrf.mxu0
        %v927 = vadd.f32 0.0, %v926
        %v928 = vpop.f32.mrf.mxu0
        %v929 = vadd.f32 0.0, %v928
        %930 = vmatmul.bf16.gmra.mxu0 %v880
        %v931 = vpop.f32.mrf.mxu0
        %v932 = vadd.f32 0.0, %v931
        %v933 = vpop.f32.mrf.mxu0
        %v934 = vadd.f32 0.0, %v933
        %935 = vmatmul.bf16.gmra.mxu0 %v883
        %v936 = vpop.f32.mrf.mxu0
        %v937 = vadd.f32 0.0, %v936
        %v938 = vpop.f32.mrf.mxu0
        %v939 = vadd.f32 0.0, %v938
        %940 = vmatmul.bf16.gmra.mxu0 %v886
        %v941 = vpop.f32.mrf.mxu0
        %v942 = vadd.f32 0.0, %v941
        %v943 = vpop.f32.mrf.mxu0
        %v944 = vadd.f32 0.0, %v943
        %945 = vdwg.mxu0
        %v954 = vunpack.c.l.b16 %v839
        %v955 = vunpack.c.l.b16 %v840
        %v956 = vunpack.c.l.b16 %v841
        %v957 = vunpack.c.l.b16 %v842
        %v958 = vunpack.c.l.b16 %v843
        %v959 = vunpack.c.l.b16 %v844
        %v960 = vunpack.c.l.b16 %v845
        %v961 = vunpack.c.l.b16 %v846
        %v962 = vpack.c.b16 %v955, %v954
        %v963 = vpack.c.b16 %v957, %v956
        %v964 = vpack.c.b16 %v959, %v958
        %v965 = vpack.c.b16 %v961, %v960
        %v967 = vsel %vm562, %v962, 0
        %v970 = vsel %vm562, %v963, 0
        %v973 = vsel %vm562, %v964, 0
        %v976 = vsel %vm562, %v965, 0
        %978 = vmatpush.bf16.msra.mxu0 0
        %979 = vmatpush.bf16.msra.mxu0 0
        %980 = vmatpush.bf16.msra.mxu0 0
        %981 = vmatpush.bf16.msra.mxu0 0
        %982 = vmatpush.bf16.msra.mxu0 %v507
        %983 = vmatpush.bf16.msra.mxu0 %v505
        %984 = vmatpush.bf16.msra.mxu0 %v503
        %985 = vmatpush.bf16.msra.mxu0 %v501
        %986 = vmatmul.bf16.gmra.mxu0 %v967
        %v987 = vpop.f32.mrf.mxu0
        %v988 = vadd.f32 %v898, %v987
        %v989 = vpop.f32.mrf.mxu0
        %v990 = vadd.f32 %v900, %v989
        %991 = vmatmul.bf16.gmra.mxu0 %v970
        %v992 = vpop.f32.mrf.mxu0
        %v993 = vadd.f32 %v903, %v992
        %v994 = vpop.f32.mrf.mxu0
        %v995 = vadd.f32 %v905, %v994
        %996 = vmatmul.bf16.gmra.mxu0 %v973
        %v997 = vpop.f32.mrf.mxu0
        %v998 = vadd.f32 %v908, %v997
        %v999 = vpop.f32.mrf.mxu0
        %v1000 = vadd.f32 %v910, %v999
        %1001 = vmatmul.bf16.gmra.mxu0 %v976
        %v1002 = vpop.f32.mrf.mxu0
        %v1003 = vadd.f32 %v913, %v1002
        %v1004 = vpop.f32.mrf.mxu0
        %v1005 = vadd.f32 %v915, %v1004
        %1006 = vdwg.mxu0
        %1007 = vmatpush.bf16.msra.mxu0 0
        %1008 = vmatpush.bf16.msra.mxu0 0
        %1009 = vmatpush.bf16.msra.mxu0 0
        %1010 = vmatpush.bf16.msra.mxu0 0
        %1011 = vmatpush.bf16.msra.mxu0 %v508
        %1012 = vmatpush.bf16.msra.mxu0 %v506
        %1013 = vmatpush.bf16.msra.mxu0 %v504
        %1014 = vmatpush.bf16.msra.mxu0 %v502
        %1015 = vmatmul.bf16.gmra.mxu0 %v967
        %v1016 = vpop.f32.mrf.mxu0
        %v1017 = vadd.f32 %v927, %v1016
        %v1018 = vpop.f32.mrf.mxu0
        %v1019 = vadd.f32 %v929, %v1018
        %1020 = vmatmul.bf16.gmra.mxu0 %v970
        %v1021 = vpop.f32.mrf.mxu0
        %v1022 = vadd.f32 %v932, %v1021
        %v1023 = vpop.f32.mrf.mxu0
        %v1024 = vadd.f32 %v934, %v1023
        %1025 = vmatmul.bf16.gmra.mxu0 %v973
        %v1026 = vpop.f32.mrf.mxu0
        %v1027 = vadd.f32 %v937, %v1026
        %v1028 = vpop.f32.mrf.mxu0
        %v1029 = vadd.f32 %v939, %v1028
        %1030 = vmatmul.bf16.gmra.mxu0 %v976
        %v1031 = vpop.f32.mrf.mxu0
        %v1032 = vadd.f32 %v942, %v1031
        %v1033 = vpop.f32.mrf.mxu0
        %v1034 = vadd.f32 %v944, %v1033
        %1035 = vdwg.mxu0
        %s1036 = scalar_lea.vmem %s1, 160
        %v1037 = vld [vmem:[%s1036] sm:$0xf]
        %v1038 = vld [vmem:[%s1036 + $0x4] sm:$0xf]
        %v1039 = vld [vmem:[%s1036 + $0x8] sm:$0xf]
        %v1040 = vld [vmem:[%s1036 + $0xc] sm:$0xf]
        %v1041 = vld [vmem:[%s1036 + $0x10] sm:$0xf]
        %v1042 = vld [vmem:[%s1036 + $0x14] sm:$0xf]
        %v1043 = vld [vmem:[%s1036 + $0x18] sm:$0xf]
        %v1044 = vld [vmem:[%s1036 + $0x1c] sm:$0xf]
        %v1053 = vunpack.c.l.b16 %v1037
        %v1054 = vunpack.c.l.b16 %v1038
        %v1055 = vunpack.c.l.b16 %v1039
        %v1056 = vunpack.c.l.b16 %v1040
        %v1057 = vunpack.c.l.b16 %v1041
        %v1058 = vunpack.c.l.b16 %v1042
        %v1059 = vunpack.c.l.b16 %v1043
        %v1060 = vunpack.c.l.b16 %v1044
        %v1061 = vpack.c.b16 %v1054, %v1053
        %v1062 = vpack.c.b16 %v1056, %v1055
        %v1063 = vpack.c.b16 %v1058, %v1057
        %v1064 = vpack.c.b16 %v1060, %v1059
        %v1066 = vsel %vm562, %v1061, 0
        %v1069 = vsel %vm562, %v1062, 0
        %v1072 = vsel %vm562, %v1063, 0
        %v1075 = vsel %vm562, %v1064, 0
        %1077 = vmatpush.bf16.msra.mxu0 0
        %1078 = vmatpush.bf16.msra.mxu0 0
        %1079 = vmatpush.bf16.msra.mxu0 0
        %1080 = vmatpush.bf16.msra.mxu0 0
        %1081 = vmatpush.bf16.msra.mxu0 %v523
        %1082 = vmatpush.bf16.msra.mxu0 %v521
        %1083 = vmatpush.bf16.msra.mxu0 %v519
        %1084 = vmatpush.bf16.msra.mxu0 %v517
        %1085 = vmatmul.bf16.gmra.mxu0 %v1066
        %v1086 = vpop.f32.mrf.mxu0
        %v1087 = vadd.f32 0.0, %v1086
        %v1088 = vpop.f32.mrf.mxu0
        %v1089 = vadd.f32 0.0, %v1088
        %1090 = vmatmul.bf16.gmra.mxu0 %v1069
        %v1091 = vpop.f32.mrf.mxu0
        %v1092 = vadd.f32 0.0, %v1091
        %v1093 = vpop.f32.mrf.mxu0
        %v1094 = vadd.f32 0.0, %v1093
        %1095 = vmatmul.bf16.gmra.mxu0 %v1072
        %v1096 = vpop.f32.mrf.mxu0
        %v1097 = vadd.f32 0.0, %v1096
        %v1098 = vpop.f32.mrf.mxu0
        %v1099 = vadd.f32 0.0, %v1098
        %1100 = vmatmul.bf16.gmra.mxu0 %v1075
        %v1101 = vpop.f32.mrf.mxu0
        %v1102 = vadd.f32 0.0, %v1101
        %v1103 = vpop.f32.mrf.mxu0
        %v1104 = vadd.f32 0.0, %v1103
        %1105 = vdwg.mxu0
        %1106 = vmatpush.bf16.msra.mxu0 0
        %1107 = vmatpush.bf16.msra.mxu0 0
        %1108 = vmatpush.bf16.msra.mxu0 0
        %1109 = vmatpush.bf16.msra.mxu0 0
        %1110 = vmatpush.bf16.msra.mxu0 %v524
        %1111 = vmatpush.bf16.msra.mxu0 %v522
        %1112 = vmatpush.bf16.msra.mxu0 %v520
        %1113 = vmatpush.bf16.msra.mxu0 %v518
        %1114 = vmatmul.bf16.gmra.mxu0 %v1066
        %v1115 = vpop.f32.mrf.mxu0
        %v1116 = vadd.f32 0.0, %v1115
        %v1117 = vpop.f32.mrf.mxu0
        %v1118 = vadd.f32 0.0, %v1117
        %1119 = vmatmul.bf16.gmra.mxu0 %v1069
        %v1120 = vpop.f32.mrf.mxu0
        %v1121 = vadd.f32 0.0, %v1120
        %v1122 = vpop.f32.mrf.mxu0
        %v1123 = vadd.f32 0.0, %v1122
        %1124 = vmatmul.bf16.gmra.mxu0 %v1072
        %v1125 = vpop.f32.mrf.mxu0
        %v1126 = vadd.f32 0.0, %v1125
        %v1127 = vpop.f32.mrf.mxu0
        %v1128 = vadd.f32 0.0, %v1127
        %1129 = vmatmul.bf16.gmra.mxu0 %v1075
        %v1130 = vpop.f32.mrf.mxu0
        %v1131 = vadd.f32 0.0, %v1130
        %v1132 = vpop.f32.mrf.mxu0
        %v1133 = vadd.f32 0.0, %v1132
        %1134 = vdwg.mxu0
        %v1135 = vadd.f32 %v988, %v1087
        %v1136 = vadd.f32 %v1017, %v1116
        %v1137 = vadd.f32 %v990, %v1089
        %v1138 = vadd.f32 %v1019, %v1118
        %v1139 = vadd.f32 %v993, %v1092
        %v1140 = vadd.f32 %v1022, %v1121
        %v1141 = vadd.f32 %v995, %v1094
        %v1142 = vadd.f32 %v1024, %v1123
        %v1143 = vadd.f32 %v998, %v1097
        %v1144 = vadd.f32 %v1027, %v1126
        %v1145 = vadd.f32 %v1000, %v1099
        %v1146 = vadd.f32 %v1029, %v1128
        %v1147 = vadd.f32 %v1003, %v1102
        %v1148 = vadd.f32 %v1032, %v1131
        %v1149 = vadd.f32 %v1005, %v1104
        %v1150 = vadd.f32 %v1034, %v1133
        %s1151 = scalar_lea.vmem %s1, 192
        %v1152 = vld [vmem:[%s1151] sm:$0xf]
        %v1153 = vld [vmem:[%s1151 + $0x4] sm:$0xf]
        %v1154 = vld [vmem:[%s1151 + $0x8] sm:$0xf]
        %v1155 = vld [vmem:[%s1151 + $0xc] sm:$0xf]
        %v1156 = vld [vmem:[%s1151 + $0x10] sm:$0xf]
        %v1157 = vld [vmem:[%s1151 + $0x14] sm:$0xf]
        %v1158 = vld [vmem:[%s1151 + $0x18] sm:$0xf]
        %v1159 = vld [vmem:[%s1151 + $0x1c] sm:$0xf]
        %s1160 = scalar_lea.vmem %s1, 224
        %v1161 = vld [vmem:[%s1160] sm:$0xf]
        %v1162 = vld [vmem:[%s1160 + $0x4] sm:$0xf]
        %v1163 = vld [vmem:[%s1160 + $0x8] sm:$0xf]
        %v1164 = vld [vmem:[%s1160 + $0xc] sm:$0xf]
        %v1165 = vld [vmem:[%s1160 + $0x10] sm:$0xf]
        %v1166 = vld [vmem:[%s1160 + $0x14] sm:$0xf]
        %v1167 = vld [vmem:[%s1160 + $0x18] sm:$0xf]
        %v1168 = vld [vmem:[%s1160 + $0x1c] sm:$0xf]
        %v1177 = vunpack.c.l.b16 %v1161
        %v1178 = vunpack.c.l.b16 %v1162
        %v1179 = vunpack.c.l.b16 %v1163
        %v1180 = vunpack.c.l.b16 %v1164
        %v1181 = vunpack.c.l.b16 %v1165
        %v1182 = vunpack.c.l.b16 %v1166
        %v1183 = vunpack.c.l.b16 %v1167
        %v1184 = vunpack.c.l.b16 %v1168
        %v1185 = vpack.c.b16 %v1178, %v1177
        %v1186 = vpack.c.b16 %v1180, %v1179
        %v1187 = vpack.c.b16 %v1182, %v1181
        %v1188 = vpack.c.b16 %v1184, %v1183
        %v1190 = vsel %vm562, %v1185, 0
        %v1193 = vsel %vm562, %v1186, 0
        %v1196 = vsel %vm562, %v1187, 0
        %v1199 = vsel %vm562, %v1188, 0
        %1201 = vmatpush.bf16.msra.mxu0 0
        %1202 = vmatpush.bf16.msra.mxu0 0
        %1203 = vmatpush.bf16.msra.mxu0 0
        %1204 = vmatpush.bf16.msra.mxu0 0
        %1205 = vmatpush.bf16.msra.mxu0 %v515
        %1206 = vmatpush.bf16.msra.mxu0 %v513
        %1207 = vmatpush.bf16.msra.mxu0 %v511
        %1208 = vmatpush.bf16.msra.mxu0 %v509
        %1209 = vmatmul.bf16.gmra.mxu0 %v1190
        %v1210 = vpop.f32.mrf.mxu0
        %v1211 = vadd.f32 0.0, %v1210
        %v1212 = vpop.f32.mrf.mxu0
        %v1213 = vadd.f32 0.0, %v1212
        %1214 = vmatmul.bf16.gmra.mxu0 %v1193
        %v1215 = vpop.f32.mrf.mxu0
        %v1216 = vadd.f32 0.0, %v1215
        %v1217 = vpop.f32.mrf.mxu0
        %v1218 = vadd.f32 0.0, %v1217
        %1219 = vmatmul.bf16.gmra.mxu0 %v1196
        %v1220 = vpop.f32.mrf.mxu0
        %v1221 = vadd.f32 0.0, %v1220
        %v1222 = vpop.f32.mrf.mxu0
        %v1223 = vadd.f32 0.0, %v1222
        %1224 = vmatmul.bf16.gmra.mxu0 %v1199
        %v1225 = vpop.f32.mrf.mxu0
        %v1226 = vadd.f32 0.0, %v1225
        %v1227 = vpop.f32.mrf.mxu0
        %v1228 = vadd.f32 0.0, %v1227
        %1229 = vdwg.mxu0
        %1230 = vmatpush.bf16.msra.mxu0 0
        %1231 = vmatpush.bf16.msra.mxu0 0
        %1232 = vmatpush.bf16.msra.mxu0 0
        %1233 = vmatpush.bf16.msra.mxu0 0
        %1234 = vmatpush.bf16.msra.mxu0 %v516
        %1235 = vmatpush.bf16.msra.mxu0 %v514
        %1236 = vmatpush.bf16.msra.mxu0 %v512
        %1237 = vmatpush.bf16.msra.mxu0 %v510
        %1238 = vmatmul.bf16.gmra.mxu0 %v1190
        %v1239 = vpop.f32.mrf.mxu0
        %v1240 = vadd.f32 0.0, %v1239
        %v1241 = vpop.f32.mrf.mxu0
        %v1242 = vadd.f32 0.0, %v1241
        %1243 = vmatmul.bf16.gmra.mxu0 %v1193
        %v1244 = vpop.f32.mrf.mxu0
        %v1245 = vadd.f32 0.0, %v1244
        %v1246 = vpop.f32.mrf.mxu0
        %v1247 = vadd.f32 0.0, %v1246
        %1248 = vmatmul.bf16.gmra.mxu0 %v1196
        %v1249 = vpop.f32.mrf.mxu0
        %v1250 = vadd.f32 0.0, %v1249
        %v1251 = vpop.f32.mrf.mxu0
        %v1252 = vadd.f32 0.0, %v1251
        %1253 = vmatmul.bf16.gmra.mxu0 %v1199
        %v1254 = vpop.f32.mrf.mxu0
        %v1255 = vadd.f32 0.0, %v1254
        %v1256 = vpop.f32.mrf.mxu0
        %v1257 = vadd.f32 0.0, %v1256
        %1258 = vdwg.mxu0
        %v1267 = vunpack.c.l.b16 %v1152
        %v1268 = vunpack.c.l.b16 %v1153
        %v1269 = vunpack.c.l.b16 %v1154
        %v1270 = vunpack.c.l.b16 %v1155
        %v1271 = vunpack.c.l.b16 %v1156
        %v1272 = vunpack.c.l.b16 %v1157
        %v1273 = vunpack.c.l.b16 %v1158
        %v1274 = vunpack.c.l.b16 %v1159
        %v1275 = vpack.c.b16 %v1268, %v1267
        %v1276 = vpack.c.b16 %v1270, %v1269
        %v1277 = vpack.c.b16 %v1272, %v1271
        %v1278 = vpack.c.b16 %v1274, %v1273
        %v1280 = vsel %vm562, %v1275, 0
        %v1283 = vsel %vm562, %v1276, 0
        %v1286 = vsel %vm562, %v1277, 0
        %v1289 = vsel %vm562, %v1278, 0
        %1291 = vmatpush.bf16.msra.mxu0 0
        %1292 = vmatpush.bf16.msra.mxu0 0
        %1293 = vmatpush.bf16.msra.mxu0 0
        %1294 = vmatpush.bf16.msra.mxu0 0
        %1295 = vmatpush.bf16.msra.mxu0 %v507
        %1296 = vmatpush.bf16.msra.mxu0 %v505
        %1297 = vmatpush.bf16.msra.mxu0 %v503
        %1298 = vmatpush.bf16.msra.mxu0 %v501
        %1299 = vmatmul.bf16.gmra.mxu0 %v1280
        %v1300 = vpop.f32.mrf.mxu0
        %v1301 = vadd.f32 %v1211, %v1300
        %v1302 = vpop.f32.mrf.mxu0
        %v1303 = vadd.f32 %v1213, %v1302
        %1304 = vmatmul.bf16.gmra.mxu0 %v1283
        %v1305 = vpop.f32.mrf.mxu0
        %v1306 = vadd.f32 %v1216, %v1305
        %v1307 = vpop.f32.mrf.mxu0
        %v1308 = vadd.f32 %v1218, %v1307
        %1309 = vmatmul.bf16.gmra.mxu0 %v1286
        %v1310 = vpop.f32.mrf.mxu0
        %v1311 = vadd.f32 %v1221, %v1310
        %v1312 = vpop.f32.mrf.mxu0
        %v1313 = vadd.f32 %v1223, %v1312
        %1314 = vmatmul.bf16.gmra.mxu0 %v1289
        %v1315 = vpop.f32.mrf.mxu0
        %v1316 = vadd.f32 %v1226, %v1315
        %v1317 = vpop.f32.mrf.mxu0
        %v1318 = vadd.f32 %v1228, %v1317
        %1319 = vdwg.mxu0
        %1320 = vmatpush.bf16.msra.mxu0 0
        %1321 = vmatpush.bf16.msra.mxu0 0
        %1322 = vmatpush.bf16.msra.mxu0 0
        %1323 = vmatpush.bf16.msra.mxu0 0
        %1324 = vmatpush.bf16.msra.mxu0 %v508
        %1325 = vmatpush.bf16.msra.mxu0 %v506
        %1326 = vmatpush.bf16.msra.mxu0 %v504
        %1327 = vmatpush.bf16.msra.mxu0 %v502
        %1328 = vmatmul.bf16.gmra.mxu0 %v1280
        %v1329 = vpop.f32.mrf.mxu0
        %v1330 = vadd.f32 %v1240, %v1329
        %v1331 = vpop.f32.mrf.mxu0
        %v1332 = vadd.f32 %v1242, %v1331
        %1333 = vmatmul.bf16.gmra.mxu0 %v1283
        %v1334 = vpop.f32.mrf.mxu0
        %v1335 = vadd.f32 %v1245, %v1334
        %v1336 = vpop.f32.mrf.mxu0
        %v1337 = vadd.f32 %v1247, %v1336
        %1338 = vmatmul.bf16.gmra.mxu0 %v1286
        %v1339 = vpop.f32.mrf.mxu0
        %v1340 = vadd.f32 %v1250, %v1339
        %v1341 = vpop.f32.mrf.mxu0
        %v1342 = vadd.f32 %v1252, %v1341
        %1343 = vmatmul.bf16.gmra.mxu0 %v1289
        %v1344 = vpop.f32.mrf.mxu0
        %v1345 = vadd.f32 %v1255, %v1344
        %v1346 = vpop.f32.mrf.mxu0
        %v1347 = vadd.f32 %v1257, %v1346
        %1348 = vdwg.mxu0
        %s1349 = scalar_lea.vmem %s1, 256
        %v1350 = vld [vmem:[%s1349] sm:$0xf]
        %v1351 = vld [vmem:[%s1349 + $0x4] sm:$0xf]
        %v1352 = vld [vmem:[%s1349 + $0x8] sm:$0xf]
        %v1353 = vld [vmem:[%s1349 + $0xc] sm:$0xf]
        %v1354 = vld [vmem:[%s1349 + $0x10] sm:$0xf]
        %v1355 = vld [vmem:[%s1349 + $0x14] sm:$0xf]
        %v1356 = vld [vmem:[%s1349 + $0x18] sm:$0xf]
        %v1357 = vld [vmem:[%s1349 + $0x1c] sm:$0xf]
        %v1366 = vunpack.c.l.b16 %v1350
        %v1367 = vunpack.c.l.b16 %v1351
        %v1368 = vunpack.c.l.b16 %v1352
        %v1369 = vunpack.c.l.b16 %v1353
        %v1370 = vunpack.c.l.b16 %v1354
        %v1371 = vunpack.c.l.b16 %v1355
        %v1372 = vunpack.c.l.b16 %v1356
        %v1373 = vunpack.c.l.b16 %v1357
        %v1374 = vpack.c.b16 %v1367, %v1366
        %v1375 = vpack.c.b16 %v1369, %v1368
        %v1376 = vpack.c.b16 %v1371, %v1370
        %v1377 = vpack.c.b16 %v1373, %v1372
        %v1379 = vsel %vm562, %v1374, 0
        %v1382 = vsel %vm562, %v1375, 0
        %v1385 = vsel %vm562, %v1376, 0
        %v1388 = vsel %vm562, %v1377, 0
        %1390 = vmatpush.bf16.msra.mxu0 0
        %1391 = vmatpush.bf16.msra.mxu0 0
        %1392 = vmatpush.bf16.msra.mxu0 0
        %1393 = vmatpush.bf16.msra.mxu0 0
        %1394 = vmatpush.bf16.msra.mxu0 %v523
        %1395 = vmatpush.bf16.msra.mxu0 %v521
        %1396 = vmatpush.bf16.msra.mxu0 %v519
        %1397 = vmatpush.bf16.msra.mxu0 %v517
        %1398 = vmatmul.bf16.gmra.mxu0 %v1379
        %v1399 = vpop.f32.mrf.mxu0
        %v1400 = vadd.f32 0.0, %v1399
        %v1401 = vpop.f32.mrf.mxu0
        %v1402 = vadd.f32 0.0, %v1401
        %1403 = vmatmul.bf16.gmra.mxu0 %v1382
        %v1404 = vpop.f32.mrf.mxu0
        %v1405 = vadd.f32 0.0, %v1404
        %v1406 = vpop.f32.mrf.mxu0
        %v1407 = vadd.f32 0.0, %v1406
        %1408 = vmatmul.bf16.gmra.mxu0 %v1385
        %v1409 = vpop.f32.mrf.mxu0
        %v1410 = vadd.f32 0.0, %v1409
        %v1411 = vpop.f32.mrf.mxu0
        %v1412 = vadd.f32 0.0, %v1411
        %1413 = vmatmul.bf16.gmra.mxu0 %v1388
        %v1414 = vpop.f32.mrf.mxu0
        %v1415 = vadd.f32 0.0, %v1414
        %v1416 = vpop.f32.mrf.mxu0
        %v1417 = vadd.f32 0.0, %v1416
        %1418 = vdwg.mxu0
        %1419 = vmatpush.bf16.msra.mxu0 0
        %1420 = vmatpush.bf16.msra.mxu0 0
        %1421 = vmatpush.bf16.msra.mxu0 0
        %1422 = vmatpush.bf16.msra.mxu0 0
        %1423 = vmatpush.bf16.msra.mxu0 %v524
        %1424 = vmatpush.bf16.msra.mxu0 %v522
        %1425 = vmatpush.bf16.msra.mxu0 %v520
        %1426 = vmatpush.bf16.msra.mxu0 %v518
        %1427 = vmatmul.bf16.gmra.mxu0 %v1379
        %v1428 = vpop.f32.mrf.mxu0
        %v1429 = vadd.f32 0.0, %v1428
        %v1430 = vpop.f32.mrf.mxu0
        %v1431 = vadd.f32 0.0, %v1430
        %1432 = vmatmul.bf16.gmra.mxu0 %v1382
        %v1433 = vpop.f32.mrf.mxu0
        %v1434 = vadd.f32 0.0, %v1433
        %v1435 = vpop.f32.mrf.mxu0
        %v1436 = vadd.f32 0.0, %v1435
        %1437 = vmatmul.bf16.gmra.mxu0 %v1385
        %v1438 = vpop.f32.mrf.mxu0
        %v1439 = vadd.f32 0.0, %v1438
        %v1440 = vpop.f32.mrf.mxu0
        %v1441 = vadd.f32 0.0, %v1440
        %1442 = vmatmul.bf16.gmra.mxu0 %v1388
        %v1443 = vpop.f32.mrf.mxu0
        %v1444 = vadd.f32 0.0, %v1443
        %v1445 = vpop.f32.mrf.mxu0
        %v1446 = vadd.f32 0.0, %v1445
        %1447 = vdwg.mxu0
        %v1448 = vadd.f32 %v1301, %v1400
        %v1449 = vadd.f32 %v1330, %v1429
        %v1450 = vadd.f32 %v1303, %v1402
        %v1451 = vadd.f32 %v1332, %v1431
        %v1452 = vadd.f32 %v1306, %v1405
        %v1453 = vadd.f32 %v1335, %v1434
        %v1454 = vadd.f32 %v1308, %v1407
        %v1455 = vadd.f32 %v1337, %v1436
        %v1456 = vadd.f32 %v1311, %v1410
        %v1457 = vadd.f32 %v1340, %v1439
        %v1458 = vadd.f32 %v1313, %v1412
        %v1459 = vadd.f32 %v1342, %v1441
        %v1460 = vadd.f32 %v1316, %v1415
        %v1461 = vadd.f32 %v1345, %v1444
        %v1462 = vadd.f32 %v1318, %v1417
        %v1463 = vadd.f32 %v1347, %v1446
        %1464 = vrot.lane.b32.xlu0 %v822, 16
        %v1465 = vpop.permute.xlu0 %1464
        %1466 = vrot.lane.b32.xlu0 %v824, 16
        %v1467 = vpop.permute.xlu0 %1466
        %1468 = vrot.lane.b32.xlu0 %v826, 16
        %v1469 = vpop.permute.xlu0 %1468
        %1470 = vrot.lane.b32.xlu0 %v828, 16
        %v1471 = vpop.permute.xlu0 %1470
        %1472 = vrot.lane.b32.xlu0 %v830, 16
        %v1473 = vpop.permute.xlu0 %1472
        %1474 = vrot.lane.b32.xlu0 %v832, 16
        %v1475 = vpop.permute.xlu0 %1474
        %1476 = vrot.lane.b32.xlu0 %v834, 16
        %v1477 = vpop.permute.xlu0 %1476
        %1478 = vrot.lane.b32.xlu0 %v836, 16
        %v1479 = vpop.permute.xlu0 %1478
        %1480 = vrot.lane.b32.xlu0 %v823, 16
        %v1481 = vpop.permute.xlu0 %1480
        %1482 = vrot.lane.b32.xlu0 %v825, 16
        %v1483 = vpop.permute.xlu0 %1482
        %1484 = vrot.lane.b32.xlu0 %v827, 16
        %v1485 = vpop.permute.xlu0 %1484
        %1486 = vrot.lane.b32.xlu0 %v829, 16
        %v1487 = vpop.permute.xlu0 %1486
        %1488 = vrot.lane.b32.xlu0 %v831, 16
        %v1489 = vpop.permute.xlu0 %1488
        %1490 = vrot.lane.b32.xlu0 %v833, 16
        %v1491 = vpop.permute.xlu0 %1490
        %1492 = vrot.lane.b32.xlu0 %v835, 16
        %v1493 = vpop.permute.xlu0 %1492
        %1494 = vrot.lane.b32.xlu0 %v837, 16
        %v1495 = vpop.permute.xlu0 %1494
        %vm1496 = vcmp.lt.s32.totalorder %v273, 16
        %v1497 = vsel %vm1496, %v1465, %v1481
        %v1498 = vsel %vm1496, %v1467, %v1483
        %v1499 = vsel %vm1496, %v1469, %v1485
        %v1500 = vsel %vm1496, %v1471, %v1487
        %v1501 = vsel %vm1496, %v1473, %v1489
        %v1502 = vsel %vm1496, %v1475, %v1491
        %v1503 = vsel %vm1496, %v1477, %v1493
        %v1504 = vsel %vm1496, %v1479, %v1495
        %v1505 = vsel %vm1496, %v1481, %v1465
        %v1506 = vsel %vm1496, %v1483, %v1467
        %v1507 = vsel %vm1496, %v1485, %v1469
        %v1508 = vsel %vm1496, %v1487, %v1471
        %v1509 = vsel %vm1496, %v1489, %v1473
        %v1510 = vsel %vm1496, %v1491, %v1475
        %v1511 = vsel %vm1496, %v1493, %v1477
        %v1512 = vsel %vm1496, %v1495, %v1479
        %v1513 = vsel %vm327, 1, 0
        %v1514 = vsel %vm328, 1, 0
        %vm1515 = vcmp.eq.s32.totalorder %v1513, 1
        %vm1516 = vcmp.eq.s32.totalorder %v1514, 1
        %v1517 = vsel %vm1515, %v1505, 0.0
        %v1518 = vsel %vm1516, %v1497, 0.0
        %v1519 = vsel %vm1515, %v1506, 0.0
        %v1520 = vsel %vm1516, %v1498, 0.0
        %v1521 = vsel %vm1515, %v1507, 0.0
        %v1522 = vsel %vm1516, %v1499, 0.0
        %v1523 = vsel %vm1515, %v1508, 0.0
        %v1524 = vsel %vm1516, %v1500, 0.0
        %v1525 = vsel %vm1515, %v1509, 0.0
        %v1526 = vsel %vm1516, %v1501, 0.0
        %v1527 = vsel %vm1515, %v1510, 0.0
        %v1528 = vsel %vm1516, %v1502, 0.0
        %v1529 = vsel %vm1515, %v1511, 0.0
        %v1530 = vsel %vm1516, %v1503, 0.0
        %v1531 = vsel %vm1515, %v1512, 0.0
        %v1532 = vsel %vm1516, %v1504, 0.0
        %v1533 = vadd.f32 %v1135, %v1517
        %v1534 = vadd.f32 %v1136, %v1518
        %v1535 = vadd.f32 %v1137, %v1519
        %v1536 = vadd.f32 %v1138, %v1520
        %v1537 = vadd.f32 %v1139, %v1521
        %v1538 = vadd.f32 %v1140, %v1522
        %v1539 = vadd.f32 %v1141, %v1523
        %v1540 = vadd.f32 %v1142, %v1524
        %v1541 = vadd.f32 %v1143, %v1525
        %v1542 = vadd.f32 %v1144, %v1526
        %v1543 = vadd.f32 %v1145, %v1527
        %v1544 = vadd.f32 %v1146, %v1528
        %v1545 = vadd.f32 %v1147, %v1529
        %v1546 = vadd.f32 %v1148, %v1530
        %v1547 = vadd.f32 %v1149, %v1531
        %v1548 = vadd.f32 %v1150, %v1532
        %1549 = vrot.lane.b32.xlu0 %v1448, 112
        %v1550 = vpop.permute.xlu0 %1549
        %1551 = vrot.lane.b32.xlu0 %v1450, 112
        %v1552 = vpop.permute.xlu0 %1551
        %1553 = vrot.lane.b32.xlu0 %v1452, 112
        %v1554 = vpop.permute.xlu0 %1553
        %1555 = vrot.lane.b32.xlu0 %v1454, 112
        %v1556 = vpop.permute.xlu0 %1555
        %1557 = vrot.lane.b32.xlu0 %v1456, 112
        %v1558 = vpop.permute.xlu0 %1557
        %1559 = vrot.lane.b32.xlu0 %v1458, 112
        %v1560 = vpop.permute.xlu0 %1559
        %1561 = vrot.lane.b32.xlu0 %v1460, 112
        %v1562 = vpop.permute.xlu0 %1561
        %1563 = vrot.lane.b32.xlu0 %v1462, 112
        %v1564 = vpop.permute.xlu0 %1563
        %1565 = vrot.lane.b32.xlu0 %v1449, 112
        %v1566 = vpop.permute.xlu0 %1565
        %1567 = vrot.lane.b32.xlu0 %v1451, 112
        %v1568 = vpop.permute.xlu0 %1567
        %1569 = vrot.lane.b32.xlu0 %v1453, 112
        %v1570 = vpop.permute.xlu0 %1569
        %1571 = vrot.lane.b32.xlu0 %v1455, 112
        %v1572 = vpop.permute.xlu0 %1571
        %1573 = vrot.lane.b32.xlu0 %v1457, 112
        %v1574 = vpop.permute.xlu0 %1573
        %1575 = vrot.lane.b32.xlu0 %v1459, 112
        %v1576 = vpop.permute.xlu0 %1575
        %1577 = vrot.lane.b32.xlu0 %v1461, 112
        %v1578 = vpop.permute.xlu0 %1577
        %1579 = vrot.lane.b32.xlu0 %v1463, 112
        %v1580 = vpop.permute.xlu0 %1579
        %vm1581 = vcmp.lt.s32.totalorder %v273, 112
        %v1582 = vsel %vm1581, %v1550, %v1566
        %v1583 = vsel %vm1581, %v1552, %v1568
        %v1584 = vsel %vm1581, %v1554, %v1570
        %v1585 = vsel %vm1581, %v1556, %v1572
        %v1586 = vsel %vm1581, %v1558, %v1574
        %v1587 = vsel %vm1581, %v1560, %v1576
        %v1588 = vsel %vm1581, %v1562, %v1578
        %v1589 = vsel %vm1581, %v1564, %v1580
        %v1590 = vsel %vm1581, %v1566, %v1550
        %v1591 = vsel %vm1581, %v1568, %v1552
        %v1592 = vsel %vm1581, %v1570, %v1554
        %v1593 = vsel %vm1581, %v1572, %v1556
        %v1594 = vsel %vm1581, %v1574, %v1558
        %v1595 = vsel %vm1581, %v1576, %v1560
        %v1596 = vsel %vm1581, %v1578, %v1562
        %v1597 = vsel %vm1581, %v1580, %v1564
        %v1598 = vsel %vm329, 1, 0
        %v1599 = vsel %vm330, 1, 0
        %vm1600 = vcmp.eq.s32.totalorder %v1598, 1
        %vm1601 = vcmp.eq.s32.totalorder %v1599, 1
        %v1602 = vsel %vm1600, %v1582, 0.0
        %v1603 = vsel %vm1601, %v1590, 0.0
        %v1604 = vsel %vm1600, %v1583, 0.0
        %v1605 = vsel %vm1601, %v1591, 0.0
        %v1606 = vsel %vm1600, %v1584, 0.0
        %v1607 = vsel %vm1601, %v1592, 0.0
        %v1608 = vsel %vm1600, %v1585, 0.0
        %v1609 = vsel %vm1601, %v1593, 0.0
        %v1610 = vsel %vm1600, %v1586, 0.0
        %v1611 = vsel %vm1601, %v1594, 0.0
        %v1612 = vsel %vm1600, %v1587, 0.0
        %v1613 = vsel %vm1601, %v1595, 0.0
        %v1614 = vsel %vm1600, %v1588, 0.0
        %v1615 = vsel %vm1601, %v1596, 0.0
        %v1616 = vsel %vm1600, %v1589, 0.0
        %v1617 = vsel %vm1601, %v1597, 0.0
        %v1618 = vadd.f32 %v1533, %v1602
        %v1619 = vadd.f32 %v1534, %v1603
        %v1620 = vadd.f32 %v1535, %v1604
        %v1621 = vadd.f32 %v1536, %v1605
        %v1622 = vadd.f32 %v1537, %v1606
        %v1623 = vadd.f32 %v1538, %v1607
        %v1624 = vadd.f32 %v1539, %v1608
        %v1625 = vadd.f32 %v1540, %v1609
        %v1626 = vadd.f32 %v1541, %v1610
        %v1627 = vadd.f32 %v1542, %v1611
        %v1628 = vadd.f32 %v1543, %v1612
        %v1629 = vadd.f32 %v1544, %v1613
        %v1630 = vadd.f32 %v1545, %v1614
        %v1631 = vadd.f32 %v1546, %v1615
        %v1632 = vadd.f32 %v1547, %v1616
        %v1633 = vadd.f32 %v1548, %v1617
        %1635 = vset.pattern.permute.xlu0 0
        %1636 = vperm.xlu0 %1635, %v331
        %v1637 = vpop.permute.xlu0 %1636
        %1640 = vset.pattern.permute.xlu0 0
        %1641 = vperm.xlu0 %1640, %v332
        %v1642 = vpop.permute.xlu0 %1641
        %1645 = vset.pattern.permute.xlu0 0
        %1646 = vperm.xlu0 %1645, %v333
        %v1647 = vpop.permute.xlu0 %1646
        %1650 = vset.pattern.permute.xlu0 0
        %1651 = vperm.xlu0 %1650, %v334
        %v1652 = vpop.permute.xlu0 %1651
        %1655 = vset.pattern.permute.xlu0 0
        %1656 = vperm.xlu0 %1655, %v335
        %v1657 = vpop.permute.xlu0 %1656
        %1660 = vset.pattern.permute.xlu0 0
        %1661 = vperm.xlu0 %1660, %v336
        %v1662 = vpop.permute.xlu0 %1661
        %1665 = vset.pattern.permute.xlu0 0
        %1666 = vperm.xlu0 %1665, %v337
        %v1667 = vpop.permute.xlu0 %1666
        %1670 = vset.pattern.permute.xlu0 0
        %1671 = vperm.xlu0 %1670, %v338
        %v1672 = vpop.permute.xlu0 %1671
        %v1674 = vadd.f32 %v1618, %v1637
        %v1675 = vadd.f32 %v1619, %v1637
        %v1676 = vadd.f32 %v1620, %v1642
        %v1677 = vadd.f32 %v1621, %v1642
        %v1678 = vadd.f32 %v1622, %v1647
        %v1679 = vadd.f32 %v1623, %v1647
        %v1680 = vadd.f32 %v1624, %v1652
        %v1681 = vadd.f32 %v1625, %v1652
        %v1682 = vadd.f32 %v1626, %v1657
        %v1683 = vadd.f32 %v1627, %v1657
        %v1684 = vadd.f32 %v1628, %v1662
        %v1685 = vadd.f32 %v1629, %v1662
        %v1686 = vadd.f32 %v1630, %v1667
        %v1687 = vadd.f32 %v1631, %v1667
        %v1688 = vadd.f32 %v1632, %v1672
        %v1689 = vadd.f32 %v1633, %v1672
        %v1690 = vmax.f32 %v1674, 0.0
        %v1691 = vmax.f32 %v1675, 0.0
        %v1692 = vmax.f32 %v1676, 0.0
        %v1693 = vmax.f32 %v1677, 0.0
        %v1694 = vmax.f32 %v1678, 0.0
        %v1695 = vmax.f32 %v1679, 0.0
        %v1696 = vmax.f32 %v1680, 0.0
        %v1697 = vmax.f32 %v1681, 0.0
        %v1698 = vmax.f32 %v1682, 0.0
        %v1699 = vmax.f32 %v1683, 0.0
        %v1700 = vmax.f32 %v1684, 0.0
        %v1701 = vmax.f32 %v1685, 0.0
        %v1702 = vmax.f32 %v1686, 0.0
        %v1703 = vmax.f32 %v1687, 0.0
        %v1704 = vmax.f32 %v1688, 0.0
        %v1705 = vmax.f32 %v1689, 0.0
        %v1706 = vsel %vm365, %v1690, 0.0
        %v1707 = vsel %vm366, %v1691, 0.0
        %v1708 = vsel %vm365, %v1692, 0.0
        %v1709 = vsel %vm366, %v1693, 0.0
        %v1710 = vsel %vm365, %v1694, 0.0
        %v1711 = vsel %vm366, %v1695, 0.0
        %v1712 = vsel %vm365, %v1696, 0.0
        %v1713 = vsel %vm366, %v1697, 0.0
        %v1714 = vsel %vm365, %v1698, 0.0
        %v1715 = vsel %vm366, %v1699, 0.0
        %v1716 = vsel %vm365, %v1700, 0.0
        %v1717 = vsel %vm366, %v1701, 0.0
        %v1718 = vsel %vm365, %v1702, 0.0
        %v1719 = vsel %vm366, %v1703, 0.0
        %v1720 = vsel %vm365, %v1704, 0.0
        %v1721 = vsel %vm366, %v1705, 0.0
        %1722 = vrot.lane.b32.xlu0 %v1706, 127
        %v1723 = vpop.permute.xlu0 %1722
        %1724 = vrot.lane.b32.xlu0 %v1708, 127
        %v1725 = vpop.permute.xlu0 %1724
        %1726 = vrot.lane.b32.xlu0 %v1710, 127
        %v1727 = vpop.permute.xlu0 %1726
        %1728 = vrot.lane.b32.xlu0 %v1712, 127
        %v1729 = vpop.permute.xlu0 %1728
        %1730 = vrot.lane.b32.xlu0 %v1714, 127
        %v1731 = vpop.permute.xlu0 %1730
        %1732 = vrot.lane.b32.xlu0 %v1716, 127
        %v1733 = vpop.permute.xlu0 %1732
        %1734 = vrot.lane.b32.xlu0 %v1718, 127
        %v1735 = vpop.permute.xlu0 %1734
        %1736 = vrot.lane.b32.xlu0 %v1720, 127
        %v1737 = vpop.permute.xlu0 %1736
        %1738 = vrot.lane.b32.xlu0 %v1707, 127
        %v1739 = vpop.permute.xlu0 %1738
        %1740 = vrot.lane.b32.xlu0 %v1709, 127
        %v1741 = vpop.permute.xlu0 %1740
        %1742 = vrot.lane.b32.xlu0 %v1711, 127
        %v1743 = vpop.permute.xlu0 %1742
        %1744 = vrot.lane.b32.xlu0 %v1713, 127
        %v1745 = vpop.permute.xlu0 %1744
        %1746 = vrot.lane.b32.xlu0 %v1715, 127
        %v1747 = vpop.permute.xlu0 %1746
        %1748 = vrot.lane.b32.xlu0 %v1717, 127
        %v1749 = vpop.permute.xlu0 %1748
        %1750 = vrot.lane.b32.xlu0 %v1719, 127
        %v1751 = vpop.permute.xlu0 %1750
        %1752 = vrot.lane.b32.xlu0 %v1721, 127
        %v1753 = vpop.permute.xlu0 %1752
        %v1754 = vsel %vm415, %v1723, %v1739
        %v1755 = vsel %vm415, %v1725, %v1741
        %v1756 = vsel %vm415, %v1727, %v1743
        %v1757 = vsel %vm415, %v1729, %v1745
        %v1758 = vsel %vm415, %v1731, %v1747
        %v1759 = vsel %vm415, %v1733, %v1749
        %v1760 = vsel %vm415, %v1735, %v1751
        %v1761 = vsel %vm415, %v1737, %v1753
        %v1762 = vsel %vm415, %v1739, %v1723
        %v1763 = vsel %vm415, %v1741, %v1725
        %v1764 = vsel %vm415, %v1743, %v1727
        %v1765 = vsel %vm415, %v1745, %v1729
        %v1766 = vsel %vm415, %v1747, %v1731
        %v1767 = vsel %vm415, %v1749, %v1733
        %v1768 = vsel %vm415, %v1751, %v1735
        %v1769 = vsel %vm415, %v1753, %v1737
        %v1770 = vsel %vm434, %v1690, 0.0
        %v1771 = vsel %vm435, %v1691, 0.0
        %v1772 = vsel %vm434, %v1692, 0.0
        %v1773 = vsel %vm435, %v1693, 0.0
        %v1774 = vsel %vm434, %v1694, 0.0
        %v1775 = vsel %vm435, %v1695, 0.0
        %v1776 = vsel %vm434, %v1696, 0.0
        %v1777 = vsel %vm435, %v1697, 0.0
        %v1778 = vsel %vm434, %v1698, 0.0
        %v1779 = vsel %vm435, %v1699, 0.0
        %v1780 = vsel %vm434, %v1700, 0.0
        %v1781 = vsel %vm435, %v1701, 0.0
        %v1782 = vsel %vm434, %v1702, 0.0
        %v1783 = vsel %vm435, %v1703, 0.0
        %v1784 = vsel %vm434, %v1704, 0.0
        %v1785 = vsel %vm435, %v1705, 0.0
        %1786 = vrot.lane.b32.xlu0 %v1770, 1
        %v1787 = vpop.permute.xlu0 %1786
        %1788 = vrot.lane.b32.xlu0 %v1772, 1
        %v1789 = vpop.permute.xlu0 %1788
        %1790 = vrot.lane.b32.xlu0 %v1774, 1
        %v1791 = vpop.permute.xlu0 %1790
        %1792 = vrot.lane.b32.xlu0 %v1776, 1
        %v1793 = vpop.permute.xlu0 %1792
        %1794 = vrot.lane.b32.xlu0 %v1778, 1
        %v1795 = vpop.permute.xlu0 %1794
        %1796 = vrot.lane.b32.xlu0 %v1780, 1
        %v1797 = vpop.permute.xlu0 %1796
        %1798 = vrot.lane.b32.xlu0 %v1782, 1
        %v1799 = vpop.permute.xlu0 %1798
        %1800 = vrot.lane.b32.xlu0 %v1784, 1
        %v1801 = vpop.permute.xlu0 %1800
        %1802 = vrot.lane.b32.xlu0 %v1771, 1
        %v1803 = vpop.permute.xlu0 %1802
        %1804 = vrot.lane.b32.xlu0 %v1773, 1
        %v1805 = vpop.permute.xlu0 %1804
        %1806 = vrot.lane.b32.xlu0 %v1775, 1
        %v1807 = vpop.permute.xlu0 %1806
        %1808 = vrot.lane.b32.xlu0 %v1777, 1
        %v1809 = vpop.permute.xlu0 %1808
        %1810 = vrot.lane.b32.xlu0 %v1779, 1
        %v1811 = vpop.permute.xlu0 %1810
        %1812 = vrot.lane.b32.xlu0 %v1781, 1
        %v1813 = vpop.permute.xlu0 %1812
        %1814 = vrot.lane.b32.xlu0 %v1783, 1
        %v1815 = vpop.permute.xlu0 %1814
        %1816 = vrot.lane.b32.xlu0 %v1785, 1
        %v1817 = vpop.permute.xlu0 %1816
        %v1818 = vsel %vm484, %v1787, %v1803
        %v1819 = vsel %vm484, %v1789, %v1805
        %v1820 = vsel %vm484, %v1791, %v1807
        %v1821 = vsel %vm484, %v1793, %v1809
        %v1822 = vsel %vm484, %v1795, %v1811
        %v1823 = vsel %vm484, %v1797, %v1813
        %v1824 = vsel %vm484, %v1799, %v1815
        %v1825 = vsel %vm484, %v1801, %v1817
        %v1826 = vsel %vm484, %v1803, %v1787
        %v1827 = vsel %vm484, %v1805, %v1789
        %v1828 = vsel %vm484, %v1807, %v1791
        %v1829 = vsel %vm484, %v1809, %v1793
        %v1830 = vsel %vm484, %v1811, %v1795
        %v1831 = vsel %vm484, %v1813, %v1797
        %v1832 = vsel %vm484, %v1815, %v1799
        %v1833 = vsel %vm484, %v1817, %v1801
        %v1834 = vpack.c.bf16 %v1827, %v1826
        %v1835 = vpack.c.bf16 %v1819, %v1818
        %v1836 = vpack.c.bf16 %v1829, %v1828
        %v1837 = vpack.c.bf16 %v1821, %v1820
        %v1838 = vpack.c.bf16 %v1831, %v1830
        %v1839 = vpack.c.bf16 %v1823, %v1822
        %v1840 = vpack.c.bf16 %v1833, %v1832
        %v1841 = vpack.c.bf16 %v1825, %v1824
        %v1842 = vpack.c.bf16 %v1692, %v1690
        %v1843 = vpack.c.bf16 %v1693, %v1691
        %v1844 = vpack.c.bf16 %v1696, %v1694
        %v1845 = vpack.c.bf16 %v1697, %v1695
        %v1846 = vpack.c.bf16 %v1700, %v1698
        %v1847 = vpack.c.bf16 %v1701, %v1699
        %v1848 = vpack.c.bf16 %v1704, %v1702
        %v1849 = vpack.c.bf16 %v1705, %v1703
        %v1850 = vpack.c.bf16 %v1755, %v1754
        %v1851 = vpack.c.bf16 %v1763, %v1762
        %v1852 = vpack.c.bf16 %v1757, %v1756
        %v1853 = vpack.c.bf16 %v1765, %v1764
        %v1854 = vpack.c.bf16 %v1759, %v1758
        %v1855 = vpack.c.bf16 %v1767, %v1766
        %v1856 = vpack.c.bf16 %v1761, %v1760
        %v1857 = vpack.c.bf16 %v1769, %v1768
        %v1858 = vld [vmem:[%s3] sm:$0xf]
        %v1859 = vld [vmem:[%s3 + $0x4] sm:$0xf]
        %v1860 = vld [vmem:[%s3 + $0x8] sm:$0xf]
        %v1861 = vld [vmem:[%s3 + $0xc] sm:$0xf]
        %v1862 = vld [vmem:[%s3 + $0x10] sm:$0xf]
        %v1863 = vld [vmem:[%s3 + $0x14] sm:$0xf]
        %v1864 = vld [vmem:[%s3 + $0x18] sm:$0xf]
        %v1865 = vld [vmem:[%s3 + $0x1c] sm:$0xf]
        %s1866 = scalar_lea.vmem %s3, 32
        %v1867 = vld [vmem:[%s1866] sm:$0xf]
        %v1868 = vld [vmem:[%s1866 + $0x4] sm:$0xf]
        %v1869 = vld [vmem:[%s1866 + $0x8] sm:$0xf]
        %v1870 = vld [vmem:[%s1866 + $0xc] sm:$0xf]
        %v1871 = vld [vmem:[%s1866 + $0x10] sm:$0xf]
        %v1872 = vld [vmem:[%s1866 + $0x14] sm:$0xf]
        %v1873 = vld [vmem:[%s1866 + $0x18] sm:$0xf]
        %v1874 = vld [vmem:[%s1866 + $0x1c] sm:$0xf]
        %v1883 = vunpack.c.l.b16 %v1867
        %v1884 = vunpack.c.l.b16 %v1868
        %v1885 = vunpack.c.l.b16 %v1869
        %v1886 = vunpack.c.l.b16 %v1870
        %v1887 = vunpack.c.l.b16 %v1871
        %v1888 = vunpack.c.l.b16 %v1872
        %v1889 = vunpack.c.l.b16 %v1873
        %v1890 = vunpack.c.l.b16 %v1874
        %v1891 = vpack.c.b16 %v1884, %v1883
        %v1892 = vpack.c.b16 %v1886, %v1885
        %v1893 = vpack.c.b16 %v1888, %v1887
        %v1894 = vpack.c.b16 %v1890, %v1889
        %v1896 = vsel %vm562, %v1891, 0
        %v1899 = vsel %vm562, %v1892, 0
        %v1902 = vsel %vm562, %v1893, 0
        %v1905 = vsel %vm562, %v1894, 0
        %1907 = vmatpush.bf16.msra.mxu0 0
        %1908 = vmatpush.bf16.msra.mxu0 0
        %1909 = vmatpush.bf16.msra.mxu0 0
        %1910 = vmatpush.bf16.msra.mxu0 0
        %1911 = vmatpush.bf16.msra.mxu0 %v1848
        %1912 = vmatpush.bf16.msra.mxu0 %v1846
        %1913 = vmatpush.bf16.msra.mxu0 %v1844
        %1914 = vmatpush.bf16.msra.mxu0 %v1842
        %1915 = vmatmul.bf16.gmra.mxu0 %v1896
        %v1916 = vpop.f32.mrf.mxu0
        %v1917 = vadd.f32 0.0, %v1916
        %v1918 = vpop.f32.mrf.mxu0
        %v1919 = vadd.f32 0.0, %v1918
        %1920 = vmatmul.bf16.gmra.mxu0 %v1899
        %v1921 = vpop.f32.mrf.mxu0
        %v1922 = vadd.f32 0.0, %v1921
        %v1923 = vpop.f32.mrf.mxu0
        %v1924 = vadd.f32 0.0, %v1923
        %1925 = vmatmul.bf16.gmra.mxu0 %v1902
        %v1926 = vpop.f32.mrf.mxu0
        %v1927 = vadd.f32 0.0, %v1926
        %v1928 = vpop.f32.mrf.mxu0
        %v1929 = vadd.f32 0.0, %v1928
        %1930 = vmatmul.bf16.gmra.mxu0 %v1905
        %v1931 = vpop.f32.mrf.mxu0
        %v1932 = vadd.f32 0.0, %v1931
        %v1933 = vpop.f32.mrf.mxu0
        %v1934 = vadd.f32 0.0, %v1933
        %1935 = vdwg.mxu0
        %1936 = vmatpush.bf16.msra.mxu0 0
        %1937 = vmatpush.bf16.msra.mxu0 0
        %1938 = vmatpush.bf16.msra.mxu0 0
        %1939 = vmatpush.bf16.msra.mxu0 0
        %1940 = vmatpush.bf16.msra.mxu0 %v1849
        %1941 = vmatpush.bf16.msra.mxu0 %v1847
        %1942 = vmatpush.bf16.msra.mxu0 %v1845
        %1943 = vmatpush.bf16.msra.mxu0 %v1843
        %1944 = vmatmul.bf16.gmra.mxu0 %v1896
        %v1945 = vpop.f32.mrf.mxu0
        %v1946 = vadd.f32 0.0, %v1945
        %v1947 = vpop.f32.mrf.mxu0
        %v1948 = vadd.f32 0.0, %v1947
        %1949 = vmatmul.bf16.gmra.mxu0 %v1899
        %v1950 = vpop.f32.mrf.mxu0
        %v1951 = vadd.f32 0.0, %v1950
        %v1952 = vpop.f32.mrf.mxu0
        %v1953 = vadd.f32 0.0, %v1952
        %1954 = vmatmul.bf16.gmra.mxu0 %v1902
        %v1955 = vpop.f32.mrf.mxu0
        %v1956 = vadd.f32 0.0, %v1955
        %v1957 = vpop.f32.mrf.mxu0
        %v1958 = vadd.f32 0.0, %v1957
        %1959 = vmatmul.bf16.gmra.mxu0 %v1905
        %v1960 = vpop.f32.mrf.mxu0
        %v1961 = vadd.f32 0.0, %v1960
        %v1962 = vpop.f32.mrf.mxu0
        %v1963 = vadd.f32 0.0, %v1962
        %1964 = vdwg.mxu0
        %v1973 = vunpack.c.l.b16 %v1858
        %v1974 = vunpack.c.l.b16 %v1859
        %v1975 = vunpack.c.l.b16 %v1860
        %v1976 = vunpack.c.l.b16 %v1861
        %v1977 = vunpack.c.l.b16 %v1862
        %v1978 = vunpack.c.l.b16 %v1863
        %v1979 = vunpack.c.l.b16 %v1864
        %v1980 = vunpack.c.l.b16 %v1865
        %v1981 = vpack.c.b16 %v1974, %v1973
        %v1982 = vpack.c.b16 %v1976, %v1975
        %v1983 = vpack.c.b16 %v1978, %v1977
        %v1984 = vpack.c.b16 %v1980, %v1979
        %v1986 = vsel %vm562, %v1981, 0
        %v1989 = vsel %vm562, %v1982, 0
        %v1992 = vsel %vm562, %v1983, 0
        %v1995 = vsel %vm562, %v1984, 0
        %1997 = vmatpush.bf16.msra.mxu0 0
        %1998 = vmatpush.bf16.msra.mxu0 0
        %1999 = vmatpush.bf16.msra.mxu0 0
        %2000 = vmatpush.bf16.msra.mxu0 0
        %2001 = vmatpush.bf16.msra.mxu0 %v1840
        %2002 = vmatpush.bf16.msra.mxu0 %v1838
        %2003 = vmatpush.bf16.msra.mxu0 %v1836
        %2004 = vmatpush.bf16.msra.mxu0 %v1834
        %2005 = vmatmul.bf16.gmra.mxu0 %v1986
        %v2006 = vpop.f32.mrf.mxu0
        %v2007 = vadd.f32 %v1917, %v2006
        %v2008 = vpop.f32.mrf.mxu0
        %v2009 = vadd.f32 %v1919, %v2008
        %2010 = vmatmul.bf16.gmra.mxu0 %v1989
        %v2011 = vpop.f32.mrf.mxu0
        %v2012 = vadd.f32 %v1922, %v2011
        %v2013 = vpop.f32.mrf.mxu0
        %v2014 = vadd.f32 %v1924, %v2013
        %2015 = vmatmul.bf16.gmra.mxu0 %v1992
        %v2016 = vpop.f32.mrf.mxu0
        %v2017 = vadd.f32 %v1927, %v2016
        %v2018 = vpop.f32.mrf.mxu0
        %v2019 = vadd.f32 %v1929, %v2018
        %2020 = vmatmul.bf16.gmra.mxu0 %v1995
        %v2021 = vpop.f32.mrf.mxu0
        %v2022 = vadd.f32 %v1932, %v2021
        %v2023 = vpop.f32.mrf.mxu0
        %v2024 = vadd.f32 %v1934, %v2023
        %2025 = vdwg.mxu0
        %2026 = vmatpush.bf16.msra.mxu0 0
        %2027 = vmatpush.bf16.msra.mxu0 0
        %2028 = vmatpush.bf16.msra.mxu0 0
        %2029 = vmatpush.bf16.msra.mxu0 0
        %2030 = vmatpush.bf16.msra.mxu0 %v1841
        %2031 = vmatpush.bf16.msra.mxu0 %v1839
        %2032 = vmatpush.bf16.msra.mxu0 %v1837
        %2033 = vmatpush.bf16.msra.mxu0 %v1835
        %2034 = vmatmul.bf16.gmra.mxu0 %v1986
        %v2035 = vpop.f32.mrf.mxu0
        %v2036 = vadd.f32 %v1946, %v2035
        %v2037 = vpop.f32.mrf.mxu0
        %v2038 = vadd.f32 %v1948, %v2037
        %2039 = vmatmul.bf16.gmra.mxu0 %v1989
        %v2040 = vpop.f32.mrf.mxu0
        %v2041 = vadd.f32 %v1951, %v2040
        %v2042 = vpop.f32.mrf.mxu0
        %v2043 = vadd.f32 %v1953, %v2042
        %2044 = vmatmul.bf16.gmra.mxu0 %v1992
        %v2045 = vpop.f32.mrf.mxu0
        %v2046 = vadd.f32 %v1956, %v2045
        %v2047 = vpop.f32.mrf.mxu0
        %v2048 = vadd.f32 %v1958, %v2047
        %2049 = vmatmul.bf16.gmra.mxu0 %v1995
        %v2050 = vpop.f32.mrf.mxu0
        %v2051 = vadd.f32 %v1961, %v2050
        %v2052 = vpop.f32.mrf.mxu0
        %v2053 = vadd.f32 %v1963, %v2052
        %2054 = vdwg.mxu0
        %s2055 = scalar_lea.vmem %s3, 64
        %v2056 = vld [vmem:[%s2055] sm:$0xf]
        %v2057 = vld [vmem:[%s2055 + $0x4] sm:$0xf]
        %v2058 = vld [vmem:[%s2055 + $0x8] sm:$0xf]
        %v2059 = vld [vmem:[%s2055 + $0xc] sm:$0xf]
        %v2060 = vld [vmem:[%s2055 + $0x10] sm:$0xf]
        %v2061 = vld [vmem:[%s2055 + $0x14] sm:$0xf]
        %v2062 = vld [vmem:[%s2055 + $0x18] sm:$0xf]
        %v2063 = vld [vmem:[%s2055 + $0x1c] sm:$0xf]
        %v2072 = vunpack.c.l.b16 %v2056
        %v2073 = vunpack.c.l.b16 %v2057
        %v2074 = vunpack.c.l.b16 %v2058
        %v2075 = vunpack.c.l.b16 %v2059
        %v2076 = vunpack.c.l.b16 %v2060
        %v2077 = vunpack.c.l.b16 %v2061
        %v2078 = vunpack.c.l.b16 %v2062
        %v2079 = vunpack.c.l.b16 %v2063
        %v2080 = vpack.c.b16 %v2073, %v2072
        %v2081 = vpack.c.b16 %v2075, %v2074
        %v2082 = vpack.c.b16 %v2077, %v2076
        %v2083 = vpack.c.b16 %v2079, %v2078
        %v2085 = vsel %vm562, %v2080, 0
        %v2088 = vsel %vm562, %v2081, 0
        %v2091 = vsel %vm562, %v2082, 0
        %v2094 = vsel %vm562, %v2083, 0
        %2096 = vmatpush.bf16.msra.mxu0 0
        %2097 = vmatpush.bf16.msra.mxu0 0
        %2098 = vmatpush.bf16.msra.mxu0 0
        %2099 = vmatpush.bf16.msra.mxu0 0
        %2100 = vmatpush.bf16.msra.mxu0 %v1856
        %2101 = vmatpush.bf16.msra.mxu0 %v1854
        %2102 = vmatpush.bf16.msra.mxu0 %v1852
        %2103 = vmatpush.bf16.msra.mxu0 %v1850
        %2104 = vmatmul.bf16.gmra.mxu0 %v2085
        %v2105 = vpop.f32.mrf.mxu0
        %v2106 = vadd.f32 0.0, %v2105
        %v2107 = vpop.f32.mrf.mxu0
        %v2108 = vadd.f32 0.0, %v2107
        %2109 = vmatmul.bf16.gmra.mxu0 %v2088
        %v2110 = vpop.f32.mrf.mxu0
        %v2111 = vadd.f32 0.0, %v2110
        %v2112 = vpop.f32.mrf.mxu0
        %v2113 = vadd.f32 0.0, %v2112
        %2114 = vmatmul.bf16.gmra.mxu0 %v2091
        %v2115 = vpop.f32.mrf.mxu0
        %v2116 = vadd.f32 0.0, %v2115
        %v2117 = vpop.f32.mrf.mxu0
        %v2118 = vadd.f32 0.0, %v2117
        %2119 = vmatmul.bf16.gmra.mxu0 %v2094
        %v2120 = vpop.f32.mrf.mxu0
        %v2121 = vadd.f32 0.0, %v2120
        %v2122 = vpop.f32.mrf.mxu0
        %v2123 = vadd.f32 0.0, %v2122
        %2124 = vdwg.mxu0
        %2125 = vmatpush.bf16.msra.mxu0 0
        %2126 = vmatpush.bf16.msra.mxu0 0
        %2127 = vmatpush.bf16.msra.mxu0 0
        %2128 = vmatpush.bf16.msra.mxu0 0
        %2129 = vmatpush.bf16.msra.mxu0 %v1857
        %2130 = vmatpush.bf16.msra.mxu0 %v1855
        %2131 = vmatpush.bf16.msra.mxu0 %v1853
        %2132 = vmatpush.bf16.msra.mxu0 %v1851
        %2133 = vmatmul.bf16.gmra.mxu0 %v2085
        %v2134 = vpop.f32.mrf.mxu0
        %v2135 = vadd.f32 0.0, %v2134
        %v2136 = vpop.f32.mrf.mxu0
        %v2137 = vadd.f32 0.0, %v2136
        %2138 = vmatmul.bf16.gmra.mxu0 %v2088
        %v2139 = vpop.f32.mrf.mxu0
        %v2140 = vadd.f32 0.0, %v2139
        %v2141 = vpop.f32.mrf.mxu0
        %v2142 = vadd.f32 0.0, %v2141
        %2143 = vmatmul.bf16.gmra.mxu0 %v2091
        %v2144 = vpop.f32.mrf.mxu0
        %v2145 = vadd.f32 0.0, %v2144
        %v2146 = vpop.f32.mrf.mxu0
        %v2147 = vadd.f32 0.0, %v2146
        %2148 = vmatmul.bf16.gmra.mxu0 %v2094
        %v2149 = vpop.f32.mrf.mxu0
        %v2150 = vadd.f32 0.0, %v2149
        %v2151 = vpop.f32.mrf.mxu0
        %v2152 = vadd.f32 0.0, %v2151
        %2153 = vdwg.mxu0
        %v2154 = vadd.f32 %v2007, %v2106
        %v2155 = vadd.f32 %v2036, %v2135
        %v2156 = vadd.f32 %v2009, %v2108
        %v2157 = vadd.f32 %v2038, %v2137
        %v2158 = vadd.f32 %v2012, %v2111
        %v2159 = vadd.f32 %v2041, %v2140
        %v2160 = vadd.f32 %v2014, %v2113
        %v2161 = vadd.f32 %v2043, %v2142
        %v2162 = vadd.f32 %v2017, %v2116
        %v2163 = vadd.f32 %v2046, %v2145
        %v2164 = vadd.f32 %v2019, %v2118
        %v2165 = vadd.f32 %v2048, %v2147
        %v2166 = vadd.f32 %v2022, %v2121
        %v2167 = vadd.f32 %v2051, %v2150
        %v2168 = vadd.f32 %v2024, %v2123
        %v2169 = vadd.f32 %v2053, %v2152
        %s2170 = scalar_lea.vmem %s3, 96
        %v2171 = vld [vmem:[%s2170] sm:$0xf]
        %v2172 = vld [vmem:[%s2170 + $0x4] sm:$0xf]
        %v2173 = vld [vmem:[%s2170 + $0x8] sm:$0xf]
        %v2174 = vld [vmem:[%s2170 + $0xc] sm:$0xf]
        %v2175 = vld [vmem:[%s2170 + $0x10] sm:$0xf]
        %v2176 = vld [vmem:[%s2170 + $0x14] sm:$0xf]
        %v2177 = vld [vmem:[%s2170 + $0x18] sm:$0xf]
        %v2178 = vld [vmem:[%s2170 + $0x1c] sm:$0xf]
        %s2179 = scalar_lea.vmem %s3, 128
        %v2180 = vld [vmem:[%s2179] sm:$0xf]
        %v2181 = vld [vmem:[%s2179 + $0x4] sm:$0xf]
        %v2182 = vld [vmem:[%s2179 + $0x8] sm:$0xf]
        %v2183 = vld [vmem:[%s2179 + $0xc] sm:$0xf]
        %v2184 = vld [vmem:[%s2179 + $0x10] sm:$0xf]
        %v2185 = vld [vmem:[%s2179 + $0x14] sm:$0xf]
        %v2186 = vld [vmem:[%s2179 + $0x18] sm:$0xf]
        %v2187 = vld [vmem:[%s2179 + $0x1c] sm:$0xf]
        %v2196 = vunpack.c.l.b16 %v2180
        %v2197 = vunpack.c.l.b16 %v2181
        %v2198 = vunpack.c.l.b16 %v2182
        %v2199 = vunpack.c.l.b16 %v2183
        %v2200 = vunpack.c.l.b16 %v2184
        %v2201 = vunpack.c.l.b16 %v2185
        %v2202 = vunpack.c.l.b16 %v2186
        %v2203 = vunpack.c.l.b16 %v2187
        %v2204 = vpack.c.b16 %v2197, %v2196
        %v2205 = vpack.c.b16 %v2199, %v2198
        %v2206 = vpack.c.b16 %v2201, %v2200
        %v2207 = vpack.c.b16 %v2203, %v2202
        %v2209 = vsel %vm562, %v2204, 0
        %v2212 = vsel %vm562, %v2205, 0
        %v2215 = vsel %vm562, %v2206, 0
        %v2218 = vsel %vm562, %v2207, 0
        %2220 = vmatpush.bf16.msra.mxu0 0
        %2221 = vmatpush.bf16.msra.mxu0 0
        %2222 = vmatpush.bf16.msra.mxu0 0
        %2223 = vmatpush.bf16.msra.mxu0 0
        %2224 = vmatpush.bf16.msra.mxu0 %v1848
        %2225 = vmatpush.bf16.msra.mxu0 %v1846
        %2226 = vmatpush.bf16.msra.mxu0 %v1844
        %2227 = vmatpush.bf16.msra.mxu0 %v1842
        %2228 = vmatmul.bf16.gmra.mxu0 %v2209
        %v2229 = vpop.f32.mrf.mxu0
        %v2230 = vadd.f32 0.0, %v2229
        %v2231 = vpop.f32.mrf.mxu0
        %v2232 = vadd.f32 0.0, %v2231
        %2233 = vmatmul.bf16.gmra.mxu0 %v2212
        %v2234 = vpop.f32.mrf.mxu0
        %v2235 = vadd.f32 0.0, %v2234
        %v2236 = vpop.f32.mrf.mxu0
        %v2237 = vadd.f32 0.0, %v2236
        %2238 = vmatmul.bf16.gmra.mxu0 %v2215
        %v2239 = vpop.f32.mrf.mxu0
        %v2240 = vadd.f32 0.0, %v2239
        %v2241 = vpop.f32.mrf.mxu0
        %v2242 = vadd.f32 0.0, %v2241
        %2243 = vmatmul.bf16.gmra.mxu0 %v2218
        %v2244 = vpop.f32.mrf.mxu0
        %v2245 = vadd.f32 0.0, %v2244
        %v2246 = vpop.f32.mrf.mxu0
        %v2247 = vadd.f32 0.0, %v2246
        %2248 = vdwg.mxu0
        %2249 = vmatpush.bf16.msra.mxu0 0
        %2250 = vmatpush.bf16.msra.mxu0 0
        %2251 = vmatpush.bf16.msra.mxu0 0
        %2252 = vmatpush.bf16.msra.mxu0 0
        %2253 = vmatpush.bf16.msra.mxu0 %v1849
        %2254 = vmatpush.bf16.msra.mxu0 %v1847
        %2255 = vmatpush.bf16.msra.mxu0 %v1845
        %2256 = vmatpush.bf16.msra.mxu0 %v1843
        %2257 = vmatmul.bf16.gmra.mxu0 %v2209
        %v2258 = vpop.f32.mrf.mxu0
        %v2259 = vadd.f32 0.0, %v2258
        %v2260 = vpop.f32.mrf.mxu0
        %v2261 = vadd.f32 0.0, %v2260
        %2262 = vmatmul.bf16.gmra.mxu0 %v2212
        %v2263 = vpop.f32.mrf.mxu0
        %v2264 = vadd.f32 0.0, %v2263
        %v2265 = vpop.f32.mrf.mxu0
        %v2266 = vadd.f32 0.0, %v2265
        %2267 = vmatmul.bf16.gmra.mxu0 %v2215
        %v2268 = vpop.f32.mrf.mxu0
        %v2269 = vadd.f32 0.0, %v2268
        %v2270 = vpop.f32.mrf.mxu0
        %v2271 = vadd.f32 0.0, %v2270
        %2272 = vmatmul.bf16.gmra.mxu0 %v2218
        %v2273 = vpop.f32.mrf.mxu0
        %v2274 = vadd.f32 0.0, %v2273
        %v2275 = vpop.f32.mrf.mxu0
        %v2276 = vadd.f32 0.0, %v2275
        %2277 = vdwg.mxu0
        %v2286 = vunpack.c.l.b16 %v2171
        %v2287 = vunpack.c.l.b16 %v2172
        %v2288 = vunpack.c.l.b16 %v2173
        %v2289 = vunpack.c.l.b16 %v2174
        %v2290 = vunpack.c.l.b16 %v2175
        %v2291 = vunpack.c.l.b16 %v2176
        %v2292 = vunpack.c.l.b16 %v2177
        %v2293 = vunpack.c.l.b16 %v2178
        %v2294 = vpack.c.b16 %v2287, %v2286
        %v2295 = vpack.c.b16 %v2289, %v2288
        %v2296 = vpack.c.b16 %v2291, %v2290
        %v2297 = vpack.c.b16 %v2293, %v2292
        %v2299 = vsel %vm562, %v2294, 0
        %v2302 = vsel %vm562, %v2295, 0
        %v2305 = vsel %vm562, %v2296, 0
        %v2308 = vsel %vm562, %v2297, 0
        %2310 = vmatpush.bf16.msra.mxu0 0
        %2311 = vmatpush.bf16.msra.mxu0 0
        %2312 = vmatpush.bf16.msra.mxu0 0
        %2313 = vmatpush.bf16.msra.mxu0 0
        %2314 = vmatpush.bf16.msra.mxu0 %v1840
        %2315 = vmatpush.bf16.msra.mxu0 %v1838
        %2316 = vmatpush.bf16.msra.mxu0 %v1836
        %2317 = vmatpush.bf16.msra.mxu0 %v1834
        %2318 = vmatmul.bf16.gmra.mxu0 %v2299
        %v2319 = vpop.f32.mrf.mxu0
        %v2320 = vadd.f32 %v2230, %v2319
        %v2321 = vpop.f32.mrf.mxu0
        %v2322 = vadd.f32 %v2232, %v2321
        %2323 = vmatmul.bf16.gmra.mxu0 %v2302
        %v2324 = vpop.f32.mrf.mxu0
        %v2325 = vadd.f32 %v2235, %v2324
        %v2326 = vpop.f32.mrf.mxu0
        %v2327 = vadd.f32 %v2237, %v2326
        %2328 = vmatmul.bf16.gmra.mxu0 %v2305
        %v2329 = vpop.f32.mrf.mxu0
        %v2330 = vadd.f32 %v2240, %v2329
        %v2331 = vpop.f32.mrf.mxu0
        %v2332 = vadd.f32 %v2242, %v2331
        %2333 = vmatmul.bf16.gmra.mxu0 %v2308
        %v2334 = vpop.f32.mrf.mxu0
        %v2335 = vadd.f32 %v2245, %v2334
        %v2336 = vpop.f32.mrf.mxu0
        %v2337 = vadd.f32 %v2247, %v2336
        %2338 = vdwg.mxu0
        %2339 = vmatpush.bf16.msra.mxu0 0
        %2340 = vmatpush.bf16.msra.mxu0 0
        %2341 = vmatpush.bf16.msra.mxu0 0
        %2342 = vmatpush.bf16.msra.mxu0 0
        %2343 = vmatpush.bf16.msra.mxu0 %v1841
        %2344 = vmatpush.bf16.msra.mxu0 %v1839
        %2345 = vmatpush.bf16.msra.mxu0 %v1837
        %2346 = vmatpush.bf16.msra.mxu0 %v1835
        %2347 = vmatmul.bf16.gmra.mxu0 %v2299
        %v2348 = vpop.f32.mrf.mxu0
        %v2349 = vadd.f32 %v2259, %v2348
        %v2350 = vpop.f32.mrf.mxu0
        %v2351 = vadd.f32 %v2261, %v2350
        %2352 = vmatmul.bf16.gmra.mxu0 %v2302
        %v2353 = vpop.f32.mrf.mxu0
        %v2354 = vadd.f32 %v2264, %v2353
        %v2355 = vpop.f32.mrf.mxu0
        %v2356 = vadd.f32 %v2266, %v2355
        %2357 = vmatmul.bf16.gmra.mxu0 %v2305
        %v2358 = vpop.f32.mrf.mxu0
        %v2359 = vadd.f32 %v2269, %v2358
        %v2360 = vpop.f32.mrf.mxu0
        %v2361 = vadd.f32 %v2271, %v2360
        %2362 = vmatmul.bf16.gmra.mxu0 %v2308
        %v2363 = vpop.f32.mrf.mxu0
        %v2364 = vadd.f32 %v2274, %v2363
        %v2365 = vpop.f32.mrf.mxu0
        %v2366 = vadd.f32 %v2276, %v2365
        %2367 = vdwg.mxu0
        %s2368 = scalar_lea.vmem %s3, 160
        %v2369 = vld [vmem:[%s2368] sm:$0xf]
        %v2370 = vld [vmem:[%s2368 + $0x4] sm:$0xf]
        %v2371 = vld [vmem:[%s2368 + $0x8] sm:$0xf]
        %v2372 = vld [vmem:[%s2368 + $0xc] sm:$0xf]
        %v2373 = vld [vmem:[%s2368 + $0x10] sm:$0xf]
        %v2374 = vld [vmem:[%s2368 + $0x14] sm:$0xf]
        %v2375 = vld [vmem:[%s2368 + $0x18] sm:$0xf]
        %v2376 = vld [vmem:[%s2368 + $0x1c] sm:$0xf]
        %v2385 = vunpack.c.l.b16 %v2369
        %v2386 = vunpack.c.l.b16 %v2370
        %v2387 = vunpack.c.l.b16 %v2371
        %v2388 = vunpack.c.l.b16 %v2372
        %v2389 = vunpack.c.l.b16 %v2373
        %v2390 = vunpack.c.l.b16 %v2374
        %v2391 = vunpack.c.l.b16 %v2375
        %v2392 = vunpack.c.l.b16 %v2376
        %v2393 = vpack.c.b16 %v2386, %v2385
        %v2394 = vpack.c.b16 %v2388, %v2387
        %v2395 = vpack.c.b16 %v2390, %v2389
        %v2396 = vpack.c.b16 %v2392, %v2391
        %v2398 = vsel %vm562, %v2393, 0
        %v2401 = vsel %vm562, %v2394, 0
        %v2404 = vsel %vm562, %v2395, 0
        %v2407 = vsel %vm562, %v2396, 0
        %2409 = vmatpush.bf16.msra.mxu0 0
        %2410 = vmatpush.bf16.msra.mxu0 0
        %2411 = vmatpush.bf16.msra.mxu0 0
        %2412 = vmatpush.bf16.msra.mxu0 0
        %2413 = vmatpush.bf16.msra.mxu0 %v1856
        %2414 = vmatpush.bf16.msra.mxu0 %v1854
        %2415 = vmatpush.bf16.msra.mxu0 %v1852
        %2416 = vmatpush.bf16.msra.mxu0 %v1850
        %2417 = vmatmul.bf16.gmra.mxu0 %v2398
        %v2418 = vpop.f32.mrf.mxu0
        %v2419 = vadd.f32 0.0, %v2418
        %v2420 = vpop.f32.mrf.mxu0
        %v2421 = vadd.f32 0.0, %v2420
        %2422 = vmatmul.bf16.gmra.mxu0 %v2401
        %v2423 = vpop.f32.mrf.mxu0
        %v2424 = vadd.f32 0.0, %v2423
        %v2425 = vpop.f32.mrf.mxu0
        %v2426 = vadd.f32 0.0, %v2425
        %2427 = vmatmul.bf16.gmra.mxu0 %v2404
        %v2428 = vpop.f32.mrf.mxu0
        %v2429 = vadd.f32 0.0, %v2428
        %v2430 = vpop.f32.mrf.mxu0
        %v2431 = vadd.f32 0.0, %v2430
        %2432 = vmatmul.bf16.gmra.mxu0 %v2407
        %v2433 = vpop.f32.mrf.mxu0
        %v2434 = vadd.f32 0.0, %v2433
        %v2435 = vpop.f32.mrf.mxu0
        %v2436 = vadd.f32 0.0, %v2435
        %2437 = vdwg.mxu0
        %2438 = vmatpush.bf16.msra.mxu0 0
        %2439 = vmatpush.bf16.msra.mxu0 0
        %2440 = vmatpush.bf16.msra.mxu0 0
        %2441 = vmatpush.bf16.msra.mxu0 0
        %2442 = vmatpush.bf16.msra.mxu0 %v1857
        %2443 = vmatpush.bf16.msra.mxu0 %v1855
        %2444 = vmatpush.bf16.msra.mxu0 %v1853
        %2445 = vmatpush.bf16.msra.mxu0 %v1851
        %2446 = vmatmul.bf16.gmra.mxu0 %v2398
        %v2447 = vpop.f32.mrf.mxu0
        %v2448 = vadd.f32 0.0, %v2447
        %v2449 = vpop.f32.mrf.mxu0
        %v2450 = vadd.f32 0.0, %v2449
        %2451 = vmatmul.bf16.gmra.mxu0 %v2401
        %v2452 = vpop.f32.mrf.mxu0
        %v2453 = vadd.f32 0.0, %v2452
        %v2454 = vpop.f32.mrf.mxu0
        %v2455 = vadd.f32 0.0, %v2454
        %2456 = vmatmul.bf16.gmra.mxu0 %v2404
        %v2457 = vpop.f32.mrf.mxu0
        %v2458 = vadd.f32 0.0, %v2457
        %v2459 = vpop.f32.mrf.mxu0
        %v2460 = vadd.f32 0.0, %v2459
        %2461 = vmatmul.bf16.gmra.mxu0 %v2407
        %v2462 = vpop.f32.mrf.mxu0
        %v2463 = vadd.f32 0.0, %v2462
        %v2464 = vpop.f32.mrf.mxu0
        %v2465 = vadd.f32 0.0, %v2464
        %2466 = vdwg.mxu0
        %v2467 = vadd.f32 %v2320, %v2419
        %v2468 = vadd.f32 %v2349, %v2448
        %v2469 = vadd.f32 %v2322, %v2421
        %v2470 = vadd.f32 %v2351, %v2450
        %v2471 = vadd.f32 %v2325, %v2424
        %v2472 = vadd.f32 %v2354, %v2453
        %v2473 = vadd.f32 %v2327, %v2426
        %v2474 = vadd.f32 %v2356, %v2455
        %v2475 = vadd.f32 %v2330, %v2429
        %v2476 = vadd.f32 %v2359, %v2458
        %v2477 = vadd.f32 %v2332, %v2431
        %v2478 = vadd.f32 %v2361, %v2460
        %v2479 = vadd.f32 %v2335, %v2434
        %v2480 = vadd.f32 %v2364, %v2463
        %v2481 = vadd.f32 %v2337, %v2436
        %v2482 = vadd.f32 %v2366, %v2465
        %s2483 = scalar_lea.vmem %s3, 192
        %v2484 = vld [vmem:[%s2483] sm:$0xf]
        %v2485 = vld [vmem:[%s2483 + $0x4] sm:$0xf]
        %v2486 = vld [vmem:[%s2483 + $0x8] sm:$0xf]
        %v2487 = vld [vmem:[%s2483 + $0xc] sm:$0xf]
        %v2488 = vld [vmem:[%s2483 + $0x10] sm:$0xf]
        %v2489 = vld [vmem:[%s2483 + $0x14] sm:$0xf]
        %v2490 = vld [vmem:[%s2483 + $0x18] sm:$0xf]
        %v2491 = vld [vmem:[%s2483 + $0x1c] sm:$0xf]
        %s2492 = scalar_lea.vmem %s3, 224
        %v2493 = vld [vmem:[%s2492] sm:$0xf]
        %v2494 = vld [vmem:[%s2492 + $0x4] sm:$0xf]
        %v2495 = vld [vmem:[%s2492 + $0x8] sm:$0xf]
        %v2496 = vld [vmem:[%s2492 + $0xc] sm:$0xf]
        %v2497 = vld [vmem:[%s2492 + $0x10] sm:$0xf]
        %v2498 = vld [vmem:[%s2492 + $0x14] sm:$0xf]
        %v2499 = vld [vmem:[%s2492 + $0x18] sm:$0xf]
        %v2500 = vld [vmem:[%s2492 + $0x1c] sm:$0xf]
        %v2509 = vunpack.c.l.b16 %v2493
        %v2510 = vunpack.c.l.b16 %v2494
        %v2511 = vunpack.c.l.b16 %v2495
        %v2512 = vunpack.c.l.b16 %v2496
        %v2513 = vunpack.c.l.b16 %v2497
        %v2514 = vunpack.c.l.b16 %v2498
        %v2515 = vunpack.c.l.b16 %v2499
        %v2516 = vunpack.c.l.b16 %v2500
        %v2517 = vpack.c.b16 %v2510, %v2509
        %v2518 = vpack.c.b16 %v2512, %v2511
        %v2519 = vpack.c.b16 %v2514, %v2513
        %v2520 = vpack.c.b16 %v2516, %v2515
        %v2522 = vsel %vm562, %v2517, 0
        %v2525 = vsel %vm562, %v2518, 0
        %v2528 = vsel %vm562, %v2519, 0
        %v2531 = vsel %vm562, %v2520, 0
        %2533 = vmatpush.bf16.msra.mxu0 0
        %2534 = vmatpush.bf16.msra.mxu0 0
        %2535 = vmatpush.bf16.msra.mxu0 0
        %2536 = vmatpush.bf16.msra.mxu0 0
        %2537 = vmatpush.bf16.msra.mxu0 %v1848
        %2538 = vmatpush.bf16.msra.mxu0 %v1846
        %2539 = vmatpush.bf16.msra.mxu0 %v1844
        %2540 = vmatpush.bf16.msra.mxu0 %v1842
        %2541 = vmatmul.bf16.gmra.mxu0 %v2522
        %v2542 = vpop.f32.mrf.mxu0
        %v2543 = vadd.f32 0.0, %v2542
        %v2544 = vpop.f32.mrf.mxu0
        %v2545 = vadd.f32 0.0, %v2544
        %2546 = vmatmul.bf16.gmra.mxu0 %v2525
        %v2547 = vpop.f32.mrf.mxu0
        %v2548 = vadd.f32 0.0, %v2547
        %v2549 = vpop.f32.mrf.mxu0
        %v2550 = vadd.f32 0.0, %v2549
        %2551 = vmatmul.bf16.gmra.mxu0 %v2528
        %v2552 = vpop.f32.mrf.mxu0
        %v2553 = vadd.f32 0.0, %v2552
        %v2554 = vpop.f32.mrf.mxu0
        %v2555 = vadd.f32 0.0, %v2554
        %2556 = vmatmul.bf16.gmra.mxu0 %v2531
        %v2557 = vpop.f32.mrf.mxu0
        %v2558 = vadd.f32 0.0, %v2557
        %v2559 = vpop.f32.mrf.mxu0
        %v2560 = vadd.f32 0.0, %v2559
        %2561 = vdwg.mxu0
        %2562 = vmatpush.bf16.msra.mxu0 0
        %2563 = vmatpush.bf16.msra.mxu0 0
        %2564 = vmatpush.bf16.msra.mxu0 0
        %2565 = vmatpush.bf16.msra.mxu0 0
        %2566 = vmatpush.bf16.msra.mxu0 %v1849
        %2567 = vmatpush.bf16.msra.mxu0 %v1847
        %2568 = vmatpush.bf16.msra.mxu0 %v1845
        %2569 = vmatpush.bf16.msra.mxu0 %v1843
        %2570 = vmatmul.bf16.gmra.mxu0 %v2522
        %v2571 = vpop.f32.mrf.mxu0
        %v2572 = vadd.f32 0.0, %v2571
        %v2573 = vpop.f32.mrf.mxu0
        %v2574 = vadd.f32 0.0, %v2573
        %2575 = vmatmul.bf16.gmra.mxu0 %v2525
        %v2576 = vpop.f32.mrf.mxu0
        %v2577 = vadd.f32 0.0, %v2576
        %v2578 = vpop.f32.mrf.mxu0
        %v2579 = vadd.f32 0.0, %v2578
        %2580 = vmatmul.bf16.gmra.mxu0 %v2528
        %v2581 = vpop.f32.mrf.mxu0
        %v2582 = vadd.f32 0.0, %v2581
        %v2583 = vpop.f32.mrf.mxu0
        %v2584 = vadd.f32 0.0, %v2583
        %2585 = vmatmul.bf16.gmra.mxu0 %v2531
        %v2586 = vpop.f32.mrf.mxu0
        %v2587 = vadd.f32 0.0, %v2586
        %v2588 = vpop.f32.mrf.mxu0
        %v2589 = vadd.f32 0.0, %v2588
        %2590 = vdwg.mxu0
        %v2599 = vunpack.c.l.b16 %v2484
        %v2600 = vunpack.c.l.b16 %v2485
        %v2601 = vunpack.c.l.b16 %v2486
        %v2602 = vunpack.c.l.b16 %v2487
        %v2603 = vunpack.c.l.b16 %v2488
        %v2604 = vunpack.c.l.b16 %v2489
        %v2605 = vunpack.c.l.b16 %v2490
        %v2606 = vunpack.c.l.b16 %v2491
        %v2607 = vpack.c.b16 %v2600, %v2599
        %v2608 = vpack.c.b16 %v2602, %v2601
        %v2609 = vpack.c.b16 %v2604, %v2603
        %v2610 = vpack.c.b16 %v2606, %v2605
        %v2612 = vsel %vm562, %v2607, 0
        %v2615 = vsel %vm562, %v2608, 0
        %v2618 = vsel %vm562, %v2609, 0
        %v2621 = vsel %vm562, %v2610, 0
        %2623 = vmatpush.bf16.msra.mxu0 0
        %2624 = vmatpush.bf16.msra.mxu0 0
        %2625 = vmatpush.bf16.msra.mxu0 0
        %2626 = vmatpush.bf16.msra.mxu0 0
        %2627 = vmatpush.bf16.msra.mxu0 %v1840
        %2628 = vmatpush.bf16.msra.mxu0 %v1838
        %2629 = vmatpush.bf16.msra.mxu0 %v1836
        %2630 = vmatpush.bf16.msra.mxu0 %v1834
        %2631 = vmatmul.bf16.gmra.mxu0 %v2612
        %v2632 = vpop.f32.mrf.mxu0
        %v2633 = vadd.f32 %v2543, %v2632
        %v2634 = vpop.f32.mrf.mxu0
        %v2635 = vadd.f32 %v2545, %v2634
        %2636 = vmatmul.bf16.gmra.mxu0 %v2615
        %v2637 = vpop.f32.mrf.mxu0
        %v2638 = vadd.f32 %v2548, %v2637
        %v2639 = vpop.f32.mrf.mxu0
        %v2640 = vadd.f32 %v2550, %v2639
        %2641 = vmatmul.bf16.gmra.mxu0 %v2618
        %v2642 = vpop.f32.mrf.mxu0
        %v2643 = vadd.f32 %v2553, %v2642
        %v2644 = vpop.f32.mrf.mxu0
        %v2645 = vadd.f32 %v2555, %v2644
        %2646 = vmatmul.bf16.gmra.mxu0 %v2621
        %v2647 = vpop.f32.mrf.mxu0
        %v2648 = vadd.f32 %v2558, %v2647
        %v2649 = vpop.f32.mrf.mxu0
        %v2650 = vadd.f32 %v2560, %v2649
        %2651 = vdwg.mxu0
        %2652 = vmatpush.bf16.msra.mxu0 0
        %2653 = vmatpush.bf16.msra.mxu0 0
        %2654 = vmatpush.bf16.msra.mxu0 0
        %2655 = vmatpush.bf16.msra.mxu0 0
        %2656 = vmatpush.bf16.msra.mxu0 %v1841
        %2657 = vmatpush.bf16.msra.mxu0 %v1839
        %2658 = vmatpush.bf16.msra.mxu0 %v1837
        %2659 = vmatpush.bf16.msra.mxu0 %v1835
        %2660 = vmatmul.bf16.gmra.mxu0 %v2612
        %v2661 = vpop.f32.mrf.mxu0
        %v2662 = vadd.f32 %v2572, %v2661
        %v2663 = vpop.f32.mrf.mxu0
        %v2664 = vadd.f32 %v2574, %v2663
        %2665 = vmatmul.bf16.gmra.mxu0 %v2615
        %v2666 = vpop.f32.mrf.mxu0
        %v2667 = vadd.f32 %v2577, %v2666
        %v2668 = vpop.f32.mrf.mxu0
        %v2669 = vadd.f32 %v2579, %v2668
        %2670 = vmatmul.bf16.gmra.mxu0 %v2618
        %v2671 = vpop.f32.mrf.mxu0
        %v2672 = vadd.f32 %v2582, %v2671
        %v2673 = vpop.f32.mrf.mxu0
        %v2674 = vadd.f32 %v2584, %v2673
        %2675 = vmatmul.bf16.gmra.mxu0 %v2621
        %v2676 = vpop.f32.mrf.mxu0
        %v2677 = vadd.f32 %v2587, %v2676
        %v2678 = vpop.f32.mrf.mxu0
        %v2679 = vadd.f32 %v2589, %v2678
        %2680 = vdwg.mxu0
        %s2681 = scalar_lea.vmem %s3, 256
        %v2682 = vld [vmem:[%s2681] sm:$0xf]
        %v2683 = vld [vmem:[%s2681 + $0x4] sm:$0xf]
        %v2684 = vld [vmem:[%s2681 + $0x8] sm:$0xf]
        %v2685 = vld [vmem:[%s2681 + $0xc] sm:$0xf]
        %v2686 = vld [vmem:[%s2681 + $0x10] sm:$0xf]
        %v2687 = vld [vmem:[%s2681 + $0x14] sm:$0xf]
        %v2688 = vld [vmem:[%s2681 + $0x18] sm:$0xf]
        %v2689 = vld [vmem:[%s2681 + $0x1c] sm:$0xf]
        %v2698 = vunpack.c.l.b16 %v2682
        %v2699 = vunpack.c.l.b16 %v2683
        %v2700 = vunpack.c.l.b16 %v2684
        %v2701 = vunpack.c.l.b16 %v2685
        %v2702 = vunpack.c.l.b16 %v2686
        %v2703 = vunpack.c.l.b16 %v2687
        %v2704 = vunpack.c.l.b16 %v2688
        %v2705 = vunpack.c.l.b16 %v2689
        %v2706 = vpack.c.b16 %v2699, %v2698
        %v2707 = vpack.c.b16 %v2701, %v2700
        %v2708 = vpack.c.b16 %v2703, %v2702
        %v2709 = vpack.c.b16 %v2705, %v2704
        %v2711 = vsel %vm562, %v2706, 0
        %v2714 = vsel %vm562, %v2707, 0
        %v2717 = vsel %vm562, %v2708, 0
        %v2720 = vsel %vm562, %v2709, 0
        %2722 = vmatpush.bf16.msra.mxu0 0
        %2723 = vmatpush.bf16.msra.mxu0 0
        %2724 = vmatpush.bf16.msra.mxu0 0
        %2725 = vmatpush.bf16.msra.mxu0 0
        %2726 = vmatpush.bf16.msra.mxu0 %v1856
        %2727 = vmatpush.bf16.msra.mxu0 %v1854
        %2728 = vmatpush.bf16.msra.mxu0 %v1852
        %2729 = vmatpush.bf16.msra.mxu0 %v1850
        %2730 = vmatmul.bf16.gmra.mxu0 %v2711
        %v2731 = vpop.f32.mrf.mxu0
        %v2732 = vadd.f32 0.0, %v2731
        %v2733 = vpop.f32.mrf.mxu0
        %v2734 = vadd.f32 0.0, %v2733
        %2735 = vmatmul.bf16.gmra.mxu0 %v2714
        %v2736 = vpop.f32.mrf.mxu0
        %v2737 = vadd.f32 0.0, %v2736
        %v2738 = vpop.f32.mrf.mxu0
        %v2739 = vadd.f32 0.0, %v2738
        %2740 = vmatmul.bf16.gmra.mxu0 %v2717
        %v2741 = vpop.f32.mrf.mxu0
        %v2742 = vadd.f32 0.0, %v2741
        %v2743 = vpop.f32.mrf.mxu0
        %v2744 = vadd.f32 0.0, %v2743
        %2745 = vmatmul.bf16.gmra.mxu0 %v2720
        %v2746 = vpop.f32.mrf.mxu0
        %v2747 = vadd.f32 0.0, %v2746
        %v2748 = vpop.f32.mrf.mxu0
        %v2749 = vadd.f32 0.0, %v2748
        %2750 = vdwg.mxu0
        %2751 = vmatpush.bf16.msra.mxu0 0
        %2752 = vmatpush.bf16.msra.mxu0 0
        %2753 = vmatpush.bf16.msra.mxu0 0
        %2754 = vmatpush.bf16.msra.mxu0 0
        %2755 = vmatpush.bf16.msra.mxu0 %v1857
        %2756 = vmatpush.bf16.msra.mxu0 %v1855
        %2757 = vmatpush.bf16.msra.mxu0 %v1853
        %2758 = vmatpush.bf16.msra.mxu0 %v1851
        %2759 = vmatmul.bf16.gmra.mxu0 %v2711
        %v2760 = vpop.f32.mrf.mxu0
        %v2761 = vadd.f32 0.0, %v2760
        %v2762 = vpop.f32.mrf.mxu0
        %v2763 = vadd.f32 0.0, %v2762
        %2764 = vmatmul.bf16.gmra.mxu0 %v2714
        %v2765 = vpop.f32.mrf.mxu0
        %v2766 = vadd.f32 0.0, %v2765
        %v2767 = vpop.f32.mrf.mxu0
        %v2768 = vadd.f32 0.0, %v2767
        %2769 = vmatmul.bf16.gmra.mxu0 %v2717
        %v2770 = vpop.f32.mrf.mxu0
        %v2771 = vadd.f32 0.0, %v2770
        %v2772 = vpop.f32.mrf.mxu0
        %v2773 = vadd.f32 0.0, %v2772
        %2774 = vmatmul.bf16.gmra.mxu0 %v2720
        %v2775 = vpop.f32.mrf.mxu0
        %v2776 = vadd.f32 0.0, %v2775
        %v2777 = vpop.f32.mrf.mxu0
        %v2778 = vadd.f32 0.0, %v2777
        %2779 = vdwg.mxu0
        %v2780 = vadd.f32 %v2633, %v2732
        %v2781 = vadd.f32 %v2662, %v2761
        %v2782 = vadd.f32 %v2635, %v2734
        %v2783 = vadd.f32 %v2664, %v2763
        %v2784 = vadd.f32 %v2638, %v2737
        %v2785 = vadd.f32 %v2667, %v2766
        %v2786 = vadd.f32 %v2640, %v2739
        %v2787 = vadd.f32 %v2669, %v2768
        %v2788 = vadd.f32 %v2643, %v2742
        %v2789 = vadd.f32 %v2672, %v2771
        %v2790 = vadd.f32 %v2645, %v2744
        %v2791 = vadd.f32 %v2674, %v2773
        %v2792 = vadd.f32 %v2648, %v2747
        %v2793 = vadd.f32 %v2677, %v2776
        %v2794 = vadd.f32 %v2650, %v2749
        %v2795 = vadd.f32 %v2679, %v2778
        %2796 = vrot.lane.b32.xlu0 %v2154, 16
        %v2797 = vpop.permute.xlu0 %2796
        %2798 = vrot.lane.b32.xlu0 %v2156, 16
        %v2799 = vpop.permute.xlu0 %2798
        %2800 = vrot.lane.b32.xlu0 %v2158, 16
        %v2801 = vpop.permute.xlu0 %2800
        %2802 = vrot.lane.b32.xlu0 %v2160, 16
        %v2803 = vpop.permute.xlu0 %2802
        %2804 = vrot.lane.b32.xlu0 %v2162, 16
        %v2805 = vpop.permute.xlu0 %2804
        %2806 = vrot.lane.b32.xlu0 %v2164, 16
        %v2807 = vpop.permute.xlu0 %2806
        %2808 = vrot.lane.b32.xlu0 %v2166, 16
        %v2809 = vpop.permute.xlu0 %2808
        %2810 = vrot.lane.b32.xlu0 %v2168, 16
        %v2811 = vpop.permute.xlu0 %2810
        %2812 = vrot.lane.b32.xlu0 %v2155, 16
        %v2813 = vpop.permute.xlu0 %2812
        %2814 = vrot.lane.b32.xlu0 %v2157, 16
        %v2815 = vpop.permute.xlu0 %2814
        %2816 = vrot.lane.b32.xlu0 %v2159, 16
        %v2817 = vpop.permute.xlu0 %2816
        %2818 = vrot.lane.b32.xlu0 %v2161, 16
        %v2819 = vpop.permute.xlu0 %2818
        %2820 = vrot.lane.b32.xlu0 %v2163, 16
        %v2821 = vpop.permute.xlu0 %2820
        %2822 = vrot.lane.b32.xlu0 %v2165, 16
        %v2823 = vpop.permute.xlu0 %2822
        %2824 = vrot.lane.b32.xlu0 %v2167, 16
        %v2825 = vpop.permute.xlu0 %2824
        %2826 = vrot.lane.b32.xlu0 %v2169, 16
        %v2827 = vpop.permute.xlu0 %2826
        %v2828 = vsel %vm1496, %v2797, %v2813
        %v2829 = vsel %vm1496, %v2799, %v2815
        %v2830 = vsel %vm1496, %v2801, %v2817
        %v2831 = vsel %vm1496, %v2803, %v2819
        %v2832 = vsel %vm1496, %v2805, %v2821
        %v2833 = vsel %vm1496, %v2807, %v2823
        %v2834 = vsel %vm1496, %v2809, %v2825
        %v2835 = vsel %vm1496, %v2811, %v2827
        %v2836 = vsel %vm1496, %v2813, %v2797
        %v2837 = vsel %vm1496, %v2815, %v2799
        %v2838 = vsel %vm1496, %v2817, %v2801
        %v2839 = vsel %vm1496, %v2819, %v2803
        %v2840 = vsel %vm1496, %v2821, %v2805
        %v2841 = vsel %vm1496, %v2823, %v2807
        %v2842 = vsel %vm1496, %v2825, %v2809
        %v2843 = vsel %vm1496, %v2827, %v2811
        %v2844 = vsel %vm1515, %v2836, 0.0
        %v2845 = vsel %vm1516, %v2828, 0.0
        %v2846 = vsel %vm1515, %v2837, 0.0
        %v2847 = vsel %vm1516, %v2829, 0.0
        %v2848 = vsel %vm1515, %v2838, 0.0
        %v2849 = vsel %vm1516, %v2830, 0.0
        %v2850 = vsel %vm1515, %v2839, 0.0
        %v2851 = vsel %vm1516, %v2831, 0.0
        %v2852 = vsel %vm1515, %v2840, 0.0
        %v2853 = vsel %vm1516, %v2832, 0.0
        %v2854 = vsel %vm1515, %v2841, 0.0
        %v2855 = vsel %vm1516, %v2833, 0.0
        %v2856 = vsel %vm1515, %v2842, 0.0
        %v2857 = vsel %vm1516, %v2834, 0.0
        %v2858 = vsel %vm1515, %v2843, 0.0
        %v2859 = vsel %vm1516, %v2835, 0.0
        %v2860 = vadd.f32 %v2467, %v2844
        %v2861 = vadd.f32 %v2468, %v2845
        %v2862 = vadd.f32 %v2469, %v2846
        %v2863 = vadd.f32 %v2470, %v2847
        %v2864 = vadd.f32 %v2471, %v2848
        %v2865 = vadd.f32 %v2472, %v2849
        %v2866 = vadd.f32 %v2473, %v2850
        %v2867 = vadd.f32 %v2474, %v2851
        %v2868 = vadd.f32 %v2475, %v2852
        %v2869 = vadd.f32 %v2476, %v2853
        %v2870 = vadd.f32 %v2477, %v2854
        %v2871 = vadd.f32 %v2478, %v2855
        %v2872 = vadd.f32 %v2479, %v2856
        %v2873 = vadd.f32 %v2480, %v2857
        %v2874 = vadd.f32 %v2481, %v2858
        %v2875 = vadd.f32 %v2482, %v2859
        %2876 = vrot.lane.b32.xlu0 %v2780, 112
        %v2877 = vpop.permute.xlu0 %2876
        %2878 = vrot.lane.b32.xlu0 %v2782, 112
        %v2879 = vpop.permute.xlu0 %2878
        %2880 = vrot.lane.b32.xlu0 %v2784, 112
        %v2881 = vpop.permute.xlu0 %2880
        %2882 = vrot.lane.b32.xlu0 %v2786, 112
        %v2883 = vpop.permute.xlu0 %2882
        %2884 = vrot.lane.b32.xlu0 %v2788, 112
        %v2885 = vpop.permute.xlu0 %2884
        %2886 = vrot.lane.b32.xlu0 %v2790, 112
        %v2887 = vpop.permute.xlu0 %2886
        %2888 = vrot.lane.b32.xlu0 %v2792, 112
        %v2889 = vpop.permute.xlu0 %2888
        %2890 = vrot.lane.b32.xlu0 %v2794, 112
        %v2891 = vpop.permute.xlu0 %2890
        %2892 = vrot.lane.b32.xlu0 %v2781, 112
        %v2893 = vpop.permute.xlu0 %2892
        %2894 = vrot.lane.b32.xlu0 %v2783, 112
        %v2895 = vpop.permute.xlu0 %2894
        %2896 = vrot.lane.b32.xlu0 %v2785, 112
        %v2897 = vpop.permute.xlu0 %2896
        %2898 = vrot.lane.b32.xlu0 %v2787, 112
        %v2899 = vpop.permute.xlu0 %2898
        %2900 = vrot.lane.b32.xlu0 %v2789, 112
        %v2901 = vpop.permute.xlu0 %2900
        %2902 = vrot.lane.b32.xlu0 %v2791, 112
        %v2903 = vpop.permute.xlu0 %2902
        %2904 = vrot.lane.b32.xlu0 %v2793, 112
        %v2905 = vpop.permute.xlu0 %2904
        %2906 = vrot.lane.b32.xlu0 %v2795, 112
        %v2907 = vpop.permute.xlu0 %2906
        %v2908 = vsel %vm1581, %v2877, %v2893
        %v2909 = vsel %vm1581, %v2879, %v2895
        %v2910 = vsel %vm1581, %v2881, %v2897
        %v2911 = vsel %vm1581, %v2883, %v2899
        %v2912 = vsel %vm1581, %v2885, %v2901
        %v2913 = vsel %vm1581, %v2887, %v2903
        %v2914 = vsel %vm1581, %v2889, %v2905
        %v2915 = vsel %vm1581, %v2891, %v2907
        %v2916 = vsel %vm1581, %v2893, %v2877
        %v2917 = vsel %vm1581, %v2895, %v2879
        %v2918 = vsel %vm1581, %v2897, %v2881
        %v2919 = vsel %vm1581, %v2899, %v2883
        %v2920 = vsel %vm1581, %v2901, %v2885
        %v2921 = vsel %vm1581, %v2903, %v2887
        %v2922 = vsel %vm1581, %v2905, %v2889
        %v2923 = vsel %vm1581, %v2907, %v2891
        %v2924 = vsel %vm1600, %v2908, 0.0
        %v2925 = vsel %vm1601, %v2916, 0.0
        %v2926 = vsel %vm1600, %v2909, 0.0
        %v2927 = vsel %vm1601, %v2917, 0.0
        %v2928 = vsel %vm1600, %v2910, 0.0
        %v2929 = vsel %vm1601, %v2918, 0.0
        %v2930 = vsel %vm1600, %v2911, 0.0
        %v2931 = vsel %vm1601, %v2919, 0.0
        %v2932 = vsel %vm1600, %v2912, 0.0
        %v2933 = vsel %vm1601, %v2920, 0.0
        %v2934 = vsel %vm1600, %v2913, 0.0
        %v2935 = vsel %vm1601, %v2921, 0.0
        %v2936 = vsel %vm1600, %v2914, 0.0
        %v2937 = vsel %vm1601, %v2922, 0.0
        %v2938 = vsel %vm1600, %v2915, 0.0
        %v2939 = vsel %vm1601, %v2923, 0.0
        %v2940 = vadd.f32 %v2860, %v2924
        %v2941 = vadd.f32 %v2861, %v2925
        %v2942 = vadd.f32 %v2862, %v2926
        %v2943 = vadd.f32 %v2863, %v2927
        %v2944 = vadd.f32 %v2864, %v2928
        %v2945 = vadd.f32 %v2865, %v2929
        %v2946 = vadd.f32 %v2866, %v2930
        %v2947 = vadd.f32 %v2867, %v2931
        %v2948 = vadd.f32 %v2868, %v2932
        %v2949 = vadd.f32 %v2869, %v2933
        %v2950 = vadd.f32 %v2870, %v2934
        %v2951 = vadd.f32 %v2871, %v2935
        %v2952 = vadd.f32 %v2872, %v2936
        %v2953 = vadd.f32 %v2873, %v2937
        %v2954 = vadd.f32 %v2874, %v2938
        %v2955 = vadd.f32 %v2875, %v2939
        %2957 = vset.pattern.permute.xlu0 0
        %2958 = vperm.xlu0 %2957, %v339
        %v2959 = vpop.permute.xlu0 %2958
        %2962 = vset.pattern.permute.xlu0 0
        %2963 = vperm.xlu0 %2962, %v340
        %v2964 = vpop.permute.xlu0 %2963
        %2967 = vset.pattern.permute.xlu0 0
        %2968 = vperm.xlu0 %2967, %v341
        %v2969 = vpop.permute.xlu0 %2968
        %2972 = vset.pattern.permute.xlu0 0
        %2973 = vperm.xlu0 %2972, %v342
        %v2974 = vpop.permute.xlu0 %2973
        %2977 = vset.pattern.permute.xlu0 0
        %2978 = vperm.xlu0 %2977, %v343
        %v2979 = vpop.permute.xlu0 %2978
        %2982 = vset.pattern.permute.xlu0 0
        %2983 = vperm.xlu0 %2982, %v344
        %v2984 = vpop.permute.xlu0 %2983
        %2987 = vset.pattern.permute.xlu0 0
        %2988 = vperm.xlu0 %2987, %v345
        %v2989 = vpop.permute.xlu0 %2988
        %2992 = vset.pattern.permute.xlu0 0
        %2993 = vperm.xlu0 %2992, %v346
        %v2994 = vpop.permute.xlu0 %2993
        %v2996 = vadd.f32 %v2940, %v2959
        %v2997 = vadd.f32 %v2941, %v2959
        %v2998 = vadd.f32 %v2942, %v2964
        %v2999 = vadd.f32 %v2943, %v2964
        %v3000 = vadd.f32 %v2944, %v2969
        %v3001 = vadd.f32 %v2945, %v2969
        %v3002 = vadd.f32 %v2946, %v2974
        %v3003 = vadd.f32 %v2947, %v2974
        %v3004 = vadd.f32 %v2948, %v2979
        %v3005 = vadd.f32 %v2949, %v2979
        %v3006 = vadd.f32 %v2950, %v2984
        %v3007 = vadd.f32 %v2951, %v2984
        %v3008 = vadd.f32 %v2952, %v2989
        %v3009 = vadd.f32 %v2953, %v2989
        %v3010 = vadd.f32 %v2954, %v2994
        %v3011 = vadd.f32 %v2955, %v2994
        %v3012 = vadd.f32 %v347, %v2996
        %v3013 = vadd.f32 %v348, %v2997
        %v3014 = vadd.f32 %v349, %v2998
        %v3015 = vadd.f32 %v350, %v2999
        %v3016 = vadd.f32 %v351, %v3000
        %v3017 = vadd.f32 %v352, %v3001
        %v3018 = vadd.f32 %v353, %v3002
        %v3019 = vadd.f32 %v354, %v3003
        %v3020 = vadd.f32 %v355, %v3004
        %v3021 = vadd.f32 %v356, %v3005
        %v3022 = vadd.f32 %v357, %v3006
        %v3023 = vadd.f32 %v358, %v3007
        %v3024 = vadd.f32 %v359, %v3008
        %v3025 = vadd.f32 %v360, %v3009
        %v3026 = vadd.f32 %v361, %v3010
        %v3027 = vadd.f32 %v362, %v3011
        %3028 = vst [vmem:[%s268] sm:$0xff] %v3012
        %3029 = vst [vmem:[%s268 + $0x8] sm:$0xff] %v3013
        %3030 = vst [vmem:[%s268 + $0x10] sm:$0xff] %v3014
        %3031 = vst [vmem:[%s268 + $0x18] sm:$0xff] %v3015
        %3032 = vst [vmem:[%s268 + $0x20] sm:$0xff] %v3016
        %3033 = vst [vmem:[%s268 + $0x28] sm:$0xff] %v3017
        %3034 = vst [vmem:[%s268 + $0x30] sm:$0xff] %v3018
        %3035 = vst [vmem:[%s268 + $0x38] sm:$0xff] %v3019
        %3036 = vst [vmem:[%s268 + $0x40] sm:$0xff] %v3020
        %3037 = vst [vmem:[%s268 + $0x48] sm:$0xff] %v3021
        %3038 = vst [vmem:[%s268 + $0x50] sm:$0xff] %v3022
        %3039 = vst [vmem:[%s268 + $0x58] sm:$0xff] %v3023
        %3040 = vst [vmem:[%s268 + $0x60] sm:$0xff] %v3024
        %3041 = vst [vmem:[%s268 + $0x68] sm:$0xff] %v3025
        %3042 = vst [vmem:[%s268 + $0x70] sm:$0xff] %v3026
        %3043 = vst [vmem:[%s268 + $0x78] sm:$0xff] %v3027
        %s3044 = sand.u32 %s134, 1
        %s3045 = sand.u32 %s134, 1
        %s3046 = smul.addr %s3045, 128
        %s3047 = scalar_lea.vmem [#allocation3], %s3046
        // Predicated region
        $region64: #{residual_block_nobn.1} parent=58 // pred_check
          %p3048 = pneg %p144
        $region65: #{residual_block_nobn.1} parent=58 // pred_check_branch
          %3050 = sbr.rel (%p3048) target = $region67
        $region66: #{residual_block_nobn.1} parent=58 // pred_region
          %s3051 = smul.u32 2, %s16
          %s3052 = smul.addr %s3051, 8
          %s3053 = scalar_lea.vmem %s5, %s3052
          // Predicated region
          $region68: #{residual_block_nobn.1} parent=66 // pred_check
            _
          $region69: #{residual_block_nobn.1} parent=66 // pred_check_branch
            %3055 = sbr.rel (0) target = $region71
          $region70: #{residual_block_nobn.1} parent=66 // pred_region
            // Predicated region
            $region72: #{residual_block_nobn.1} parent=70 // pred_check
              _
            $region73: #{residual_block_nobn.1} parent=70 // pred_check_branch
              %3057 = sbr.rel (0) target = $region75
            $region74: #{residual_block_nobn.1} parent=70 // pred_region
              loop: start=0, step=1, limit=1
              $region76: #{residual_block_nobn.1} parent=74 // loop_pre_header
                _
              $region77: #{residual_block_nobn.1} parent=74 // loop_header
                %s3059 = sphi 0, %s3063
                %p3060 = scmp.ge.s32.totalorder %s3059, 1
                %s3064 = sphi %s3047, %s3047
                %s3065 = sphi %s3053, %s3053
              $region78: #{residual_block_nobn.1} parent=74 // loop_header_branch
                %3062 = sbr.rel (%p3060) target = $region82
              $region79: #{residual_block_nobn.1} parent=74 // loop_body
                %v3066 = vld [vmem:[%s3064] sm:$0xff]
                %3067 = vst [vmem:[%s3065] sm:$0xff] %v3066
                %v3068 = vld [vmem:[%s3064 + $0x8] sm:$0xff]
                %3069 = vst [vmem:[%s3065 + $0x8] sm:$0xff] %v3068
                %v3070 = vld [vmem:[%s3064 + $0x10] sm:$0xff]
                %3071 = vst [vmem:[%s3065 + $0x20] sm:$0xff] %v3070
                %v3072 = vld [vmem:[%s3064 + $0x18] sm:$0xff]
                %3073 = vst [vmem:[%s3065 + $0x28] sm:$0xff] %v3072
                %v3074 = vld [vmem:[%s3064 + $0x20] sm:$0xff]
                %3075 = vst [vmem:[%s3065 + $0x40] sm:$0xff] %v3074
                %v3076 = vld [vmem:[%s3064 + $0x28] sm:$0xff]
                %3077 = vst [vmem:[%s3065 + $0x48] sm:$0xff] %v3076
                %v3078 = vld [vmem:[%s3064 + $0x30] sm:$0xff]
                %3079 = vst [vmem:[%s3065 + $0x60] sm:$0xff] %v3078
                %v3080 = vld [vmem:[%s3064 + $0x38] sm:$0xff]
                %3081 = vst [vmem:[%s3065 + $0x68] sm:$0xff] %v3080
                %v3082 = vld [vmem:[%s3064 + $0x40] sm:$0xff]
                %3083 = vst [vmem:[%s3065 + $0x80] sm:$0xff] %v3082
                %v3084 = vld [vmem:[%s3064 + $0x48] sm:$0xff]
                %3085 = vst [vmem:[%s3065 + $0x88] sm:$0xff] %v3084
                %v3086 = vld [vmem:[%s3064 + $0x50] sm:$0xff]
                %3087 = vst [vmem:[%s3065 + $0xa0] sm:$0xff] %v3086
                %v3088 = vld [vmem:[%s3064 + $0x58] sm:$0xff]
                %3089 = vst [vmem:[%s3065 + $0xa8] sm:$0xff] %v3088
                %v3090 = vld [vmem:[%s3064 + $0x60] sm:$0xff]
                %3091 = vst [vmem:[%s3065 + $0xc0] sm:$0xff] %v3090
                %v3092 = vld [vmem:[%s3064 + $0x68] sm:$0xff]
                %3093 = vst [vmem:[%s3065 + $0xc8] sm:$0xff] %v3092
                %v3094 = vld [vmem:[%s3064 + $0x70] sm:$0xff]
                %3095 = vst [vmem:[%s3065 + $0xe0] sm:$0xff] %v3094
                %v3096 = vld [vmem:[%s3064 + $0x78] sm:$0xff]
                %3097 = vst [vmem:[%s3065 + $0xe8] sm:$0xff] %v3096
              $region80: #{residual_block_nobn.1} parent=74 // loop_footer
                %s3063 = sadd.s32 1, %s3059
              $region81: #{residual_block_nobn.1} parent=74 // loop_footer_branch
                %3058 = sbr.rel target = $region77
              $region82: #{residual_block_nobn.1} parent=74 // loop_exit
                _
            $region75: #{residual_block_nobn.1} parent=70 // pred_fallthru
              _
            // Predicated region
            $region83: #{residual_block_nobn.1} parent=70 // pred_check
              _
            $region84: #{residual_block_nobn.1} parent=70 // pred_check_branch
              %3099 = sbr.rel target = $region86
            $region85: #{residual_block_nobn.1} parent=70 // pred_region
              _
            $region86: #{residual_block_nobn.1} parent=70 // pred_fallthru
              _
          $region71: #{residual_block_nobn.1} parent=66 // pred_fallthru
            _
          %3100 = vnop
        $region67: #{residual_block_nobn.1} parent=58 // pred_fallthru
          _
      $region59: #{residual_block_nobn.1} parent=5 // pred_fallthru
        _
      %p3101 = scmp.le.s32.totalorder 2, %s11
      // Predicated region
      $region87: #{residual_block_nobn.1} parent=5 // pred_check
        %p3102 = pneg %p3101
      $region88: #{residual_block_nobn.1} parent=5 // pred_check_branch
        %3104 = sbr.rel (%p3102) target = $region90
      $region89: #{residual_block_nobn.1} parent=5 // pred_region
        %s3105 = ssub.s32 %s11, 2
        // Predicated region
        $region91: #{residual_block_nobn.1} parent=89 // pred_check
          %p3106 = pneg %p150
        $region92: #{residual_block_nobn.1} parent=89 // pred_check_branch
          %3108 = sbr.rel (%p3106) target = $region94
        $region93: #{residual_block_nobn.1} parent=89 // pred_region
          %s3109 = sand.u32 %s135, 1
          %s3110 = sand.u32 %s135, 1
          %s3111 = smul.addr %s3110, 128
          %s3112 = scalar_lea.vmem [#allocation3], %s3111
        $region94: #{residual_block_nobn.1} parent=89 // pred_fallthru
          _
      $region90: #{residual_block_nobn.1} parent=5 // pred_fallthru
        _
    $region6: #{residual_block_nobn.1} parent=1 // loop_footer
      %s15 = sadd.s32 1, %s11
    $region7: #{residual_block_nobn.1} parent=1 // loop_footer_branch
      %10 = sbr.rel target = $region3
    $region8: #{residual_block_nobn.1} parent=1 // loop_exit
      _

</llo_original>
